<compile_context>
chip_gen: v5e
topology: v5e:2x2
jax: 0.10.0
libtpu: 0.0.40
codegen_flags: <defaults>
</compile_context>

<pallas_src>
import functools
import math

import jax
import jax.numpy as jnp
from jax import lax
from jax.experimental import pallas as pl
from jax.experimental.pallas import tpu as pltpu

EPS = 1e-5  # nn.LayerNorm default


# ------------------------------ small helpers ------------------------------ #

def _layer_norm(x, g, b):
    """f32 LayerNorm over the last axis. g/b are [1, D]."""
    mean = jnp.mean(x, axis=-1, keepdims=True)
    var = jnp.mean((x - mean) ** 2, axis=-1, keepdims=True)
    return (x - mean) * lax.rsqrt(var + EPS) * g + b


def _row_tile(n, cap=256):
    """Row-tile size: full array for small N, otherwise a divisor <= cap."""
    if n <= cap:
        return n
    t = cap
    while t > 8 and n % t != 0:
        t //= 2
    return t if n % t == 0 else n


# ----------------------- fused multi-head attention ------------------------ #

def _mha_kernel(*refs, n_heads, causal, has_mask):
    """LN(q) + LN(kv) + QKV proj + per-head SDPA + out proj + residual."""
    if has_mask:
        (xq_ref, xkv_ref, m_ref, gq_ref, bq_ref, gk_ref, bk_ref,
         wq_ref, wk_ref, wv_ref, wo_ref, o_ref) = refs
    else:
        (xq_ref, xkv_ref, gq_ref, bq_ref, gk_ref, bk_ref,
         wq_ref, wk_ref, wv_ref, wo_ref, o_ref) = refs
        m_ref = None

    xq = xq_ref[0]                                   # [Tq, D] f32 (residual)
    xkv = xkv_ref[0]                                 # [Tk, D] f32

    nq = _layer_norm(xq, gq_ref[...], bq_ref[...]).astype(jnp.bfloat16)
    nk = _layer_norm(xkv, gk_ref[...], bk_ref[...]).astype(jnp.bfloat16)

    q = jnp.dot(nq, wq_ref[...], preferred_element_type=jnp.float32)  # [Tq, D]
    k = jnp.dot(nk, wk_ref[...], preferred_element_type=jnp.float32)  # [Tk, D]
    v = jnp.dot(nk, wv_ref[...], preferred_element_type=jnp.float32)  # [Tk, D]

    tq, d = q.shape
    tk = k.shape[0]
    dh = d // n_heads
    scale = jnp.float32(1.0 / math.sqrt(dh))

    add_mask = None
    if causal or (m_ref is not None):
        keep = jnp.ones((tq, tk), jnp.float32)
        if causal:
            row = lax.broadcasted_iota(jnp.int32, (tq, tk), 0)
            col = lax.broadcasted_iota(jnp.int32, (tq, tk), 1)
            keep = keep * (row >= col).astype(jnp.float32)
        if m_ref is not None:
            keep = keep * (m_ref[0] > 0.5).astype(jnp.float32)
        add_mask = (1.0 - keep) * jnp.float32(-1e9)   # additive mask, [Tq, Tk]

    acc = xq                                          # residual accumulator
    for h in range(n_heads):                          # static unroll over heads
        sl = slice(h * dh, (h + 1) * dh)
        qh = q[:, sl].astype(jnp.bfloat16)            # [Tq, dh]
        kh = k[:, sl].astype(jnp.bfloat16)            # [Tk, dh]
        vh = v[:, sl].astype(jnp.bfloat16)            # [Tk, dh]
        # q @ k^T contraction (MXU-native, no explicit transpose)
        s = lax.dot_general(qh, kh, (((1,), (1,)), ((), ())),
                            preferred_element_type=jnp.float32) * scale
        if add_mask is not None:
            s = s + add_mask
        s = s - jnp.max(s, axis=-1, keepdims=True)
        p = jnp.exp(s)
        p = p * pl.reciprocal(jnp.sum(p, axis=-1, keepdims=True), approx=True)
        ctx = jnp.dot(p.astype(jnp.bfloat16), vh,
                      preferred_element_type=jnp.float32)            # [Tq, dh]
        # fold output projection per head: ctx @ Wo[h]  (Wo pre-reshaped [H,dh,D])
        acc = acc + jnp.dot(ctx.astype(jnp.bfloat16), wo_ref[h],
                            preferred_element_type=jnp.float32)
    o_ref[0] = acc


def fused_mha(xq, xkv, ln_q, ln_kv, attn_p, *, n_heads, causal, mask=None):
    """xq:[B,Tq,D] (query + residual), xkv:[B,Tk,D]. Returns [B,Tq,D] f32."""
    b, tq, d = xq.shape
    tk = xkv.shape[1]
    dh = d // n_heads
    gq, bq = ln_q
    gk, bk = ln_kv
    wo3 = attn_p["wo"].reshape(n_heads, dh, d)        # per-head row blocks
    has_mask = mask is not None

    kernel = functools.partial(_mha_kernel, n_heads=n_heads, causal=causal,
                               has_mask=has_mask)

    in_specs = [
        pl.BlockSpec((1, tq, d), lambda i: (i, 0, 0)),
        pl.BlockSpec((1, tk, d), lambda i: (i, 0, 0)),
    ]
    args = [xq, xkv]
    if has_mask:
        in_specs.append(pl.BlockSpec((1, tq, tk), lambda i: (i, 0, 0)))
        args.append(mask.astype(jnp.float32))
    in_specs += [
        pl.BlockSpec((1, d), lambda i: (0, 0)),
        pl.BlockSpec((1, d), lambda i: (0, 0)),
        pl.BlockSpec((1, d), lambda i: (0, 0)),
        pl.BlockSpec((1, d), lambda i: (0, 0)),
        pl.BlockSpec((d, d), lambda i: (0, 0)),
        pl.BlockSpec((d, d), lambda i: (0, 0)),
        pl.BlockSpec((d, d), lambda i: (0, 0)),
        pl.BlockSpec((n_heads, dh, d), lambda i: (0, 0, 0)),
    ]
    args += [gq.reshape(1, d), bq.reshape(1, d),
             gk.reshape(1, d), bk.reshape(1, d),
             attn_p["wq"], attn_p["wk"], attn_p["wv"], wo3]

    return pl.pallas_call(
        kernel,
        out_shape=jax.ShapeDtypeStruct((b, tq, d), jnp.float32),
        grid=(b,),
        in_specs=in_specs,
        out_specs=pl.BlockSpec((1, tq, d), lambda i: (i, 0, 0)),
        compiler_params=pltpu.CompilerParams(dimension_semantics=("parallel",)),
    )(*args)


# ------------------------------- fused FFN ---------------------------------- #

def _ffn_kernel(x_ref, g_ref, be_ref, w1_ref, b1_ref, w2_ref, b2_ref, o_ref):
    # TransformerFeedForward: LayerNorm -> Linear -> ReLU -> Linear, then
    # residual `dense_out + inputs` (dropout output is discarded, as in torch).
    x = x_ref[...]
    nx = _layer_norm(x, g_ref[...], be_ref[...]).astype(jnp.bfloat16)
    h = jnp.dot(nx, w1_ref[...], preferred_element_type=jnp.float32) + b1_ref[...]
    h = jnp.maximum(h, 0.0).astype(jnp.bfloat16)
    y = jnp.dot(h, w2_ref[...], preferred_element_type=jnp.float32) + b2_ref[...]
    o_ref[...] = y + x


def feed_forward(x2d, gamma, beta, w1, b1, w2, b2):
    n, d = x2d.shape
    df = w1.shape[1]
    tm = _row_tile(n)
    return pl.pallas_call(
        _ffn_kernel,
        out_shape=jax.ShapeDtypeStruct((n, d), jnp.float32),
        grid=(n // tm,),
        in_specs=[
            pl.BlockSpec((tm, d), lambda i: (i, 0)),
            pl.BlockSpec((1, d), lambda i: (0, 0)),
            pl.BlockSpec((1, d), lambda i: (0, 0)),
            pl.BlockSpec((d, df), lambda i: (0, 0)),
            pl.BlockSpec((1, df), lambda i: (0, 0)),
            pl.BlockSpec((df, d), lambda i: (0, 0)),
            pl.BlockSpec((1, d), lambda i: (0, 0)),
        ],
        out_specs=pl.BlockSpec((tm, d), lambda i: (i, 0)),
        compiler_params=pltpu.CompilerParams(dimension_semantics=("parallel",)),
    )(x2d, gamma.reshape(1, d), beta.reshape(1, d),
      w1, b1.reshape(1, df), w2, b2.reshape(1, d))


# ------------------------- output (logits) projection ----------------------- #

def _logits_kernel(x_ref, e_ref, o_ref):
    # logits = x @ emb_w.T, contracted on the feature dim (MXU-native A @ B^T)
    o_ref[...] = lax.dot_general(
        x_ref[...].astype(jnp.bfloat16), e_ref[...],
        (((1,), (1,)), ((), ())), preferred_element_type=jnp.float32)


def logits_projection(x2d, emb_padded_bf16, vocab_size):
    n, d = x2d.shape
    vp = emb_padded_bf16.shape[0]
    tm = _row_tile(n)
    out = pl.pallas_call(
        _logits_kernel,
        out_shape=jax.ShapeDtypeStruct((n, vp), jnp.float32),
        grid=(n // tm,),
        in_specs=[
            pl.BlockSpec((tm, d), lambda i: (i, 0)),
            pl.BlockSpec((vp, d), lambda i: (0, 0)),
        ],
        out_specs=pl.BlockSpec((tm, vp), lambda i: (i, 0)),
        compiler_params=pltpu.CompilerParams(dimension_semantics=("parallel",)),
    )(x2d, emb_padded_bf16)
    return out[:, :vocab_size]


# ------------------------------ model pieces -------------------------------- #

def position_embedding(x, start=1):
    _, s, d = x.shape
    power = jnp.arange(0, d, 2, dtype=jnp.float32) / d
    divisor = 10000.0 ** power
    seq_pos = jnp.arange(start, s + start, dtype=jnp.float32)
    index = seq_pos[:, None] / divisor[None, :]                  # [s, d/2]
    # interleaved sin/cos, matching th.stack((sin, cos), dim=3).view(...)
    pe = jnp.stack([jnp.sin(index), jnp.cos(index)], axis=-1).reshape(1, s, d)
    return x + pe


def input_embedding(emb_w, tokens):
    e = jnp.take(emb_w, tokens, axis=0)                          # XLA gather glue
    return position_embedding(e, start=1)


def encoder_block(p, x, mask, n_heads):
    b, s, d = x.shape
    attn_res = fused_mha(x, x,
                         (p["norm_g"], p["norm_b"]),
                         (p["norm_g"], p["norm_b"]),
                         p["self_attn"], n_heads=n_heads,
                         causal=False, mask=mask)
    out = feed_forward(attn_res.reshape(b * s, d),
                       p["ff_norm_g"], p["ff_norm_b"],
                       p["ff_w1"], p["ff_b1"], p["ff_w2"], p["ff_b2"])
    return out.reshape(b, s, d)


def decoder_block(p, x, enc, n_heads, decoder_mask, mask_future, cross_mask):
    b, t, d = x.shape
    res1 = fused_mha(x, x,
                     (p["self_norm_g"], p["self_norm_b"]),
                     (p["self_norm_g"], p["self_norm_b"]),
                     p["self_attn"], n_heads=n_heads,
                     causal=mask_future, mask=decoder_mask)
    res2 = fused_mha(res1, enc,
                     (p["cross_norm_src_g"], p["cross_norm_src_b"]),
                     (p["cross_norm_tgt_g"], p["cross_norm_tgt_b"]),
                     p["cross_attn"], n_heads=n_heads,
                     causal=False, mask=cross_mask)
    out = feed_forward(res2.reshape(b * t, d),
                       p["ff_norm_g"], p["ff_norm_b"],
                       p["ff_w1"], p["ff_b1"], p["ff_w2"], p["ff_b2"])
    return out.reshape(b, t, d)


@functools.partial(
    jax.jit,
    static_argnames=("n_heads", "mask_future", "shift_target_sequence_right"))
def transformer_forward(params, source, target,
                        encoder_mask=None, decoder_mask=None, *,
                        n_heads, mask_future=True,
                        shift_target_sequence_right=True):
    emb_w = params["emb"]                           # [V, D] f32
    d = emb_w.shape[1]
    vocab = emb_w.shape[0]

    if shift_target_sequence_right:
        # int tokens -> pad value 0 at front, drop last (F.pad([1,0,0,0]))
        target = jnp.pad(target, ((0, 0), (1, 0)))[:, :-1]

    b = source.shape[0]
    t = target.shape[1]

    # encoder
    enc_out = input_embedding(emb_w, source)
    for lp in params["encoder_layers"]:
        enc_out = encoder_block(lp, enc_out, encoder_mask, n_heads)

    # TODO(synk): convert_to_attention_mask / get_cross_attention_mask for
    #             non-None padding masks are not reproduced (utils not provided).
    cross_mask = None

    # decoder (causal self-attention mask generated inside the kernel)
    dec_out = input_embedding(emb_w, target)
    for lp in params["decoder_layers"]:
        dec_out = decoder_block(lp, dec_out, enc_out, n_heads,
                                decoder_mask, mask_future, cross_mask)

    # EmbeddingTranspose output layer: logits = dec_out @ emb_w.T
    # (vocab padded to a multiple of 128 for lane-dense stores, sliced back)
    vp = ((vocab + 127) // 128) * 128
    emb_pad = jnp.zeros((vp, d), jnp.bfloat16).at[:vocab].set(
        emb_w.astype(jnp.bfloat16))
    logits = logits_projection(dec_out.reshape(b * t, d), emb_pad, vocab)
    return logits.reshape(b, t, vocab)


# ------------------------------ param init ---------------------------------- #

def init_params(key, vocab_size, n_layers, n_heads, d_model, d_filter):
    keys = iter(jax.random.split(key, 8 + n_layers * 48))
    nxt = lambda: next(keys)

    def xavier(fan_in, fan_out):
        a = math.sqrt(6.0 / (fan_in + fan_out))
        return jax.random.uniform(nxt(), (fan_in, fan_out), jnp.float32, -a, a)

    params = {}
    params["emb"] = jax.random.normal(nxt(), (vocab_size, d_model), jnp.float32)

    def attn_params():
        # bias-free Q/K/V/O projections (MultiHeadAttention spec not provided)
        return dict(
            wq=xavier(d_model, d_model).astype(jnp.bfloat16),
            wk=xavier(d_model, d_model).astype(jnp.bfloat16),
            wv=xavier(d_model, d_model).astype(jnp.bfloat16),
            wo=xavier(d_model, d_model).astype(jnp.bfloat16),
        )

    def ff_params():
        lim1 = 1.0 / math.sqrt(d_model)
        lim2 = 1.0 / math.sqrt(d_filter)
        return dict(
            ff_norm_g=jnp.ones((d_model,), jnp.float32),
            ff_norm_b=jnp.zeros((d_model,), jnp.float32),
            ff_w1=xavier(d_model, d_filter).astype(jnp.bfloat16),
            ff_b1=jax.random.uniform(nxt(), (d_filter,), jnp.float32, -lim1, lim1),
            ff_w2=xavier(d_filter, d_model).astype(jnp.bfloat16),
            ff_b2=jax.random.uniform(nxt(), (d_model,), jnp.float32, -lim2, lim2),
        )

    enc_layers = []
    for _ in range(n_layers):
        lp = dict(norm_g=jnp.ones((d_model,), jnp.float32),
                  norm_b=jnp.zeros((d_model,), jnp.float32),
                  self_attn=attn_params())
        lp.update(ff_params())
        enc_layers.append(lp)
    params["encoder_layers"] = enc_layers

    dec_layers = []
    for _ in range(n_layers):
        lp = dict(self_norm_g=jnp.ones((d_model,), jnp.float32),
                  self_norm_b=jnp.zeros((d_model,), jnp.float32),
                  cross_norm_src_g=jnp.ones((d_model,), jnp.float32),
                  cross_norm_src_b=jnp.zeros((d_model,), jnp.float32),
                  cross_norm_tgt_g=jnp.ones((d_model,), jnp.float32),
                  cross_norm_tgt_b=jnp.zeros((d_model,), jnp.float32),
                  self_attn=attn_params(),
                  cross_attn=attn_params())
        lp.update(ff_params())
        dec_layers.append(lp)
    params["decoder_layers"] = dec_layers
    return params


# ---------------------------------- main ------------------------------------ #

if __name__ == "__main__":
    vocab_size, n_layers, n_heads, d_model, d_filter = 48, 2, 4, 32, 64
    B, S, T = 2, 8, 8

    key = jax.random.PRNGKey(0)
    pkey, skey, tkey = jax.random.split(key, 3)
    params = init_params(pkey, vocab_size, n_layers, n_heads, d_model, d_filter)

    source = jax.random.randint(skey, (B, S), 0, vocab_size, dtype=jnp.int32)
    target = jax.random.randint(tkey, (B, T), 0, vocab_size, dtype=jnp.int32)

    logits = transformer_forward(params, source, target, None, None,
                                 n_heads=n_heads, mask_future=True,
                                 shift_target_sequence_right=True)
    logits = jax.block_until_ready(logits)
    assert logits.shape == (B, T, vocab_size)
    assert bool(jnp.all(jnp.isfinite(logits)))
    print("KERNEL_OK")
</pallas_src>

<mosaic_0001>
module attributes {stable_mosaic.version = 11 : i64} {
  func.func @_mha_kernel(%arg0: i32, %arg1: memref<1x8x32xf32, #tpu.memory_space<vmem>>, %arg2: memref<1x8x32xf32, #tpu.memory_space<vmem>>, %arg3: memref<1x32xf32, #tpu.memory_space<vmem>>, %arg4: memref<1x32xf32, #tpu.memory_space<vmem>>, %arg5: memref<1x32xf32, #tpu.memory_space<vmem>>, %arg6: memref<1x32xf32, #tpu.memory_space<vmem>>, %arg7: memref<32x32xbf16, #tpu.memory_space<vmem>>, %arg8: memref<32x32xbf16, #tpu.memory_space<vmem>>, %arg9: memref<32x32xbf16, #tpu.memory_space<vmem>>, %arg10: memref<4x8x32xbf16, #tpu.memory_space<vmem>>, %arg11: memref<1x8x32xf32, #tpu.memory_space<vmem>>) attributes {dimension_semantics = [#tpu.dimension_semantics<parallel>], iteration_bounds = array<i64: 2>, scalar_prefetch = 0 : i64, scratch_operands = 0 : i64, tpu.core_type = #tpu.core_type<tc>, window_params = [{transform_indices = @transform_0, window_bounds = array<i64: 1, 8, 32>}, {transform_indices = @transform_1, window_bounds = array<i64: 1, 8, 32>}, {pipeline_mode = #tpu.pipeline_mode<synchronous>, transform_indices = @transform_2, window_bounds = array<i64: 1, 32>}, {pipeline_mode = #tpu.pipeline_mode<synchronous>, transform_indices = @transform_3, window_bounds = array<i64: 1, 32>}, {pipeline_mode = #tpu.pipeline_mode<synchronous>, transform_indices = @transform_4, window_bounds = array<i64: 1, 32>}, {pipeline_mode = #tpu.pipeline_mode<synchronous>, transform_indices = @transform_5, window_bounds = array<i64: 1, 32>}, {pipeline_mode = #tpu.pipeline_mode<synchronous>, transform_indices = @transform_6, window_bounds = array<i64: 32, 32>}, {pipeline_mode = #tpu.pipeline_mode<synchronous>, transform_indices = @transform_7, window_bounds = array<i64: 32, 32>}, {pipeline_mode = #tpu.pipeline_mode<synchronous>, transform_indices = @transform_8, window_bounds = array<i64: 32, 32>}, {pipeline_mode = #tpu.pipeline_mode<synchronous>, transform_indices = @transform_9, window_bounds = array<i64: 4, 8, 32>}, {transform_indices = @transform_10, window_bounds = array<i64: 1, 8, 32>}]} {
    %c0 = arith.constant 0 : index
    %c0_0 = arith.constant 0 : index
    %c0_1 = arith.constant 0 : index
    %0 = vector.load %arg1[%c0, %c0_0, %c0_1] : memref<1x8x32xf32, #tpu.memory_space<vmem>>, vector<1x8x32xf32>
    %1 = vector.shape_cast %0 : vector<1x8x32xf32> to vector<8x32xf32>
    %c0_2 = arith.constant 0 : index
    %c0_3 = arith.constant 0 : index
    %c0_4 = arith.constant 0 : index
    %2 = vector.load %arg2[%c0_2, %c0_3, %c0_4] : memref<1x8x32xf32, #tpu.memory_space<vmem>>, vector<1x8x32xf32>
    %3 = vector.shape_cast %2 : vector<1x8x32xf32> to vector<8x32xf32>
    %c0_5 = arith.constant 0 : index
    %c0_6 = arith.constant 0 : index
    %4 = vector.load %arg3[%c0_5, %c0_6] : memref<1x32xf32, #tpu.memory_space<vmem>>, vector<1x32xf32>
    %c0_7 = arith.constant 0 : index
    %c0_8 = arith.constant 0 : index
    %5 = vector.load %arg4[%c0_7, %c0_8] : memref<1x32xf32, #tpu.memory_space<vmem>>, vector<1x32xf32>
    %cst = arith.constant dense<0.000000e+00> : vector<8xf32>
    %6 = vector.multi_reduction <add>, %1, %cst [1] : vector<8x32xf32> to vector<8xf32>
    %7 = vector.shape_cast %6 : vector<8xf32> to vector<8x1xf32>
    %cst_9 = arith.constant 3.200000e+01 : f32
    %8 = vector.broadcast %cst_9 : f32 to vector<8x1xf32>
    %9 = arith.divf %7, %8 : vector<8x1xf32>
    %10 = vector.broadcast %9 : vector<8x1xf32> to vector<8x32xf32>
    %11 = arith.subf %1, %10 : vector<8x32xf32>
    %12 = arith.mulf %11, %11 : vector<8x32xf32>
    %cst_10 = arith.constant dense<0.000000e+00> : vector<8xf32>
    %13 = vector.multi_reduction <add>, %12, %cst_10 [1] : vector<8x32xf32> to vector<8xf32>
    %14 = vector.shape_cast %13 : vector<8xf32> to vector<8x1xf32>
    %cst_11 = arith.constant 3.200000e+01 : f32
    %15 = vector.broadcast %cst_11 : f32 to vector<8x1xf32>
    %16 = arith.divf %14, %15 : vector<8x1xf32>
    %17 = vector.broadcast %9 : vector<8x1xf32> to vector<8x32xf32>
    %18 = arith.subf %1, %17 : vector<8x32xf32>
    %cst_12 = arith.constant 9.99999974E-6 : f32
    %19 = vector.broadcast %cst_12 : f32 to vector<8x1xf32>
    %20 = arith.addf %16, %19 : vector<8x1xf32>
    %21 = math.rsqrt %20 : vector<8x1xf32>
    %22 = vector.broadcast %21 : vector<8x1xf32> to vector<8x32xf32>
    %23 = arith.mulf %18, %22 : vector<8x32xf32>
    %24 = vector.broadcast %4 : vector<1x32xf32> to vector<8x32xf32>
    %25 = arith.mulf %23, %24 : vector<8x32xf32>
    %26 = vector.broadcast %5 : vector<1x32xf32> to vector<8x32xf32>
    %27 = arith.addf %25, %26 : vector<8x32xf32>
    %28 = arith.truncf %27 : vector<8x32xf32> to vector<8x32xbf16>
    %c0_13 = arith.constant 0 : index
    %c0_14 = arith.constant 0 : index
    %29 = vector.load %arg5[%c0_13, %c0_14] : memref<1x32xf32, #tpu.memory_space<vmem>>, vector<1x32xf32>
    %c0_15 = arith.constant 0 : index
    %c0_16 = arith.constant 0 : index
    %30 = vector.load %arg6[%c0_15, %c0_16] : memref<1x32xf32, #tpu.memory_space<vmem>>, vector<1x32xf32>
    %cst_17 = arith.constant dense<0.000000e+00> : vector<8xf32>
    %31 = vector.multi_reduction <add>, %3, %cst_17 [1] : vector<8x32xf32> to vector<8xf32>
    %32 = vector.shape_cast %31 : vector<8xf32> to vector<8x1xf32>
    %cst_18 = arith.constant 3.200000e+01 : f32
    %33 = vector.broadcast %cst_18 : f32 to vector<8x1xf32>
    %34 = arith.divf %32, %33 : vector<8x1xf32>
    %35 = vector.broadcast %34 : vector<8x1xf32> to vector<8x32xf32>
    %36 = arith.subf %3, %35 : vector<8x32xf32>
    %37 = arith.mulf %36, %36 : vector<8x32xf32>
    %cst_19 = arith.constant dense<0.000000e+00> : vector<8xf32>
    %38 = vector.multi_reduction <add>, %37, %cst_19 [1] : vector<8x32xf32> to vector<8xf32>
    %39 = vector.shape_cast %38 : vector<8xf32> to vector<8x1xf32>
    %cst_20 = arith.constant 3.200000e+01 : f32
    %40 = vector.broadcast %cst_20 : f32 to vector<8x1xf32>
    %41 = arith.divf %39, %40 : vector<8x1xf32>
    %42 = vector.broadcast %34 : vector<8x1xf32> to vector<8x32xf32>
    %43 = arith.subf %3, %42 : vector<8x32xf32>
    %cst_21 = arith.constant 9.99999974E-6 : f32
    %44 = vector.broadcast %cst_21 : f32 to vector<8x1xf32>
    %45 = arith.addf %41, %44 : vector<8x1xf32>
    %46 = math.rsqrt %45 : vector<8x1xf32>
    %47 = vector.broadcast %46 : vector<8x1xf32> to vector<8x32xf32>
    %48 = arith.mulf %43, %47 : vector<8x32xf32>
    %49 = vector.broadcast %29 : vector<1x32xf32> to vector<8x32xf32>
    %50 = arith.mulf %48, %49 : vector<8x32xf32>
    %51 = vector.broadcast %30 : vector<1x32xf32> to vector<8x32xf32>
    %52 = arith.addf %50, %51 : vector<8x32xf32>
    %53 = arith.truncf %52 : vector<8x32xf32> to vector<8x32xbf16>
    %c0_22 = arith.constant 0 : index
    %c0_23 = arith.constant 0 : index
    %54 = vector.load %arg7[%c0_22, %c0_23] : memref<32x32xbf16, #tpu.memory_space<vmem>>, vector<32x32xbf16>
    %cst_24 = arith.constant dense<0.000000e+00> : vector<8x32xf32>
    %55 = tpu.matmul %28, %54, %cst_24 {dimension_numbers = #tpu.dot_dimension_numbers<[1], [0], [0], [1], [0, 0, 1, 1], [], []>} : vector<8x32xbf16>, vector<32x32xbf16>, vector<8x32xf32> -> vector<8x32xf32>
    %c0_25 = arith.constant 0 : index
    %c0_26 = arith.constant 0 : index
    %56 = vector.load %arg8[%c0_25, %c0_26] : memref<32x32xbf16, #tpu.memory_space<vmem>>, vector<32x32xbf16>
    %cst_27 = arith.constant dense<0.000000e+00> : vector<8x32xf32>
    %57 = tpu.matmul %53, %56, %cst_27 {dimension_numbers = #tpu.dot_dimension_numbers<[1], [0], [0], [1], [0, 0, 1, 1], [], []>} : vector<8x32xbf16>, vector<32x32xbf16>, vector<8x32xf32> -> vector<8x32xf32>
    %c0_28 = arith.constant 0 : index
    %c0_29 = arith.constant 0 : index
    %58 = vector.load %arg9[%c0_28, %c0_29] : memref<32x32xbf16, #tpu.memory_space<vmem>>, vector<32x32xbf16>
    %cst_30 = arith.constant dense<0.000000e+00> : vector<8x32xf32>
    %59 = tpu.matmul %53, %58, %cst_30 {dimension_numbers = #tpu.dot_dimension_numbers<[1], [0], [0], [1], [0, 0, 1, 1], [], []>} : vector<8x32xbf16>, vector<32x32xbf16>, vector<8x32xf32> -> vector<8x32xf32>
    %60 = vector.extract_strided_slice %55 {offsets = [0, 0], sizes = [8, 8], strides = [1, 1]} : vector<8x32xf32> to vector<8x8xf32>
    %61 = arith.truncf %60 : vector<8x8xf32> to vector<8x8xbf16>
    %62 = vector.extract_strided_slice %57 {offsets = [0, 0], sizes = [8, 8], strides = [1, 1]} : vector<8x32xf32> to vector<8x8xf32>
    %63 = arith.truncf %62 : vector<8x8xf32> to vector<8x8xbf16>
    %64 = vector.extract_strided_slice %59 {offsets = [0, 0], sizes = [8, 8], strides = [1, 1]} : vector<8x32xf32> to vector<8x8xf32>
    %65 = arith.truncf %64 : vector<8x8xf32> to vector<8x8xbf16>
    %cst_31 = arith.constant dense<0.000000e+00> : vector<8x8xf32>
    %66 = tpu.matmul %61, %63, %cst_31 {dimension_numbers = #tpu.dot_dimension_numbers<[1], [1], [0], [0], [0, 0, 1, 0], [], []>} : vector<8x8xbf16>, vector<8x8xbf16>, vector<8x8xf32> -> vector<8x8xf32>
    %cst_32 = arith.constant 0.353553385 : f32
    %67 = vector.broadcast %cst_32 : f32 to vector<8x8xf32>
    %68 = arith.mulf %66, %67 : vector<8x8xf32>
    %cst_33 = arith.constant dense<0xFF800000> : vector<8xf32>
    %69 = vector.multi_reduction <maximumf>, %68, %cst_33 [1] : vector<8x8xf32> to vector<8xf32>
    %70 = vector.shape_cast %69 : vector<8xf32> to vector<8x1xf32>
    %71 = vector.broadcast %70 : vector<8x1xf32> to vector<8x8xf32>
    %72 = arith.subf %68, %71 : vector<8x8xf32>
    %73 = math.exp %72 : vector<8x8xf32>
    %cst_34 = arith.constant dense<0.000000e+00> : vector<8xf32>
    %74 = vector.multi_reduction <add>, %73, %cst_34 [1] : vector<8x8xf32> to vector<8xf32>
    %75 = vector.shape_cast %74 : vector<8xf32> to vector<8x1xf32>
    %76 = tpu.reciprocal %75 {approx = true} : vector<8x1xf32> -> vector<8x1xf32>
    %77 = vector.broadcast %76 : vector<8x1xf32> to vector<8x8xf32>
    %78 = arith.mulf %73, %77 : vector<8x8xf32>
    %79 = arith.truncf %78 : vector<8x8xf32> to vector<8x8xbf16>
    %cst_35 = arith.constant dense<0.000000e+00> : vector<8x8xf32>
    %80 = tpu.matmul %79, %65, %cst_35 {dimension_numbers = #tpu.dot_dimension_numbers<[1], [0], [0], [1], [0, 0, 1, 1], [], []>} : vector<8x8xbf16>, vector<8x8xbf16>, vector<8x8xf32> -> vector<8x8xf32>
    %81 = arith.truncf %80 : vector<8x8xf32> to vector<8x8xbf16>
    %c0_36 = arith.constant 0 : index
    %c0_37 = arith.constant 0 : index
    %c0_38 = arith.constant 0 : index
    %82 = vector.load %arg10[%c0_36, %c0_37, %c0_38] : memref<4x8x32xbf16, #tpu.memory_space<vmem>>, vector<1x8x32xbf16>
    %83 = vector.shape_cast %82 : vector<1x8x32xbf16> to vector<8x32xbf16>
    %cst_39 = arith.constant dense<0.000000e+00> : vector<8x32xf32>
    %84 = tpu.matmul %81, %83, %cst_39 {dimension_numbers = #tpu.dot_dimension_numbers<[1], [0], [0], [1], [0, 0, 1, 1], [], []>} : vector<8x8xbf16>, vector<8x32xbf16>, vector<8x32xf32> -> vector<8x32xf32>
    %85 = arith.addf %1, %84 : vector<8x32xf32>
    %86 = vector.extract_strided_slice %55 {offsets = [0, 8], sizes = [8, 8], strides = [1, 1]} : vector<8x32xf32> to vector<8x8xf32>
    %87 = arith.truncf %86 : vector<8x8xf32> to vector<8x8xbf16>
    %88 = vector.extract_strided_slice %57 {offsets = [0, 8], sizes = [8, 8], strides = [1, 1]} : vector<8x32xf32> to vector<8x8xf32>
    %89 = arith.truncf %88 : vector<8x8xf32> to vector<8x8xbf16>
    %90 = vector.extract_strided_slice %59 {offsets = [0, 8], sizes = [8, 8], strides = [1, 1]} : vector<8x32xf32> to vector<8x8xf32>
    %91 = arith.truncf %90 : vector<8x8xf32> to vector<8x8xbf16>
    %cst_40 = arith.constant dense<0.000000e+00> : vector<8x8xf32>
    %92 = tpu.matmul %87, %89, %cst_40 {dimension_numbers = #tpu.dot_dimension_numbers<[1], [1], [0], [0], [0, 0, 1, 0], [], []>} : vector<8x8xbf16>, vector<8x8xbf16>, vector<8x8xf32> -> vector<8x8xf32>
    %cst_41 = arith.constant 0.353553385 : f32
    %93 = vector.broadcast %cst_41 : f32 to vector<8x8xf32>
    %94 = arith.mulf %92, %93 : vector<8x8xf32>
    %cst_42 = arith.constant dense<0xFF800000> : vector<8xf32>
    %95 = vector.multi_reduction <maximumf>, %94, %cst_42 [1] : vector<8x8xf32> to vector<8xf32>
    %96 = vector.shape_cast %95 : vector<8xf32> to vector<8x1xf32>
    %97 = vector.broadcast %96 : vector<8x1xf32> to vector<8x8xf32>
    %98 = arith.subf %94, %97 : vector<8x8xf32>
    %99 = math.exp %98 : vector<8x8xf32>
    %cst_43 = arith.constant dense<0.000000e+00> : vector<8xf32>
    %100 = vector.multi_reduction <add>, %99, %cst_43 [1] : vector<8x8xf32> to vector<8xf32>
    %101 = vector.shape_cast %100 : vector<8xf32> to vector<8x1xf32>
    %102 = tpu.reciprocal %101 {approx = true} : vector<8x1xf32> -> vector<8x1xf32>
    %103 = vector.broadcast %102 : vector<8x1xf32> to vector<8x8xf32>
    %104 = arith.mulf %99, %103 : vector<8x8xf32>
    %105 = arith.truncf %104 : vector<8x8xf32> to vector<8x8xbf16>
    %cst_44 = arith.constant dense<0.000000e+00> : vector<8x8xf32>
    %106 = tpu.matmul %105, %91, %cst_44 {dimension_numbers = #tpu.dot_dimension_numbers<[1], [0], [0], [1], [0, 0, 1, 1], [], []>} : vector<8x8xbf16>, vector<8x8xbf16>, vector<8x8xf32> -> vector<8x8xf32>
    %107 = arith.truncf %106 : vector<8x8xf32> to vector<8x8xbf16>
    %c1 = arith.constant 1 : index
    %c0_45 = arith.constant 0 : index
    %c0_46 = arith.constant 0 : index
    %108 = vector.load %arg10[%c1, %c0_45, %c0_46] : memref<4x8x32xbf16, #tpu.memory_space<vmem>>, vector<1x8x32xbf16>
    %109 = vector.shape_cast %108 : vector<1x8x32xbf16> to vector<8x32xbf16>
    %cst_47 = arith.constant dense<0.000000e+00> : vector<8x32xf32>
    %110 = tpu.matmul %107, %109, %cst_47 {dimension_numbers = #tpu.dot_dimension_numbers<[1], [0], [0], [1], [0, 0, 1, 1], [], []>} : vector<8x8xbf16>, vector<8x32xbf16>, vector<8x32xf32> -> vector<8x32xf32>
    %111 = arith.addf %85, %110 : vector<8x32xf32>
    %112 = vector.extract_strided_slice %55 {offsets = [0, 16], sizes = [8, 8], strides = [1, 1]} : vector<8x32xf32> to vector<8x8xf32>
    %113 = arith.truncf %112 : vector<8x8xf32> to vector<8x8xbf16>
    %114 = vector.extract_strided_slice %57 {offsets = [0, 16], sizes = [8, 8], strides = [1, 1]} : vector<8x32xf32> to vector<8x8xf32>
    %115 = arith.truncf %114 : vector<8x8xf32> to vector<8x8xbf16>
    %116 = vector.extract_strided_slice %59 {offsets = [0, 16], sizes = [8, 8], strides = [1, 1]} : vector<8x32xf32> to vector<8x8xf32>
    %117 = arith.truncf %116 : vector<8x8xf32> to vector<8x8xbf16>
    %cst_48 = arith.constant dense<0.000000e+00> : vector<8x8xf32>
    %118 = tpu.matmul %113, %115, %cst_48 {dimension_numbers = #tpu.dot_dimension_numbers<[1], [1], [0], [0], [0, 0, 1, 0], [], []>} : vector<8x8xbf16>, vector<8x8xbf16>, vector<8x8xf32> -> vector<8x8xf32>
    %cst_49 = arith.constant 0.353553385 : f32
    %119 = vector.broadcast %cst_49 : f32 to vector<8x8xf32>
    %120 = arith.mulf %118, %119 : vector<8x8xf32>
    %cst_50 = arith.constant dense<0xFF800000> : vector<8xf32>
    %121 = vector.multi_reduction <maximumf>, %120, %cst_50 [1] : vector<8x8xf32> to vector<8xf32>
    %122 = vector.shape_cast %121 : vector<8xf32> to vector<8x1xf32>
    %123 = vector.broadcast %122 : vector<8x1xf32> to vector<8x8xf32>
    %124 = arith.subf %120, %123 : vector<8x8xf32>
    %125 = math.exp %124 : vector<8x8xf32>
    %cst_51 = arith.constant dense<0.000000e+00> : vector<8xf32>
    %126 = vector.multi_reduction <add>, %125, %cst_51 [1] : vector<8x8xf32> to vector<8xf32>
    %127 = vector.shape_cast %126 : vector<8xf32> to vector<8x1xf32>
    %128 = tpu.reciprocal %127 {approx = true} : vector<8x1xf32> -> vector<8x1xf32>
    %129 = vector.broadcast %128 : vector<8x1xf32> to vector<8x8xf32>
    %130 = arith.mulf %125, %129 : vector<8x8xf32>
    %131 = arith.truncf %130 : vector<8x8xf32> to vector<8x8xbf16>
    %cst_52 = arith.constant dense<0.000000e+00> : vector<8x8xf32>
    %132 = tpu.matmul %131, %117, %cst_52 {dimension_numbers = #tpu.dot_dimension_numbers<[1], [0], [0], [1], [0, 0, 1, 1], [], []>} : vector<8x8xbf16>, vector<8x8xbf16>, vector<8x8xf32> -> vector<8x8xf32>
    %133 = arith.truncf %132 : vector<8x8xf32> to vector<8x8xbf16>
    %c2 = arith.constant 2 : index
    %c0_53 = arith.constant 0 : index
    %c0_54 = arith.constant 0 : index
    %134 = vector.load %arg10[%c2, %c0_53, %c0_54] : memref<4x8x32xbf16, #tpu.memory_space<vmem>>, vector<1x8x32xbf16>
    %135 = vector.shape_cast %134 : vector<1x8x32xbf16> to vector<8x32xbf16>
    %cst_55 = arith.constant dense<0.000000e+00> : vector<8x32xf32>
    %136 = tpu.matmul %133, %135, %cst_55 {dimension_numbers = #tpu.dot_dimension_numbers<[1], [0], [0], [1], [0, 0, 1, 1], [], []>} : vector<8x8xbf16>, vector<8x32xbf16>, vector<8x32xf32> -> vector<8x32xf32>
    %137 = arith.addf %111, %136 : vector<8x32xf32>
    %138 = vector.extract_strided_slice %55 {offsets = [0, 24], sizes = [8, 8], strides = [1, 1]} : vector<8x32xf32> to vector<8x8xf32>
    %139 = arith.truncf %138 : vector<8x8xf32> to vector<8x8xbf16>
    %140 = vector.extract_strided_slice %57 {offsets = [0, 24], sizes = [8, 8], strides = [1, 1]} : vector<8x32xf32> to vector<8x8xf32>
    %141 = arith.truncf %140 : vector<8x8xf32> to vector<8x8xbf16>
    %142 = vector.extract_strided_slice %59 {offsets = [0, 24], sizes = [8, 8], strides = [1, 1]} : vector<8x32xf32> to vector<8x8xf32>
    %143 = arith.truncf %142 : vector<8x8xf32> to vector<8x8xbf16>
    %cst_56 = arith.constant dense<0.000000e+00> : vector<8x8xf32>
    %144 = tpu.matmul %139, %141, %cst_56 {dimension_numbers = #tpu.dot_dimension_numbers<[1], [1], [0], [0], [0, 0, 1, 0], [], []>} : vector<8x8xbf16>, vector<8x8xbf16>, vector<8x8xf32> -> vector<8x8xf32>
    %cst_57 = arith.constant 0.353553385 : f32
    %145 = vector.broadcast %cst_57 : f32 to vector<8x8xf32>
    %146 = arith.mulf %144, %145 : vector<8x8xf32>
    %cst_58 = arith.constant dense<0xFF800000> : vector<8xf32>
    %147 = vector.multi_reduction <maximumf>, %146, %cst_58 [1] : vector<8x8xf32> to vector<8xf32>
    %148 = vector.shape_cast %147 : vector<8xf32> to vector<8x1xf32>
    %149 = vector.broadcast %148 : vector<8x1xf32> to vector<8x8xf32>
    %150 = arith.subf %146, %149 : vector<8x8xf32>
    %151 = math.exp %150 : vector<8x8xf32>
    %cst_59 = arith.constant dense<0.000000e+00> : vector<8xf32>
    %152 = vector.multi_reduction <add>, %151, %cst_59 [1] : vector<8x8xf32> to vector<8xf32>
    %153 = vector.shape_cast %152 : vector<8xf32> to vector<8x1xf32>
    %154 = tpu.reciprocal %153 {approx = true} : vector<8x1xf32> -> vector<8x1xf32>
    %155 = vector.broadcast %154 : vector<8x1xf32> to vector<8x8xf32>
    %156 = arith.mulf %151, %155 : vector<8x8xf32>
    %157 = arith.truncf %156 : vector<8x8xf32> to vector<8x8xbf16>
    %cst_60 = arith.constant dense<0.000000e+00> : vector<8x8xf32>
    %158 = tpu.matmul %157, %143, %cst_60 {dimension_numbers = #tpu.dot_dimension_numbers<[1], [0], [0], [1], [0, 0, 1, 1], [], []>} : vector<8x8xbf16>, vector<8x8xbf16>, vector<8x8xf32> -> vector<8x8xf32>
    %159 = arith.truncf %158 : vector<8x8xf32> to vector<8x8xbf16>
    %c3 = arith.constant 3 : index
    %c0_61 = arith.constant 0 : index
    %c0_62 = arith.constant 0 : index
    %160 = vector.load %arg10[%c3, %c0_61, %c0_62] : memref<4x8x32xbf16, #tpu.memory_space<vmem>>, vector<1x8x32xbf16>
    %161 = vector.shape_cast %160 : vector<1x8x32xbf16> to vector<8x32xbf16>
    %cst_63 = arith.constant dense<0.000000e+00> : vector<8x32xf32>
    %162 = tpu.matmul %159, %161, %cst_63 {dimension_numbers = #tpu.dot_dimension_numbers<[1], [0], [0], [1], [0, 0, 1, 1], [], []>} : vector<8x8xbf16>, vector<8x32xbf16>, vector<8x32xf32> -> vector<8x32xf32>
    %163 = arith.addf %137, %162 : vector<8x32xf32>
    %c0_64 = arith.constant 0 : index
    %c0_65 = arith.constant 0 : index
    %c0_66 = arith.constant 0 : index
    %164 = vector.load %arg11[%c0_64, %c0_65, %c0_66] : memref<1x8x32xf32, #tpu.memory_space<vmem>>, vector<1x8x32xf32>
    %165 = vector.shape_cast %164 : vector<1x8x32xf32> to vector<8x32xf32>
    %166 = vector.shape_cast %163 : vector<8x32xf32> to vector<1x8x32xf32>
    tpu.vector_store %arg11[%c0_64, %c0_65, %c0_66], %166 {strides = array<i32>} : memref<1x8x32xf32, #tpu.memory_space<vmem>>, vector<1x8x32xf32>,
    return
  }
  func.func @transform_0(%arg0: i32) -> (i32, i32, i32) {
    %c0_i32 = arith.constant 0 : i32
    %c0_i32_0 = arith.constant 0 : i32
    %c0_i32_1 = arith.constant 0 : i32
    return %arg0, %c0_i32, %c0_i32_0 : i32, i32, i32
  }
  func.func @transform_1(%arg0: i32) -> (i32, i32, i32) {
    %c0_i32 = arith.constant 0 : i32
    %c0_i32_0 = arith.constant 0 : i32
    %c0_i32_1 = arith.constant 0 : i32
    return %arg0, %c0_i32, %c0_i32_0 : i32, i32, i32
  }
  func.func @transform_2(%arg0: i32) -> (i32, i32) {
    %c0_i32 = arith.constant 0 : i32
    %c0_i32_0 = arith.constant 0 : i32
    %c0_i32_1 = arith.constant 0 : i32
    return %c0_i32, %c0_i32_0 : i32, i32
  }
  func.func @transform_3(%arg0: i32) -> (i32, i32) {
    %c0_i32 = arith.constant 0 : i32
    %c0_i32_0 = arith.constant 0 : i32
    %c0_i32_1 = arith.constant 0 : i32
    return %c0_i32, %c0_i32_0 : i32, i32
  }
  func.func @transform_4(%arg0: i32) -> (i32, i32) {
    %c0_i32 = arith.constant 0 : i32
    %c0_i32_0 = arith.constant 0 : i32
    %c0_i32_1 = arith.constant 0 : i32
    return %c0_i32, %c0_i32_0 : i32, i32
  }
  func.func @transform_5(%arg0: i32) -> (i32, i32) {
    %c0_i32 = arith.constant 0 : i32
    %c0_i32_0 = arith.constant 0 : i32
    %c0_i32_1 = arith.constant 0 : i32
    return %c0_i32, %c0_i32_0 : i32, i32
  }
  func.func @transform_6(%arg0: i32) -> (i32, i32) {
    %c0_i32 = arith.constant 0 : i32
    %c0_i32_0 = arith.constant 0 : i32
    %c0_i32_1 = arith.constant 0 : i32
    return %c0_i32, %c0_i32_0 : i32, i32
  }
  func.func @transform_7(%arg0: i32) -> (i32, i32) {
    %c0_i32 = arith.constant 0 : i32
    %c0_i32_0 = arith.constant 0 : i32
    %c0_i32_1 = arith.constant 0 : i32
    return %c0_i32, %c0_i32_0 : i32, i32
  }
  func.func @transform_8(%arg0: i32) -> (i32, i32) {
    %c0_i32 = arith.constant 0 : i32
    %c0_i32_0 = arith.constant 0 : i32
    %c0_i32_1 = arith.constant 0 : i32
    return %c0_i32, %c0_i32_0 : i32, i32
  }
  func.func @transform_9(%arg0: i32) -> (i32, i32, i32) {
    %c0_i32 = arith.constant 0 : i32
    %c0_i32_0 = arith.constant 0 : i32
    %c0_i32_1 = arith.constant 0 : i32
    %c0_i32_2 = arith.constant 0 : i32
    return %c0_i32, %c0_i32_0, %c0_i32_1 : i32, i32, i32
  }
  func.func @transform_10(%arg0: i32) -> (i32, i32, i32) {
    %c0_i32 = arith.constant 0 : i32
    %c0_i32_0 = arith.constant 0 : i32
    %c0_i32_1 = arith.constant 0 : i32
    return %arg0, %c0_i32, %c0_i32_0 : i32, i32, i32
  }
}

module attributes {stable_mosaic.version = 11 : i64} {
  func.func @_ffn_kernel(%arg0: i32, %arg1: memref<16x32xf32, #tpu.memory_space<vmem>>, %arg2: memref<1x32xf32, #tpu.memory_space<vmem>>, %arg3: memref<1x32xf32, #tpu.memory_space<vmem>>, %arg4: memref<32x64xbf16, #tpu.memory_space<vmem>>, %arg5: memref<1x64xf32, #tpu.memory_space<vmem>>, %arg6: memref<64x32xbf16, #tpu.memory_space<vmem>>, %arg7: memref<1x32xf32, #tpu.memory_space<vmem>>, %arg8: memref<16x32xf32, #tpu.memory_space<vmem>>) attributes {dimension_semantics = [#tpu.dimension_semantics<parallel>], iteration_bounds = array<i64: 1>, scalar_prefetch = 0 : i64, scratch_operands = 0 : i64, tpu.core_type = #tpu.core_type<tc>, window_params = [{transform_indices = @transform_0, window_bounds = array<i64: 16, 32>}, {pipeline_mode = #tpu.pipeline_mode<synchronous>, transform_indices = @transform_1, window_bounds = array<i64: 1, 32>}, {pipeline_mode = #tpu.pipeline_mode<synchronous>, transform_indices = @transform_2, window_bounds = array<i64: 1, 32>}, {pipeline_mode = #tpu.pipeline_mode<synchronous>, transform_indices = @transform_3, window_bounds = array<i64: 32, 64>}, {pipeline_mode = #tpu.pipeline_mode<synchronous>, transform_indices = @transform_4, window_bounds = array<i64: 1, 64>}, {pipeline_mode = #tpu.pipeline_mode<synchronous>, transform_indices = @transform_5, window_bounds = array<i64: 64, 32>}, {pipeline_mode = #tpu.pipeline_mode<synchronous>, transform_indices = @transform_6, window_bounds = array<i64: 1, 32>}, {transform_indices = @transform_7, window_bounds = array<i64: 16, 32>}]} {
    %c0 = arith.constant 0 : index
    %c0_0 = arith.constant 0 : index
    %0 = vector.load %arg1[%c0, %c0_0] : memref<16x32xf32, #tpu.memory_space<vmem>>, vector<16x32xf32>
    %c0_1 = arith.constant 0 : index
    %c0_2 = arith.constant 0 : index
    %1 = vector.load %arg2[%c0_1, %c0_2] : memref<1x32xf32, #tpu.memory_space<vmem>>, vector<1x32xf32>
    %c0_3 = arith.constant 0 : index
    %c0_4 = arith.constant 0 : index
    %2 = vector.load %arg3[%c0_3, %c0_4] : memref<1x32xf32, #tpu.memory_space<vmem>>, vector<1x32xf32>
    %cst = arith.constant dense<0.000000e+00> : vector<16xf32>
    %3 = vector.multi_reduction <add>, %0, %cst [1] : vector<16x32xf32> to vector<16xf32>
    %4 = vector.shape_cast %3 : vector<16xf32> to vector<16x1xf32>
    %cst_5 = arith.constant 3.200000e+01 : f32
    %5 = vector.broadcast %cst_5 : f32 to vector<16x1xf32>
    %6 = arith.divf %4, %5 : vector<16x1xf32>
    %7 = vector.broadcast %6 : vector<16x1xf32> to vector<16x32xf32>
    %8 = arith.subf %0, %7 : vector<16x32xf32>
    %9 = arith.mulf %8, %8 : vector<16x32xf32>
    %cst_6 = arith.constant dense<0.000000e+00> : vector<16xf32>
    %10 = vector.multi_reduction <add>, %9, %cst_6 [1] : vector<16x32xf32> to vector<16xf32>
    %11 = vector.shape_cast %10 : vector<16xf32> to vector<16x1xf32>
    %cst_7 = arith.constant 3.200000e+01 : f32
    %12 = vector.broadcast %cst_7 : f32 to vector<16x1xf32>
    %13 = arith.divf %11, %12 : vector<16x1xf32>
    %14 = vector.broadcast %6 : vector<16x1xf32> to vector<16x32xf32>
    %15 = arith.subf %0, %14 : vector<16x32xf32>
    %cst_8 = arith.constant 9.99999974E-6 : f32
    %16 = vector.broadcast %cst_8 : f32 to vector<16x1xf32>
    %17 = arith.addf %13, %16 : vector<16x1xf32>
    %18 = math.rsqrt %17 : vector<16x1xf32>
    %19 = vector.broadcast %18 : vector<16x1xf32> to vector<16x32xf32>
    %20 = arith.mulf %15, %19 : vector<16x32xf32>
    %21 = vector.broadcast %1 : vector<1x32xf32> to vector<16x32xf32>
    %22 = arith.mulf %20, %21 : vector<16x32xf32>
    %23 = vector.broadcast %2 : vector<1x32xf32> to vector<16x32xf32>
    %24 = arith.addf %22, %23 : vector<16x32xf32>
    %25 = arith.truncf %24 : vector<16x32xf32> to vector<16x32xbf16>
    %c0_9 = arith.constant 0 : index
    %c0_10 = arith.constant 0 : index
    %26 = vector.load %arg4[%c0_9, %c0_10] : memref<32x64xbf16, #tpu.memory_space<vmem>>, vector<32x64xbf16>
    %cst_11 = arith.constant dense<0.000000e+00> : vector<16x64xf32>
    %27 = tpu.matmul %25, %26, %cst_11 {dimension_numbers = #tpu.dot_dimension_numbers<[1], [0], [0], [1], [0, 0, 1, 1], [], []>} : vector<16x32xbf16>, vector<32x64xbf16>, vector<16x64xf32> -> vector<16x64xf32>
    %c0_12 = arith.constant 0 : index
    %c0_13 = arith.constant 0 : index
    %28 = vector.load %arg5[%c0_12, %c0_13] : memref<1x64xf32, #tpu.memory_space<vmem>>, vector<1x64xf32>
    %29 = vector.broadcast %28 : vector<1x64xf32> to vector<16x64xf32>
    %30 = arith.addf %27, %29 : vector<16x64xf32>
    %cst_14 = arith.constant 0.000000e+00 : f32
    %31 = vector.broadcast %cst_14 : f32 to vector<16x64xf32>
    %32 = arith.maximumf %30, %31 : vector<16x64xf32>
    %33 = arith.truncf %32 : vector<16x64xf32> to vector<16x64xbf16>
    %c0_15 = arith.constant 0 : index
    %c0_16 = arith.constant 0 : index
    %34 = vector.load %arg6[%c0_15, %c0_16] : memref<64x32xbf16, #tpu.memory_space<vmem>>, vector<64x32xbf16>
    %cst_17 = arith.constant dense<0.000000e+00> : vector<16x32xf32>
    %35 = tpu.matmul %33, %34, %cst_17 {dimension_numbers = #tpu.dot_dimension_numbers<[1], [0], [0], [1], [0, 0, 1, 1], [], []>} : vector<16x64xbf16>, vector<64x32xbf16>, vector<16x32xf32> -> vector<16x32xf32>
    %c0_18 = arith.constant 0 : index
    %c0_19 = arith.constant 0 : index
    %36 = vector.load %arg7[%c0_18, %c0_19] : memref<1x32xf32, #tpu.memory_space<vmem>>, vector<1x32xf32>
    %37 = vector.broadcast %36 : vector<1x32xf32> to vector<16x32xf32>
    %38 = arith.addf %35, %37 : vector<16x32xf32>
    %39 = arith.addf %38, %0 : vector<16x32xf32>
    %c0_20 = arith.constant 0 : index
    %c0_21 = arith.constant 0 : index
    %40 = vector.load %arg8[%c0_20, %c0_21] : memref<16x32xf32, #tpu.memory_space<vmem>>, vector<16x32xf32>
    tpu.vector_store %arg8[%c0_20, %c0_21], %39 {strides = array<i32>} : memref<16x32xf32, #tpu.memory_space<vmem>>, vector<16x32xf32>,
    return
  }
  func.func @transform_0(%arg0: i32) -> (i32, i32) {
    %c0_i32 = arith.constant 0 : i32
    %c0_i32_0 = arith.constant 0 : i32
    return %arg0, %c0_i32 : i32, i32
  }
  func.func @transform_1(%arg0: i32) -> (i32, i32) {
    %c0_i32 = arith.constant 0 : i32
    %c0_i32_0 = arith.constant 0 : i32
    %c0_i32_1 = arith.constant 0 : i32
    return %c0_i32, %c0_i32_0 : i32, i32
  }
  func.func @transform_2(%arg0: i32) -> (i32, i32) {
    %c0_i32 = arith.constant 0 : i32
    %c0_i32_0 = arith.constant 0 : i32
    %c0_i32_1 = arith.constant 0 : i32
    return %c0_i32, %c0_i32_0 : i32, i32
  }
  func.func @transform_3(%arg0: i32) -> (i32, i32) {
    %c0_i32 = arith.constant 0 : i32
    %c0_i32_0 = arith.constant 0 : i32
    %c0_i32_1 = arith.constant 0 : i32
    return %c0_i32, %c0_i32_0 : i32, i32
  }
  func.func @transform_4(%arg0: i32) -> (i32, i32) {
    %c0_i32 = arith.constant 0 : i32
    %c0_i32_0 = arith.constant 0 : i32
    %c0_i32_1 = arith.constant 0 : i32
    return %c0_i32, %c0_i32_0 : i32, i32
  }
  func.func @transform_5(%arg0: i32) -> (i32, i32) {
    %c0_i32 = arith.constant 0 : i32
    %c0_i32_0 = arith.constant 0 : i32
    %c0_i32_1 = arith.constant 0 : i32
    return %c0_i32, %c0_i32_0 : i32, i32
  }
  func.func @transform_6(%arg0: i32) -> (i32, i32) {
    %c0_i32 = arith.constant 0 : i32
    %c0_i32_0 = arith.constant 0 : i32
    %c0_i32_1 = arith.constant 0 : i32
    return %c0_i32, %c0_i32_0 : i32, i32
  }
  func.func @transform_7(%arg0: i32) -> (i32, i32) {
    %c0_i32 = arith.constant 0 : i32
    %c0_i32_0 = arith.constant 0 : i32
    return %arg0, %c0_i32 : i32, i32
  }
}

module attributes {stable_mosaic.version = 11 : i64} {
  func.func @_mha_kernel(%arg0: i32, %arg1: memref<1x8x32xf32, #tpu.memory_space<vmem>>, %arg2: memref<1x8x32xf32, #tpu.memory_space<vmem>>, %arg3: memref<1x32xf32, #tpu.memory_space<vmem>>, %arg4: memref<1x32xf32, #tpu.memory_space<vmem>>, %arg5: memref<1x32xf32, #tpu.memory_space<vmem>>, %arg6: memref<1x32xf32, #tpu.memory_space<vmem>>, %arg7: memref<32x32xbf16, #tpu.memory_space<vmem>>, %arg8: memref<32x32xbf16, #tpu.memory_space<vmem>>, %arg9: memref<32x32xbf16, #tpu.memory_space<vmem>>, %arg10: memref<4x8x32xbf16, #tpu.memory_space<vmem>>, %arg11: memref<1x8x32xf32, #tpu.memory_space<vmem>>) attributes {dimension_semantics = [#tpu.dimension_semantics<parallel>], iteration_bounds = array<i64: 2>, scalar_prefetch = 0 : i64, scratch_operands = 0 : i64, tpu.core_type = #tpu.core_type<tc>, window_params = [{transform_indices = @transform_0, window_bounds = array<i64: 1, 8, 32>}, {transform_indices = @transform_1, window_bounds = array<i64: 1, 8, 32>}, {pipeline_mode = #tpu.pipeline_mode<synchronous>, transform_indices = @transform_2, window_bounds = array<i64: 1, 32>}, {pipeline_mode = #tpu.pipeline_mode<synchronous>, transform_indices = @transform_3, window_bounds = array<i64: 1, 32>}, {pipeline_mode = #tpu.pipeline_mode<synchronous>, transform_indices = @transform_4, window_bounds = array<i64: 1, 32>}, {pipeline_mode = #tpu.pipeline_mode<synchronous>, transform_indices = @transform_5, window_bounds = array<i64: 1, 32>}, {pipeline_mode = #tpu.pipeline_mode<synchronous>, transform_indices = @transform_6, window_bounds = array<i64: 32, 32>}, {pipeline_mode = #tpu.pipeline_mode<synchronous>, transform_indices = @transform_7, window_bounds = array<i64: 32, 32>}, {pipeline_mode = #tpu.pipeline_mode<synchronous>, transform_indices = @transform_8, window_bounds = array<i64: 32, 32>}, {pipeline_mode = #tpu.pipeline_mode<synchronous>, transform_indices = @transform_9, window_bounds = array<i64: 4, 8, 32>}, {transform_indices = @transform_10, window_bounds = array<i64: 1, 8, 32>}]} {
    %c0 = arith.constant 0 : index
    %c0_0 = arith.constant 0 : index
    %c0_1 = arith.constant 0 : index
    %0 = vector.load %arg1[%c0, %c0_0, %c0_1] : memref<1x8x32xf32, #tpu.memory_space<vmem>>, vector<1x8x32xf32>
    %1 = vector.shape_cast %0 : vector<1x8x32xf32> to vector<8x32xf32>
    %c0_2 = arith.constant 0 : index
    %c0_3 = arith.constant 0 : index
    %c0_4 = arith.constant 0 : index
    %2 = vector.load %arg2[%c0_2, %c0_3, %c0_4] : memref<1x8x32xf32, #tpu.memory_space<vmem>>, vector<1x8x32xf32>
    %3 = vector.shape_cast %2 : vector<1x8x32xf32> to vector<8x32xf32>
    %c0_5 = arith.constant 0 : index
    %c0_6 = arith.constant 0 : index
    %4 = vector.load %arg3[%c0_5, %c0_6] : memref<1x32xf32, #tpu.memory_space<vmem>>, vector<1x32xf32>
    %c0_7 = arith.constant 0 : index
    %c0_8 = arith.constant 0 : index
    %5 = vector.load %arg4[%c0_7, %c0_8] : memref<1x32xf32, #tpu.memory_space<vmem>>, vector<1x32xf32>
    %cst = arith.constant dense<0.000000e+00> : vector<8xf32>
    %6 = vector.multi_reduction <add>, %1, %cst [1] : vector<8x32xf32> to vector<8xf32>
    %7 = vector.shape_cast %6 : vector<8xf32> to vector<8x1xf32>
    %cst_9 = arith.constant 3.200000e+01 : f32
    %8 = vector.broadcast %cst_9 : f32 to vector<8x1xf32>
    %9 = arith.divf %7, %8 : vector<8x1xf32>
    %10 = vector.broadcast %9 : vector<8x1xf32> to vector<8x32xf32>
    %11 = arith.subf %1, %10 : vector<8x32xf32>
    %12 = arith.mulf %11, %11 : vector<8x32xf32>
    %cst_10 = arith.constant dense<0.000000e+00> : vector<8xf32>
    %13 = vector.multi_reduction <add>, %12, %cst_10 [1] : vector<8x32xf32> to vector<8xf32>
    %14 = vector.shape_cast %13 : vector<8xf32> to vector<8x1xf32>
    %cst_11 = arith.constant 3.200000e+01 : f32
    %15 = vector.broadcast %cst_11 : f32 to vector<8x1xf32>
    %16 = arith.divf %14, %15 : vector<8x1xf32>
    %17 = vector.broadcast %9 : vector<8x1xf32> to vector<8x32xf32>
    %18 = arith.subf %1, %17 : vector<8x32xf32>
    %cst_12 = arith.constant 9.99999974E-6 : f32
    %19 = vector.broadcast %cst_12 : f32 to vector<8x1xf32>
    %20 = arith.addf %16, %19 : vector<8x1xf32>
    %21 = math.rsqrt %20 : vector<8x1xf32>
    %22 = vector.broadcast %21 : vector<8x1xf32> to vector<8x32xf32>
    %23 = arith.mulf %18, %22 : vector<8x32xf32>
    %24 = vector.broadcast %4 : vector<1x32xf32> to vector<8x32xf32>
    %25 = arith.mulf %23, %24 : vector<8x32xf32>
    %26 = vector.broadcast %5 : vector<1x32xf32> to vector<8x32xf32>
    %27 = arith.addf %25, %26 : vector<8x32xf32>
    %28 = arith.truncf %27 : vector<8x32xf32> to vector<8x32xbf16>
    %c0_13 = arith.constant 0 : index
    %c0_14 = arith.constant 0 : index
    %29 = vector.load %arg5[%c0_13, %c0_14] : memref<1x32xf32, #tpu.memory_space<vmem>>, vector<1x32xf32>
    %c0_15 = arith.constant 0 : index
    %c0_16 = arith.constant 0 : index
    %30 = vector.load %arg6[%c0_15, %c0_16] : memref<1x32xf32, #tpu.memory_space<vmem>>, vector<1x32xf32>
    %cst_17 = arith.constant dense<0.000000e+00> : vector<8xf32>
    %31 = vector.multi_reduction <add>, %3, %cst_17 [1] : vector<8x32xf32> to vector<8xf32>
    %32 = vector.shape_cast %31 : vector<8xf32> to vector<8x1xf32>
    %cst_18 = arith.constant 3.200000e+01 : f32
    %33 = vector.broadcast %cst_18 : f32 to vector<8x1xf32>
    %34 = arith.divf %32, %33 : vector<8x1xf32>
    %35 = vector.broadcast %34 : vector<8x1xf32> to vector<8x32xf32>
    %36 = arith.subf %3, %35 : vector<8x32xf32>
    %37 = arith.mulf %36, %36 : vector<8x32xf32>
    %cst_19 = arith.constant dense<0.000000e+00> : vector<8xf32>
    %38 = vector.multi_reduction <add>, %37, %cst_19 [1] : vector<8x32xf32> to vector<8xf32>
    %39 = vector.shape_cast %38 : vector<8xf32> to vector<8x1xf32>
    %cst_20 = arith.constant 3.200000e+01 : f32
    %40 = vector.broadcast %cst_20 : f32 to vector<8x1xf32>
    %41 = arith.divf %39, %40 : vector<8x1xf32>
    %42 = vector.broadcast %34 : vector<8x1xf32> to vector<8x32xf32>
    %43 = arith.subf %3, %42 : vector<8x32xf32>
    %cst_21 = arith.constant 9.99999974E-6 : f32
    %44 = vector.broadcast %cst_21 : f32 to vector<8x1xf32>
    %45 = arith.addf %41, %44 : vector<8x1xf32>
    %46 = math.rsqrt %45 : vector<8x1xf32>
    %47 = vector.broadcast %46 : vector<8x1xf32> to vector<8x32xf32>
    %48 = arith.mulf %43, %47 : vector<8x32xf32>
    %49 = vector.broadcast %29 : vector<1x32xf32> to vector<8x32xf32>
    %50 = arith.mulf %48, %49 : vector<8x32xf32>
    %51 = vector.broadcast %30 : vector<1x32xf32> to vector<8x32xf32>
    %52 = arith.addf %50, %51 : vector<8x32xf32>
    %53 = arith.truncf %52 : vector<8x32xf32> to vector<8x32xbf16>
    %c0_22 = arith.constant 0 : index
    %c0_23 = arith.constant 0 : index
    %54 = vector.load %arg7[%c0_22, %c0_23] : memref<32x32xbf16, #tpu.memory_space<vmem>>, vector<32x32xbf16>
    %cst_24 = arith.constant dense<0.000000e+00> : vector<8x32xf32>
    %55 = tpu.matmul %28, %54, %cst_24 {dimension_numbers = #tpu.dot_dimension_numbers<[1], [0], [0], [1], [0, 0, 1, 1], [], []>} : vector<8x32xbf16>, vector<32x32xbf16>, vector<8x32xf32> -> vector<8x32xf32>
    %c0_25 = arith.constant 0 : index
    %c0_26 = arith.constant 0 : index
    %56 = vector.load %arg8[%c0_25, %c0_26] : memref<32x32xbf16, #tpu.memory_space<vmem>>, vector<32x32xbf16>
    %cst_27 = arith.constant dense<0.000000e+00> : vector<8x32xf32>
    %57 = tpu.matmul %53, %56, %cst_27 {dimension_numbers = #tpu.dot_dimension_numbers<[1], [0], [0], [1], [0, 0, 1, 1], [], []>} : vector<8x32xbf16>, vector<32x32xbf16>, vector<8x32xf32> -> vector<8x32xf32>
    %c0_28 = arith.constant 0 : index
    %c0_29 = arith.constant 0 : index
    %58 = vector.load %arg9[%c0_28, %c0_29] : memref<32x32xbf16, #tpu.memory_space<vmem>>, vector<32x32xbf16>
    %cst_30 = arith.constant dense<0.000000e+00> : vector<8x32xf32>
    %59 = tpu.matmul %53, %58, %cst_30 {dimension_numbers = #tpu.dot_dimension_numbers<[1], [0], [0], [1], [0, 0, 1, 1], [], []>} : vector<8x32xbf16>, vector<32x32xbf16>, vector<8x32xf32> -> vector<8x32xf32>
    %60 = vector.extract_strided_slice %55 {offsets = [0, 0], sizes = [8, 8], strides = [1, 1]} : vector<8x32xf32> to vector<8x8xf32>
    %61 = arith.truncf %60 : vector<8x8xf32> to vector<8x8xbf16>
    %62 = vector.extract_strided_slice %57 {offsets = [0, 0], sizes = [8, 8], strides = [1, 1]} : vector<8x32xf32> to vector<8x8xf32>
    %63 = arith.truncf %62 : vector<8x8xf32> to vector<8x8xbf16>
    %64 = vector.extract_strided_slice %59 {offsets = [0, 0], sizes = [8, 8], strides = [1, 1]} : vector<8x32xf32> to vector<8x8xf32>
    %65 = arith.truncf %64 : vector<8x8xf32> to vector<8x8xbf16>
    %cst_31 = arith.constant dense<0.000000e+00> : vector<8x8xf32>
    %66 = tpu.matmul %61, %63, %cst_31 {dimension_numbers = #tpu.dot_dimension_numbers<[1], [1], [0], [0], [0, 0, 1, 0], [], []>} : vector<8x8xbf16>, vector<8x8xbf16>, vector<8x8xf32> -> vector<8x8xf32>
    %cst_32 = arith.constant 0.353553385 : f32
    %67 = vector.broadcast %cst_32 : f32 to vector<8x8xf32>
    %68 = arith.mulf %66, %67 : vector<8x8xf32>
    %cst_33 = arith.constant dense<0xFF800000> : vector<8xf32>
    %69 = vector.multi_reduction <maximumf>, %68, %cst_33 [1] : vector<8x8xf32> to vector<8xf32>
    %70 = vector.shape_cast %69 : vector<8xf32> to vector<8x1xf32>
    %71 = vector.broadcast %70 : vector<8x1xf32> to vector<8x8xf32>
    %72 = arith.subf %68, %71 : vector<8x8xf32>
    %73 = math.exp %72 : vector<8x8xf32>
    %cst_34 = arith.constant dense<0.000000e+00> : vector<8xf32>
    %74 = vector.multi_reduction <add>, %73, %cst_34 [1] : vector<8x8xf32> to vector<8xf32>
    %75 = vector.shape_cast %74 : vector<8xf32> to vector<8x1xf32>
    %76 = tpu.reciprocal %75 {approx = true} : vector<8x1xf32> -> vector<8x1xf32>
    %77 = vector.broadcast %76 : vector<8x1xf32> to vector<8x8xf32>
    %78 = arith.mulf %73, %77 : vector<8x8xf32>
    %79 = arith.truncf %78 : vector<8x8xf32> to vector<8x8xbf16>
    %cst_35 = arith.constant dense<0.000000e+00> : vector<8x8xf32>
    %80 = tpu.matmul %79, %65, %cst_35 {dimension_numbers = #tpu.dot_dimension_numbers<[1], [0], [0], [1], [0, 0, 1, 1], [], []>} : vector<8x8xbf16>, vector<8x8xbf16>, vector<8x8xf32> -> vector<8x8xf32>
    %81 = arith.truncf %80 : vector<8x8xf32> to vector<8x8xbf16>
    %c0_36 = arith.constant 0 : index
    %c0_37 = arith.constant 0 : index
    %c0_38 = arith.constant 0 : index
    %82 = vector.load %arg10[%c0_36, %c0_37, %c0_38] : memref<4x8x32xbf16, #tpu.memory_space<vmem>>, vector<1x8x32xbf16>
    %83 = vector.shape_cast %82 : vector<1x8x32xbf16> to vector<8x32xbf16>
    %cst_39 = arith.constant dense<0.000000e+00> : vector<8x32xf32>
    %84 = tpu.matmul %81, %83, %cst_39 {dimension_numbers = #tpu.dot_dimension_numbers<[1], [0], [0], [1], [0, 0, 1, 1], [], []>} : vector<8x8xbf16>, vector<8x32xbf16>, vector<8x32xf32> -> vector<8x32xf32>
    %85 = arith.addf %1, %84 : vector<8x32xf32>
    %86 = vector.extract_strided_slice %55 {offsets = [0, 8], sizes = [8, 8], strides = [1, 1]} : vector<8x32xf32> to vector<8x8xf32>
    %87 = arith.truncf %86 : vector<8x8xf32> to vector<8x8xbf16>
    %88 = vector.extract_strided_slice %57 {offsets = [0, 8], sizes = [8, 8], strides = [1, 1]} : vector<8x32xf32> to vector<8x8xf32>
    %89 = arith.truncf %88 : vector<8x8xf32> to vector<8x8xbf16>
    %90 = vector.extract_strided_slice %59 {offsets = [0, 8], sizes = [8, 8], strides = [1, 1]} : vector<8x32xf32> to vector<8x8xf32>
    %91 = arith.truncf %90 : vector<8x8xf32> to vector<8x8xbf16>
    %cst_40 = arith.constant dense<0.000000e+00> : vector<8x8xf32>
    %92 = tpu.matmul %87, %89, %cst_40 {dimension_numbers = #tpu.dot_dimension_numbers<[1], [1], [0], [0], [0, 0, 1, 0], [], []>} : vector<8x8xbf16>, vector<8x8xbf16>, vector<8x8xf32> -> vector<8x8xf32>
    %cst_41 = arith.constant 0.353553385 : f32
    %93 = vector.broadcast %cst_41 : f32 to vector<8x8xf32>
    %94 = arith.mulf %92, %93 : vector<8x8xf32>
    %cst_42 = arith.constant dense<0xFF800000> : vector<8xf32>
    %95 = vector.multi_reduction <maximumf>, %94, %cst_42 [1] : vector<8x8xf32> to vector<8xf32>
    %96 = vector.shape_cast %95 : vector<8xf32> to vector<8x1xf32>
    %97 = vector.broadcast %96 : vector<8x1xf32> to vector<8x8xf32>
    %98 = arith.subf %94, %97 : vector<8x8xf32>
    %99 = math.exp %98 : vector<8x8xf32>
    %cst_43 = arith.constant dense<0.000000e+00> : vector<8xf32>
    %100 = vector.multi_reduction <add>, %99, %cst_43 [1] : vector<8x8xf32> to vector<8xf32>
    %101 = vector.shape_cast %100 : vector<8xf32> to vector<8x1xf32>
    %102 = tpu.reciprocal %101 {approx = true} : vector<8x1xf32> -> vector<8x1xf32>
    %103 = vector.broadcast %102 : vector<8x1xf32> to vector<8x8xf32>
    %104 = arith.mulf %99, %103 : vector<8x8xf32>
    %105 = arith.truncf %104 : vector<8x8xf32> to vector<8x8xbf16>
    %cst_44 = arith.constant dense<0.000000e+00> : vector<8x8xf32>
    %106 = tpu.matmul %105, %91, %cst_44 {dimension_numbers = #tpu.dot_dimension_numbers<[1], [0], [0], [1], [0, 0, 1, 1], [], []>} : vector<8x8xbf16>, vector<8x8xbf16>, vector<8x8xf32> -> vector<8x8xf32>
    %107 = arith.truncf %106 : vector<8x8xf32> to vector<8x8xbf16>
    %c1 = arith.constant 1 : index
    %c0_45 = arith.constant 0 : index
    %c0_46 = arith.constant 0 : index
    %108 = vector.load %arg10[%c1, %c0_45, %c0_46] : memref<4x8x32xbf16, #tpu.memory_space<vmem>>, vector<1x8x32xbf16>
    %109 = vector.shape_cast %108 : vector<1x8x32xbf16> to vector<8x32xbf16>
    %cst_47 = arith.constant dense<0.000000e+00> : vector<8x32xf32>
    %110 = tpu.matmul %107, %109, %cst_47 {dimension_numbers = #tpu.dot_dimension_numbers<[1], [0], [0], [1], [0, 0, 1, 1], [], []>} : vector<8x8xbf16>, vector<8x32xbf16>, vector<8x32xf32> -> vector<8x32xf32>
    %111 = arith.addf %85, %110 : vector<8x32xf32>
    %112 = vector.extract_strided_slice %55 {offsets = [0, 16], sizes = [8, 8], strides = [1, 1]} : vector<8x32xf32> to vector<8x8xf32>
    %113 = arith.truncf %112 : vector<8x8xf32> to vector<8x8xbf16>
    %114 = vector.extract_strided_slice %57 {offsets = [0, 16], sizes = [8, 8], strides = [1, 1]} : vector<8x32xf32> to vector<8x8xf32>
    %115 = arith.truncf %114 : vector<8x8xf32> to vector<8x8xbf16>
    %116 = vector.extract_strided_slice %59 {offsets = [0, 16], sizes = [8, 8], strides = [1, 1]} : vector<8x32xf32> to vector<8x8xf32>
    %117 = arith.truncf %116 : vector<8x8xf32> to vector<8x8xbf16>
    %cst_48 = arith.constant dense<0.000000e+00> : vector<8x8xf32>
    %118 = tpu.matmul %113, %115, %cst_48 {dimension_numbers = #tpu.dot_dimension_numbers<[1], [1], [0], [0], [0, 0, 1, 0], [], []>} : vector<8x8xbf16>, vector<8x8xbf16>, vector<8x8xf32> -> vector<8x8xf32>
    %cst_49 = arith.constant 0.353553385 : f32
    %119 = vector.broadcast %cst_49 : f32 to vector<8x8xf32>
    %120 = arith.mulf %118, %119 : vector<8x8xf32>
    %cst_50 = arith.constant dense<0xFF800000> : vector<8xf32>
    %121 = vector.multi_reduction <maximumf>, %120, %cst_50 [1] : vector<8x8xf32> to vector<8xf32>
    %122 = vector.shape_cast %121 : vector<8xf32> to vector<8x1xf32>
    %123 = vector.broadcast %122 : vector<8x1xf32> to vector<8x8xf32>
    %124 = arith.subf %120, %123 : vector<8x8xf32>
    %125 = math.exp %124 : vector<8x8xf32>
    %cst_51 = arith.constant dense<0.000000e+00> : vector<8xf32>
    %126 = vector.multi_reduction <add>, %125, %cst_51 [1] : vector<8x8xf32> to vector<8xf32>
    %127 = vector.shape_cast %126 : vector<8xf32> to vector<8x1xf32>
    %128 = tpu.reciprocal %127 {approx = true} : vector<8x1xf32> -> vector<8x1xf32>
    %129 = vector.broadcast %128 : vector<8x1xf32> to vector<8x8xf32>
    %130 = arith.mulf %125, %129 : vector<8x8xf32>
    %131 = arith.truncf %130 : vector<8x8xf32> to vector<8x8xbf16>
    %cst_52 = arith.constant dense<0.000000e+00> : vector<8x8xf32>
    %132 = tpu.matmul %131, %117, %cst_52 {dimension_numbers = #tpu.dot_dimension_numbers<[1], [0], [0], [1], [0, 0, 1, 1], [], []>} : vector<8x8xbf16>, vector<8x8xbf16>, vector<8x8xf32> -> vector<8x8xf32>
    %133 = arith.truncf %132 : vector<8x8xf32> to vector<8x8xbf16>
    %c2 = arith.constant 2 : index
    %c0_53 = arith.constant 0 : index
    %c0_54 = arith.constant 0 : index
    %134 = vector.load %arg10[%c2, %c0_53, %c0_54] : memref<4x8x32xbf16, #tpu.memory_space<vmem>>, vector<1x8x32xbf16>
    %135 = vector.shape_cast %134 : vector<1x8x32xbf16> to vector<8x32xbf16>
    %cst_55 = arith.constant dense<0.000000e+00> : vector<8x32xf32>
    %136 = tpu.matmul %133, %135, %cst_55 {dimension_numbers = #tpu.dot_dimension_numbers<[1], [0], [0], [1], [0, 0, 1, 1], [], []>} : vector<8x8xbf16>, vector<8x32xbf16>, vector<8x32xf32> -> vector<8x32xf32>
    %137 = arith.addf %111, %136 : vector<8x32xf32>
    %138 = vector.extract_strided_slice %55 {offsets = [0, 24], sizes = [8, 8], strides = [1, 1]} : vector<8x32xf32> to vector<8x8xf32>
    %139 = arith.truncf %138 : vector<8x8xf32> to vector<8x8xbf16>
    %140 = vector.extract_strided_slice %57 {offsets = [0, 24], sizes = [8, 8], strides = [1, 1]} : vector<8x32xf32> to vector<8x8xf32>
    %141 = arith.truncf %140 : vector<8x8xf32> to vector<8x8xbf16>
    %142 = vector.extract_strided_slice %59 {offsets = [0, 24], sizes = [8, 8], strides = [1, 1]} : vector<8x32xf32> to vector<8x8xf32>
    %143 = arith.truncf %142 : vector<8x8xf32> to vector<8x8xbf16>
    %cst_56 = arith.constant dense<0.000000e+00> : vector<8x8xf32>
    %144 = tpu.matmul %139, %141, %cst_56 {dimension_numbers = #tpu.dot_dimension_numbers<[1], [1], [0], [0], [0, 0, 1, 0], [], []>} : vector<8x8xbf16>, vector<8x8xbf16>, vector<8x8xf32> -> vector<8x8xf32>
    %cst_57 = arith.constant 0.353553385 : f32
    %145 = vector.broadcast %cst_57 : f32 to vector<8x8xf32>
    %146 = arith.mulf %144, %145 : vector<8x8xf32>
    %cst_58 = arith.constant dense<0xFF800000> : vector<8xf32>
    %147 = vector.multi_reduction <maximumf>, %146, %cst_58 [1] : vector<8x8xf32> to vector<8xf32>
    %148 = vector.shape_cast %147 : vector<8xf32> to vector<8x1xf32>
    %149 = vector.broadcast %148 : vector<8x1xf32> to vector<8x8xf32>
    %150 = arith.subf %146, %149 : vector<8x8xf32>
    %151 = math.exp %150 : vector<8x8xf32>
    %cst_59 = arith.constant dense<0.000000e+00> : vector<8xf32>
    %152 = vector.multi_reduction <add>, %151, %cst_59 [1] : vector<8x8xf32> to vector<8xf32>
    %153 = vector.shape_cast %152 : vector<8xf32> to vector<8x1xf32>
    %154 = tpu.reciprocal %153 {approx = true} : vector<8x1xf32> -> vector<8x1xf32>
    %155 = vector.broadcast %154 : vector<8x1xf32> to vector<8x8xf32>
    %156 = arith.mulf %151, %155 : vector<8x8xf32>
    %157 = arith.truncf %156 : vector<8x8xf32> to vector<8x8xbf16>
    %cst_60 = arith.constant dense<0.000000e+00> : vector<8x8xf32>
    %158 = tpu.matmul %157, %143, %cst_60 {dimension_numbers = #tpu.dot_dimension_numbers<[1], [0], [0], [1], [0, 0, 1, 1], [], []>} : vector<8x8xbf16>, vector<8x8xbf16>, vector<8x8xf32> -> vector<8x8xf32>
    %159 = arith.truncf %158 : vector<8x8xf32> to vector<8x8xbf16>
    %c3 = arith.constant 3 : index
    %c0_61 = arith.constant 0 : index
    %c0_62 = arith.constant 0 : index
    %160 = vector.load %arg10[%c3, %c0_61, %c0_62] : memref<4x8x32xbf16, #tpu.memory_space<vmem>>, vector<1x8x32xbf16>
    %161 = vector.shape_cast %160 : vector<1x8x32xbf16> to vector<8x32xbf16>
    %cst_63 = arith.constant dense<0.000000e+00> : vector<8x32xf32>
    %162 = tpu.matmul %159, %161, %cst_63 {dimension_numbers = #tpu.dot_dimension_numbers<[1], [0], [0], [1], [0, 0, 1, 1], [], []>} : vector<8x8xbf16>, vector<8x32xbf16>, vector<8x32xf32> -> vector<8x32xf32>
    %163 = arith.addf %137, %162 : vector<8x32xf32>
    %c0_64 = arith.constant 0 : index
    %c0_65 = arith.constant 0 : index
    %c0_66 = arith.constant 0 : index
    %164 = vector.load %arg11[%c0_64, %c0_65, %c0_66] : memref<1x8x32xf32, #tpu.memory_space<vmem>>, vector<1x8x32xf32>
    %165 = vector.shape_cast %164 : vector<1x8x32xf32> to vector<8x32xf32>
    %166 = vector.shape_cast %163 : vector<8x32xf32> to vector<1x8x32xf32>
    tpu.vector_store %arg11[%c0_64, %c0_65, %c0_66], %166 {strides = array<i32>} : memref<1x8x32xf32, #tpu.memory_space<vmem>>, vector<1x8x32xf32>,
    return
  }
  func.func @transform_0(%arg0: i32) -> (i32, i32, i32) {
    %c0_i32 = arith.constant 0 : i32
    %c0_i32_0 = arith.constant 0 : i32
    %c0_i32_1 = arith.constant 0 : i32
    return %arg0, %c0_i32, %c0_i32_0 : i32, i32, i32
  }
  func.func @transform_1(%arg0: i32) -> (i32, i32, i32) {
    %c0_i32 = arith.constant 0 : i32
    %c0_i32_0 = arith.constant 0 : i32
    %c0_i32_1 = arith.constant 0 : i32
    return %arg0, %c0_i32, %c0_i32_0 : i32, i32, i32
  }
  func.func @transform_2(%arg0: i32) -> (i32, i32) {
    %c0_i32 = arith.constant 0 : i32
    %c0_i32_0 = arith.constant 0 : i32
    %c0_i32_1 = arith.constant 0 : i32
    return %c0_i32, %c0_i32_0 : i32, i32
  }
  func.func @transform_3(%arg0: i32) -> (i32, i32) {
    %c0_i32 = arith.constant 0 : i32
    %c0_i32_0 = arith.constant 0 : i32
    %c0_i32_1 = arith.constant 0 : i32
    return %c0_i32, %c0_i32_0 : i32, i32
  }
  func.func @transform_4(%arg0: i32) -> (i32, i32) {
    %c0_i32 = arith.constant 0 : i32
    %c0_i32_0 = arith.constant 0 : i32
    %c0_i32_1 = arith.constant 0 : i32
    return %c0_i32, %c0_i32_0 : i32, i32
  }
  func.func @transform_5(%arg0: i32) -> (i32, i32) {
    %c0_i32 = arith.constant 0 : i32
    %c0_i32_0 = arith.constant 0 : i32
    %c0_i32_1 = arith.constant 0 : i32
    return %c0_i32, %c0_i32_0 : i32, i32
  }
  func.func @transform_6(%arg0: i32) -> (i32, i32) {
    %c0_i32 = arith.constant 0 : i32
    %c0_i32_0 = arith.constant 0 : i32
    %c0_i32_1 = arith.constant 0 : i32
    return %c0_i32, %c0_i32_0 : i32, i32
  }
  func.func @transform_7(%arg0: i32) -> (i32, i32) {
    %c0_i32 = arith.constant 0 : i32
    %c0_i32_0 = arith.constant 0 : i32
    %c0_i32_1 = arith.constant 0 : i32
    return %c0_i32, %c0_i32_0 : i32, i32
  }
  func.func @transform_8(%arg0: i32) -> (i32, i32) {
    %c0_i32 = arith.constant 0 : i32
    %c0_i32_0 = arith.constant 0 : i32
    %c0_i32_1 = arith.constant 0 : i32
    return %c0_i32, %c0_i32_0 : i32, i32
  }
  func.func @transform_9(%arg0: i32) -> (i32, i32, i32) {
    %c0_i32 = arith.constant 0 : i32
    %c0_i32_0 = arith.constant 0 : i32
    %c0_i32_1 = arith.constant 0 : i32
    %c0_i32_2 = arith.constant 0 : i32
    return %c0_i32, %c0_i32_0, %c0_i32_1 : i32, i32, i32
  }
  func.func @transform_10(%arg0: i32) -> (i32, i32, i32) {
    %c0_i32 = arith.constant 0 : i32
    %c0_i32_0 = arith.constant 0 : i32
    %c0_i32_1 = arith.constant 0 : i32
    return %arg0, %c0_i32, %c0_i32_0 : i32, i32, i32
  }
}

module attributes {stable_mosaic.version = 11 : i64} {
  func.func @_mha_kernel(%arg0: i32, %arg1: memref<1x8x32xf32, #tpu.memory_space<vmem>>, %arg2: memref<1x8x32xf32, #tpu.memory_space<vmem>>, %arg3: memref<1x32xf32, #tpu.memory_space<vmem>>, %arg4: memref<1x32xf32, #tpu.memory_space<vmem>>, %arg5: memref<1x32xf32, #tpu.memory_space<vmem>>, %arg6: memref<1x32xf32, #tpu.memory_space<vmem>>, %arg7: memref<32x32xbf16, #tpu.memory_space<vmem>>, %arg8: memref<32x32xbf16, #tpu.memory_space<vmem>>, %arg9: memref<32x32xbf16, #tpu.memory_space<vmem>>, %arg10: memref<4x8x32xbf16, #tpu.memory_space<vmem>>, %arg11: memref<1x8x32xf32, #tpu.memory_space<vmem>>) attributes {dimension_semantics = [#tpu.dimension_semantics<parallel>], iteration_bounds = array<i64: 2>, scalar_prefetch = 0 : i64, scratch_operands = 0 : i64, tpu.core_type = #tpu.core_type<tc>, window_params = [{transform_indices = @transform_0, window_bounds = array<i64: 1, 8, 32>}, {transform_indices = @transform_1, window_bounds = array<i64: 1, 8, 32>}, {pipeline_mode = #tpu.pipeline_mode<synchronous>, transform_indices = @transform_2, window_bounds = array<i64: 1, 32>}, {pipeline_mode = #tpu.pipeline_mode<synchronous>, transform_indices = @transform_3, window_bounds = array<i64: 1, 32>}, {pipeline_mode = #tpu.pipeline_mode<synchronous>, transform_indices = @transform_4, window_bounds = array<i64: 1, 32>}, {pipeline_mode = #tpu.pipeline_mode<synchronous>, transform_indices = @transform_5, window_bounds = array<i64: 1, 32>}, {pipeline_mode = #tpu.pipeline_mode<synchronous>, transform_indices = @transform_6, window_bounds = array<i64: 32, 32>}, {pipeline_mode = #tpu.pipeline_mode<synchronous>, transform_indices = @transform_7, window_bounds = array<i64: 32, 32>}, {pipeline_mode = #tpu.pipeline_mode<synchronous>, transform_indices = @transform_8, window_bounds = array<i64: 32, 32>}, {pipeline_mode = #tpu.pipeline_mode<synchronous>, transform_indices = @transform_9, window_bounds = array<i64: 4, 8, 32>}, {transform_indices = @transform_10, window_bounds = array<i64: 1, 8, 32>}]} {
    %c0 = arith.constant 0 : index
    %c0_0 = arith.constant 0 : index
    %c0_1 = arith.constant 0 : index
    %0 = vector.load %arg1[%c0, %c0_0, %c0_1] : memref<1x8x32xf32, #tpu.memory_space<vmem>>, vector<1x8x32xf32>
    %1 = vector.shape_cast %0 : vector<1x8x32xf32> to vector<8x32xf32>
    %c0_2 = arith.constant 0 : index
    %c0_3 = arith.constant 0 : index
    %c0_4 = arith.constant 0 : index
    %2 = vector.load %arg2[%c0_2, %c0_3, %c0_4] : memref<1x8x32xf32, #tpu.memory_space<vmem>>, vector<1x8x32xf32>
    %3 = vector.shape_cast %2 : vector<1x8x32xf32> to vector<8x32xf32>
    %c0_5 = arith.constant 0 : index
    %c0_6 = arith.constant 0 : index
    %4 = vector.load %arg3[%c0_5, %c0_6] : memref<1x32xf32, #tpu.memory_space<vmem>>, vector<1x32xf32>
    %c0_7 = arith.constant 0 : index
    %c0_8 = arith.constant 0 : index
    %5 = vector.load %arg4[%c0_7, %c0_8] : memref<1x32xf32, #tpu.memory_space<vmem>>, vector<1x32xf32>
    %cst = arith.constant dense<0.000000e+00> : vector<8xf32>
    %6 = vector.multi_reduction <add>, %1, %cst [1] : vector<8x32xf32> to vector<8xf32>
    %7 = vector.shape_cast %6 : vector<8xf32> to vector<8x1xf32>
    %cst_9 = arith.constant 3.200000e+01 : f32
    %8 = vector.broadcast %cst_9 : f32 to vector<8x1xf32>
    %9 = arith.divf %7, %8 : vector<8x1xf32>
    %10 = vector.broadcast %9 : vector<8x1xf32> to vector<8x32xf32>
    %11 = arith.subf %1, %10 : vector<8x32xf32>
    %12 = arith.mulf %11, %11 : vector<8x32xf32>
    %cst_10 = arith.constant dense<0.000000e+00> : vector<8xf32>
    %13 = vector.multi_reduction <add>, %12, %cst_10 [1] : vector<8x32xf32> to vector<8xf32>
    %14 = vector.shape_cast %13 : vector<8xf32> to vector<8x1xf32>
    %cst_11 = arith.constant 3.200000e+01 : f32
    %15 = vector.broadcast %cst_11 : f32 to vector<8x1xf32>
    %16 = arith.divf %14, %15 : vector<8x1xf32>
    %17 = vector.broadcast %9 : vector<8x1xf32> to vector<8x32xf32>
    %18 = arith.subf %1, %17 : vector<8x32xf32>
    %cst_12 = arith.constant 9.99999974E-6 : f32
    %19 = vector.broadcast %cst_12 : f32 to vector<8x1xf32>
    %20 = arith.addf %16, %19 : vector<8x1xf32>
    %21 = math.rsqrt %20 : vector<8x1xf32>
    %22 = vector.broadcast %21 : vector<8x1xf32> to vector<8x32xf32>
    %23 = arith.mulf %18, %22 : vector<8x32xf32>
    %24 = vector.broadcast %4 : vector<1x32xf32> to vector<8x32xf32>
    %25 = arith.mulf %23, %24 : vector<8x32xf32>
    %26 = vector.broadcast %5 : vector<1x32xf32> to vector<8x32xf32>
    %27 = arith.addf %25, %26 : vector<8x32xf32>
    %28 = arith.truncf %27 : vector<8x32xf32> to vector<8x32xbf16>
    %c0_13 = arith.constant 0 : index
    %c0_14 = arith.constant 0 : index
    %29 = vector.load %arg5[%c0_13, %c0_14] : memref<1x32xf32, #tpu.memory_space<vmem>>, vector<1x32xf32>
    %c0_15 = arith.constant 0 : index
    %c0_16 = arith.constant 0 : index
    %30 = vector.load %arg6[%c0_15, %c0_16] : memref<1x32xf32, #tpu.memory_space<vmem>>, vector<1x32xf32>
    %cst_17 = arith.constant dense<0.000000e+00> : vector<8xf32>
    %31 = vector.multi_reduction <add>, %3, %cst_17 [1] : vector<8x32xf32> to vector<8xf32>
    %32 = vector.shape_cast %31 : vector<8xf32> to vector<8x1xf32>
    %cst_18 = arith.constant 3.200000e+01 : f32
    %33 = vector.broadcast %cst_18 : f32 to vector<8x1xf32>
    %34 = arith.divf %32, %33 : vector<8x1xf32>
    %35 = vector.broadcast %34 : vector<8x1xf32> to vector<8x32xf32>
    %36 = arith.subf %3, %35 : vector<8x32xf32>
    %37 = arith.mulf %36, %36 : vector<8x32xf32>
    %cst_19 = arith.constant dense<0.000000e+00> : vector<8xf32>
    %38 = vector.multi_reduction <add>, %37, %cst_19 [1] : vector<8x32xf32> to vector<8xf32>
    %39 = vector.shape_cast %38 : vector<8xf32> to vector<8x1xf32>
    %cst_20 = arith.constant 3.200000e+01 : f32
    %40 = vector.broadcast %cst_20 : f32 to vector<8x1xf32>
    %41 = arith.divf %39, %40 : vector<8x1xf32>
    %42 = vector.broadcast %34 : vector<8x1xf32> to vector<8x32xf32>
    %43 = arith.subf %3, %42 : vector<8x32xf32>
    %cst_21 = arith.constant 9.99999974E-6 : f32
    %44 = vector.broadcast %cst_21 : f32 to vector<8x1xf32>
    %45 = arith.addf %41, %44 : vector<8x1xf32>
    %46 = math.rsqrt %45 : vector<8x1xf32>
    %47 = vector.broadcast %46 : vector<8x1xf32> to vector<8x32xf32>
    %48 = arith.mulf %43, %47 : vector<8x32xf32>
    %49 = vector.broadcast %29 : vector<1x32xf32> to vector<8x32xf32>
    %50 = arith.mulf %48, %49 : vector<8x32xf32>
    %51 = vector.broadcast %30 : vector<1x32xf32> to vector<8x32xf32>
    %52 = arith.addf %50, %51 : vector<8x32xf32>
    %53 = arith.truncf %52 : vector<8x32xf32> to vector<8x32xbf16>
    %c0_22 = arith.constant 0 : index
    %c0_23 = arith.constant 0 : index
    %54 = vector.load %arg7[%c0_22, %c0_23] : memref<32x32xbf16, #tpu.memory_space<vmem>>, vector<32x32xbf16>
    %cst_24 = arith.constant dense<0.000000e+00> : vector<8x32xf32>
    %55 = tpu.matmul %28, %54, %cst_24 {dimension_numbers = #tpu.dot_dimension_numbers<[1], [0], [0], [1], [0, 0, 1, 1], [], []>} : vector<8x32xbf16>, vector<32x32xbf16>, vector<8x32xf32> -> vector<8x32xf32>
    %c0_25 = arith.constant 0 : index
    %c0_26 = arith.constant 0 : index
    %56 = vector.load %arg8[%c0_25, %c0_26] : memref<32x32xbf16, #tpu.memory_space<vmem>>, vector<32x32xbf16>
    %cst_27 = arith.constant dense<0.000000e+00> : vector<8x32xf32>
    %57 = tpu.matmul %53, %56, %cst_27 {dimension_numbers = #tpu.dot_dimension_numbers<[1], [0], [0], [1], [0, 0, 1, 1], [], []>} : vector<8x32xbf16>, vector<32x32xbf16>, vector<8x32xf32> -> vector<8x32xf32>
    %c0_28 = arith.constant 0 : index
    %c0_29 = arith.constant 0 : index
    %58 = vector.load %arg9[%c0_28, %c0_29] : memref<32x32xbf16, #tpu.memory_space<vmem>>, vector<32x32xbf16>
    %cst_30 = arith.constant dense<0.000000e+00> : vector<8x32xf32>
    %59 = tpu.matmul %53, %58, %cst_30 {dimension_numbers = #tpu.dot_dimension_numbers<[1], [0], [0], [1], [0, 0, 1, 1], [], []>} : vector<8x32xbf16>, vector<32x32xbf16>, vector<8x32xf32> -> vector<8x32xf32>
    %cst_31 = arith.constant 1.000000e+00 : f32
    %60 = vector.broadcast %cst_31 : f32 to vector<8x8xf32>
    %61 = tpu.iota {dimensions = array<i32: 0>} : vector<8x8xi32>
    %62 = tpu.iota {dimensions = array<i32: 1>} : vector<8x8xi32>
    %63 = arith.cmpi sge, %61, %62 : vector<8x8xi32>
    %64 = arith.extui %63 : vector<8x8xi1> to vector<8x8xi32>
    %65 = arith.sitofp %64 : vector<8x8xi32> to vector<8x8xf32>
    %66 = arith.mulf %60, %65 : vector<8x8xf32>
    %cst_32 = arith.constant 1.000000e+00 : f32
    %67 = vector.broadcast %cst_32 : f32 to vector<8x8xf32>
    %68 = arith.subf %67, %66 : vector<8x8xf32>
    %cst_33 = arith.constant -1.000000e+09 : f32
    %69 = vector.broadcast %cst_33 : f32 to vector<8x8xf32>
    %70 = arith.mulf %68, %69 : vector<8x8xf32>
    %71 = vector.extract_strided_slice %55 {offsets = [0, 0], sizes = [8, 8], strides = [1, 1]} : vector<8x32xf32> to vector<8x8xf32>
    %72 = arith.truncf %71 : vector<8x8xf32> to vector<8x8xbf16>
    %73 = vector.extract_strided_slice %57 {offsets = [0, 0], sizes = [8, 8], strides = [1, 1]} : vector<8x32xf32> to vector<8x8xf32>
    %74 = arith.truncf %73 : vector<8x8xf32> to vector<8x8xbf16>
    %75 = vector.extract_strided_slice %59 {offsets = [0, 0], sizes = [8, 8], strides = [1, 1]} : vector<8x32xf32> to vector<8x8xf32>
    %76 = arith.truncf %75 : vector<8x8xf32> to vector<8x8xbf16>
    %cst_34 = arith.constant dense<0.000000e+00> : vector<8x8xf32>
    %77 = tpu.matmul %72, %74, %cst_34 {dimension_numbers = #tpu.dot_dimension_numbers<[1], [1], [0], [0], [0, 0, 1, 0], [], []>} : vector<8x8xbf16>, vector<8x8xbf16>, vector<8x8xf32> -> vector<8x8xf32>
    %cst_35 = arith.constant 0.353553385 : f32
    %78 = vector.broadcast %cst_35 : f32 to vector<8x8xf32>
    %79 = arith.mulf %77, %78 : vector<8x8xf32>
    %80 = arith.addf %79, %70 : vector<8x8xf32>
    %cst_36 = arith.constant dense<0xFF800000> : vector<8xf32>
    %81 = vector.multi_reduction <maximumf>, %80, %cst_36 [1] : vector<8x8xf32> to vector<8xf32>
    %82 = vector.shape_cast %81 : vector<8xf32> to vector<8x1xf32>
    %83 = vector.broadcast %82 : vector<8x1xf32> to vector<8x8xf32>
    %84 = arith.subf %80, %83 : vector<8x8xf32>
    %85 = math.exp %84 : vector<8x8xf32>
    %cst_37 = arith.constant dense<0.000000e+00> : vector<8xf32>
    %86 = vector.multi_reduction <add>, %85, %cst_37 [1] : vector<8x8xf32> to vector<8xf32>
    %87 = vector.shape_cast %86 : vector<8xf32> to vector<8x1xf32>
    %88 = tpu.reciprocal %87 {approx = true} : vector<8x1xf32> -> vector<8x1xf32>
    %89 = vector.broadcast %88 : vector<8x1xf32> to vector<8x8xf32>
    %90 = arith.mulf %85, %89 : vector<8x8xf32>
    %91 = arith.truncf %90 : vector<8x8xf32> to vector<8x8xbf16>
    %cst_38 = arith.constant dense<0.000000e+00> : vector<8x8xf32>
    %92 = tpu.matmul %91, %76, %cst_38 {dimension_numbers = #tpu.dot_dimension_numbers<[1], [0], [0], [1], [0, 0, 1, 1], [], []>} : vector<8x8xbf16>, vector<8x8xbf16>, vector<8x8xf32> -> vector<8x8xf32>
    %93 = arith.truncf %92 : vector<8x8xf32> to vector<8x8xbf16>
    %c0_39 = arith.constant 0 : index
    %c0_40 = arith.constant 0 : index
    %c0_41 = arith.constant 0 : index
    %94 = vector.load %arg10[%c0_39, %c0_40, %c0_41] : memref<4x8x32xbf16, #tpu.memory_space<vmem>>, vector<1x8x32xbf16>
    %95 = vector.shape_cast %94 : vector<1x8x32xbf16> to vector<8x32xbf16>
    %cst_42 = arith.constant dense<0.000000e+00> : vector<8x32xf32>
    %96 = tpu.matmul %93, %95, %cst_42 {dimension_numbers = #tpu.dot_dimension_numbers<[1], [0], [0], [1], [0, 0, 1, 1], [], []>} : vector<8x8xbf16>, vector<8x32xbf16>, vector<8x32xf32> -> vector<8x32xf32>
    %97 = arith.addf %1, %96 : vector<8x32xf32>
    %98 = vector.extract_strided_slice %55 {offsets = [0, 8], sizes = [8, 8], strides = [1, 1]} : vector<8x32xf32> to vector<8x8xf32>
    %99 = arith.truncf %98 : vector<8x8xf32> to vector<8x8xbf16>
    %100 = vector.extract_strided_slice %57 {offsets = [0, 8], sizes = [8, 8], strides = [1, 1]} : vector<8x32xf32> to vector<8x8xf32>
    %101 = arith.truncf %100 : vector<8x8xf32> to vector<8x8xbf16>
    %102 = vector.extract_strided_slice %59 {offsets = [0, 8], sizes = [8, 8], strides = [1, 1]} : vector<8x32xf32> to vector<8x8xf32>
    %103 = arith.truncf %102 : vector<8x8xf32> to vector<8x8xbf16>
    %cst_43 = arith.constant dense<0.000000e+00> : vector<8x8xf32>
    %104 = tpu.matmul %99, %101, %cst_43 {dimension_numbers = #tpu.dot_dimension_numbers<[1], [1], [0], [0], [0, 0, 1, 0], [], []>} : vector<8x8xbf16>, vector<8x8xbf16>, vector<8x8xf32> -> vector<8x8xf32>
    %cst_44 = arith.constant 0.353553385 : f32
    %105 = vector.broadcast %cst_44 : f32 to vector<8x8xf32>
    %106 = arith.mulf %104, %105 : vector<8x8xf32>
    %107 = arith.addf %106, %70 : vector<8x8xf32>
    %cst_45 = arith.constant dense<0xFF800000> : vector<8xf32>
    %108 = vector.multi_reduction <maximumf>, %107, %cst_45 [1] : vector<8x8xf32> to vector<8xf32>
    %109 = vector.shape_cast %108 : vector<8xf32> to vector<8x1xf32>
    %110 = vector.broadcast %109 : vector<8x1xf32> to vector<8x8xf32>
    %111 = arith.subf %107, %110 : vector<8x8xf32>
    %112 = math.exp %111 : vector<8x8xf32>
    %cst_46 = arith.constant dense<0.000000e+00> : vector<8xf32>
    %113 = vector.multi_reduction <add>, %112, %cst_46 [1] : vector<8x8xf32> to vector<8xf32>
    %114 = vector.shape_cast %113 : vector<8xf32> to vector<8x1xf32>
    %115 = tpu.reciprocal %114 {approx = true} : vector<8x1xf32> -> vector<8x1xf32>
    %116 = vector.broadcast %115 : vector<8x1xf32> to vector<8x8xf32>
    %117 = arith.mulf %112, %116 : vector<8x8xf32>
    %118 = arith.truncf %117 : vector<8x8xf32> to vector<8x8xbf16>
    %cst_47 = arith.constant dense<0.000000e+00> : vector<8x8xf32>
    %119 = tpu.matmul %118, %103, %cst_47 {dimension_numbers = #tpu.dot_dimension_numbers<[1], [0], [0], [1], [0, 0, 1, 1], [], []>} : vector<8x8xbf16>, vector<8x8xbf16>, vector<8x8xf32> -> vector<8x8xf32>
    %120 = arith.truncf %119 : vector<8x8xf32> to vector<8x8xbf16>
    %c1 = arith.constant 1 : index
    %c0_48 = arith.constant 0 : index
    %c0_49 = arith.constant 0 : index
    %121 = vector.load %arg10[%c1, %c0_48, %c0_49] : memref<4x8x32xbf16, #tpu.memory_space<vmem>>, vector<1x8x32xbf16>
    %122 = vector.shape_cast %121 : vector<1x8x32xbf16> to vector<8x32xbf16>
    %cst_50 = arith.constant dense<0.000000e+00> : vector<8x32xf32>
    %123 = tpu.matmul %120, %122, %cst_50 {dimension_numbers = #tpu.dot_dimension_numbers<[1], [0], [0], [1], [0, 0, 1, 1], [], []>} : vector<8x8xbf16>, vector<8x32xbf16>, vector<8x32xf32> -> vector<8x32xf32>
    %124 = arith.addf %97, %123 : vector<8x32xf32>
    %125 = vector.extract_strided_slice %55 {offsets = [0, 16], sizes = [8, 8], strides = [1, 1]} : vector<8x32xf32> to vector<8x8xf32>
    %126 = arith.truncf %125 : vector<8x8xf32> to vector<8x8xbf16>
    %127 = vector.extract_strided_slice %57 {offsets = [0, 16], sizes = [8, 8], strides = [1, 1]} : vector<8x32xf32> to vector<8x8xf32>
    %128 = arith.truncf %127 : vector<8x8xf32> to vector<8x8xbf16>
    %129 = vector.extract_strided_slice %59 {offsets = [0, 16], sizes = [8, 8], strides = [1, 1]} : vector<8x32xf32> to vector<8x8xf32>
    %130 = arith.truncf %129 : vector<8x8xf32> to vector<8x8xbf16>
    %cst_51 = arith.constant dense<0.000000e+00> : vector<8x8xf32>
    %131 = tpu.matmul %126, %128, %cst_51 {dimension_numbers = #tpu.dot_dimension_numbers<[1], [1], [0], [0], [0, 0, 1, 0], [], []>} : vector<8x8xbf16>, vector<8x8xbf16>, vector<8x8xf32> -> vector<8x8xf32>
    %cst_52 = arith.constant 0.353553385 : f32
    %132 = vector.broadcast %cst_52 : f32 to vector<8x8xf32>
    %133 = arith.mulf %131, %132 : vector<8x8xf32>
    %134 = arith.addf %133, %70 : vector<8x8xf32>
    %cst_53 = arith.constant dense<0xFF800000> : vector<8xf32>
    %135 = vector.multi_reduction <maximumf>, %134, %cst_53 [1] : vector<8x8xf32> to vector<8xf32>
    %136 = vector.shape_cast %135 : vector<8xf32> to vector<8x1xf32>
    %137 = vector.broadcast %136 : vector<8x1xf32> to vector<8x8xf32>
    %138 = arith.subf %134, %137 : vector<8x8xf32>
    %139 = math.exp %138 : vector<8x8xf32>
    %cst_54 = arith.constant dense<0.000000e+00> : vector<8xf32>
    %140 = vector.multi_reduction <add>, %139, %cst_54 [1] : vector<8x8xf32> to vector<8xf32>
    %141 = vector.shape_cast %140 : vector<8xf32> to vector<8x1xf32>
    %142 = tpu.reciprocal %141 {approx = true} : vector<8x1xf32> -> vector<8x1xf32>
    %143 = vector.broadcast %142 : vector<8x1xf32> to vector<8x8xf32>
    %144 = arith.mulf %139, %143 : vector<8x8xf32>
    %145 = arith.truncf %144 : vector<8x8xf32> to vector<8x8xbf16>
    %cst_55 = arith.constant dense<0.000000e+00> : vector<8x8xf32>
    %146 = tpu.matmul %145, %130, %cst_55 {dimension_numbers = #tpu.dot_dimension_numbers<[1], [0], [0], [1], [0, 0, 1, 1], [], []>} : vector<8x8xbf16>, vector<8x8xbf16>, vector<8x8xf32> -> vector<8x8xf32>
    %147 = arith.truncf %146 : vector<8x8xf32> to vector<8x8xbf16>
    %c2 = arith.constant 2 : index
    %c0_56 = arith.constant 0 : index
    %c0_57 = arith.constant 0 : index
    %148 = vector.load %arg10[%c2, %c0_56, %c0_57] : memref<4x8x32xbf16, #tpu.memory_space<vmem>>, vector<1x8x32xbf16>
    %149 = vector.shape_cast %148 : vector<1x8x32xbf16> to vector<8x32xbf16>
    %cst_58 = arith.constant dense<0.000000e+00> : vector<8x32xf32>
    %150 = tpu.matmul %147, %149, %cst_58 {dimension_numbers = #tpu.dot_dimension_numbers<[1], [0], [0], [1], [0, 0, 1, 1], [], []>} : vector<8x8xbf16>, vector<8x32xbf16>, vector<8x32xf32> -> vector<8x32xf32>
    %151 = arith.addf %124, %150 : vector<8x32xf32>
    %152 = vector.extract_strided_slice %55 {offsets = [0, 24], sizes = [8, 8], strides = [1, 1]} : vector<8x32xf32> to vector<8x8xf32>
    %153 = arith.truncf %152 : vector<8x8xf32> to vector<8x8xbf16>
    %154 = vector.extract_strided_slice %57 {offsets = [0, 24], sizes = [8, 8], strides = [1, 1]} : vector<8x32xf32> to vector<8x8xf32>
    %155 = arith.truncf %154 : vector<8x8xf32> to vector<8x8xbf16>
    %156 = vector.extract_strided_slice %59 {offsets = [0, 24], sizes = [8, 8], strides = [1, 1]} : vector<8x32xf32> to vector<8x8xf32>
    %157 = arith.truncf %156 : vector<8x8xf32> to vector<8x8xbf16>
    %cst_59 = arith.constant dense<0.000000e+00> : vector<8x8xf32>
    %158 = tpu.matmul %153, %155, %cst_59 {dimension_numbers = #tpu.dot_dimension_numbers<[1], [1], [0], [0], [0, 0, 1, 0], [], []>} : vector<8x8xbf16>, vector<8x8xbf16>, vector<8x8xf32> -> vector<8x8xf32>
    %cst_60 = arith.constant 0.353553385 : f32
    %159 = vector.broadcast %cst_60 : f32 to vector<8x8xf32>
    %160 = arith.mulf %158, %159 : vector<8x8xf32>
    %161 = arith.addf %160, %70 : vector<8x8xf32>
    %cst_61 = arith.constant dense<0xFF800000> : vector<8xf32>
    %162 = vector.multi_reduction <maximumf>, %161, %cst_61 [1] : vector<8x8xf32> to vector<8xf32>
    %163 = vector.shape_cast %162 : vector<8xf32> to vector<8x1xf32>
    %164 = vector.broadcast %163 : vector<8x1xf32> to vector<8x8xf32>
    %165 = arith.subf %161, %164 : vector<8x8xf32>
    %166 = math.exp %165 : vector<8x8xf32>
    %cst_62 = arith.constant dense<0.000000e+00> : vector<8xf32>
    %167 = vector.multi_reduction <add>, %166, %cst_62 [1] : vector<8x8xf32> to vector<8xf32>
    %168 = vector.shape_cast %167 : vector<8xf32> to vector<8x1xf32>
    %169 = tpu.reciprocal %168 {approx = true} : vector<8x1xf32> -> vector<8x1xf32>
    %170 = vector.broadcast %169 : vector<8x1xf32> to vector<8x8xf32>
    %171 = arith.mulf %166, %170 : vector<8x8xf32>
    %172 = arith.truncf %171 : vector<8x8xf32> to vector<8x8xbf16>
    %cst_63 = arith.constant dense<0.000000e+00> : vector<8x8xf32>
    %173 = tpu.matmul %172, %157, %cst_63 {dimension_numbers = #tpu.dot_dimension_numbers<[1], [0], [0], [1], [0, 0, 1, 1], [], []>} : vector<8x8xbf16>, vector<8x8xbf16>, vector<8x8xf32> -> vector<8x8xf32>
    %174 = arith.truncf %173 : vector<8x8xf32> to vector<8x8xbf16>
    %c3 = arith.constant 3 : index
    %c0_64 = arith.constant 0 : index
    %c0_65 = arith.constant 0 : index
    %175 = vector.load %arg10[%c3, %c0_64, %c0_65] : memref<4x8x32xbf16, #tpu.memory_space<vmem>>, vector<1x8x32xbf16>
    %176 = vector.shape_cast %175 : vector<1x8x32xbf16> to vector<8x32xbf16>
    %cst_66 = arith.constant dense<0.000000e+00> : vector<8x32xf32>
    %177 = tpu.matmul %174, %176, %cst_66 {dimension_numbers = #tpu.dot_dimension_numbers<[1], [0], [0], [1], [0, 0, 1, 1], [], []>} : vector<8x8xbf16>, vector<8x32xbf16>, vector<8x32xf32> -> vector<8x32xf32>
    %178 = arith.addf %151, %177 : vector<8x32xf32>
    %c0_67 = arith.constant 0 : index
    %c0_68 = arith.constant 0 : index
    %c0_69 = arith.constant 0 : index
    %179 = vector.load %arg11[%c0_67, %c0_68, %c0_69] : memref<1x8x32xf32, #tpu.memory_space<vmem>>, vector<1x8x32xf32>
    %180 = vector.shape_cast %179 : vector<1x8x32xf32> to vector<8x32xf32>
    %181 = vector.shape_cast %178 : vector<8x32xf32> to vector<1x8x32xf32>
    tpu.vector_store %arg11[%c0_67, %c0_68, %c0_69], %181 {strides = array<i32>} : memref<1x8x32xf32, #tpu.memory_space<vmem>>, vector<1x8x32xf32>,
    return
  }
  func.func @transform_0(%arg0: i32) -> (i32, i32, i32) {
    %c0_i32 = arith.constant 0 : i32
    %c0_i32_0 = arith.constant 0 : i32
    %c0_i32_1 = arith.constant 0 : i32
    return %arg0, %c0_i32, %c0_i32_0 : i32, i32, i32
  }
  func.func @transform_1(%arg0: i32) -> (i32, i32, i32) {
    %c0_i32 = arith.constant 0 : i32
    %c0_i32_0 = arith.constant 0 : i32
    %c0_i32_1 = arith.constant 0 : i32
    return %arg0, %c0_i32, %c0_i32_0 : i32, i32, i32
  }
  func.func @transform_2(%arg0: i32) -> (i32, i32) {
    %c0_i32 = arith.constant 0 : i32
    %c0_i32_0 = arith.constant 0 : i32
    %c0_i32_1 = arith.constant 0 : i32
    return %c0_i32, %c0_i32_0 : i32, i32
  }
  func.func @transform_3(%arg0: i32) -> (i32, i32) {
    %c0_i32 = arith.constant 0 : i32
    %c0_i32_0 = arith.constant 0 : i32
    %c0_i32_1 = arith.constant 0 : i32
    return %c0_i32, %c0_i32_0 : i32, i32
  }
  func.func @transform_4(%arg0: i32) -> (i32, i32) {
    %c0_i32 = arith.constant 0 : i32
    %c0_i32_0 = arith.constant 0 : i32
    %c0_i32_1 = arith.constant 0 : i32
    return %c0_i32, %c0_i32_0 : i32, i32
  }
  func.func @transform_5(%arg0: i32) -> (i32, i32) {
    %c0_i32 = arith.constant 0 : i32
    %c0_i32_0 = arith.constant 0 : i32
    %c0_i32_1 = arith.constant 0 : i32
    return %c0_i32, %c0_i32_0 : i32, i32
  }
  func.func @transform_6(%arg0: i32) -> (i32, i32) {
    %c0_i32 = arith.constant 0 : i32
    %c0_i32_0 = arith.constant 0 : i32
    %c0_i32_1 = arith.constant 0 : i32
    return %c0_i32, %c0_i32_0 : i32, i32
  }
  func.func @transform_7(%arg0: i32) -> (i32, i32) {
    %c0_i32 = arith.constant 0 : i32
    %c0_i32_0 = arith.constant 0 : i32
    %c0_i32_1 = arith.constant 0 : i32
    return %c0_i32, %c0_i32_0 : i32, i32
  }
  func.func @transform_8(%arg0: i32) -> (i32, i32) {
    %c0_i32 = arith.constant 0 : i32
    %c0_i32_0 = arith.constant 0 : i32
    %c0_i32_1 = arith.constant 0 : i32
    return %c0_i32, %c0_i32_0 : i32, i32
  }
  func.func @transform_9(%arg0: i32) -> (i32, i32, i32) {
    %c0_i32 = arith.constant 0 : i32
    %c0_i32_0 = arith.constant 0 : i32
    %c0_i32_1 = arith.constant 0 : i32
    %c0_i32_2 = arith.constant 0 : i32
    return %c0_i32, %c0_i32_0, %c0_i32_1 : i32, i32, i32
  }
  func.func @transform_10(%arg0: i32) -> (i32, i32, i32) {
    %c0_i32 = arith.constant 0 : i32
    %c0_i32_0 = arith.constant 0 : i32
    %c0_i32_1 = arith.constant 0 : i32
    return %arg0, %c0_i32, %c0_i32_0 : i32, i32, i32
  }
}

module attributes {stable_mosaic.version = 11 : i64} {
  func.func @_ffn_kernel(%arg0: i32, %arg1: memref<16x32xf32, #tpu.memory_space<vmem>>, %arg2: memref<1x32xf32, #tpu.memory_space<vmem>>, %arg3: memref<1x32xf32, #tpu.memory_space<vmem>>, %arg4: memref<32x64xbf16, #tpu.memory_space<vmem>>, %arg5: memref<1x64xf32, #tpu.memory_space<vmem>>, %arg6: memref<64x32xbf16, #tpu.memory_space<vmem>>, %arg7: memref<1x32xf32, #tpu.memory_space<vmem>>, %arg8: memref<16x32xf32, #tpu.memory_space<vmem>>) attributes {dimension_semantics = [#tpu.dimension_semantics<parallel>], iteration_bounds = array<i64: 1>, scalar_prefetch = 0 : i64, scratch_operands = 0 : i64, tpu.core_type = #tpu.core_type<tc>, window_params = [{transform_indices = @transform_0, window_bounds = array<i64: 16, 32>}, {pipeline_mode = #tpu.pipeline_mode<synchronous>, transform_indices = @transform_1, window_bounds = array<i64: 1, 32>}, {pipeline_mode = #tpu.pipeline_mode<synchronous>, transform_indices = @transform_2, window_bounds = array<i64: 1, 32>}, {pipeline_mode = #tpu.pipeline_mode<synchronous>, transform_indices = @transform_3, window_bounds = array<i64: 32, 64>}, {pipeline_mode = #tpu.pipeline_mode<synchronous>, transform_indices = @transform_4, window_bounds = array<i64: 1, 64>}, {pipeline_mode = #tpu.pipeline_mode<synchronous>, transform_indices = @transform_5, window_bounds = array<i64: 64, 32>}, {pipeline_mode = #tpu.pipeline_mode<synchronous>, transform_indices = @transform_6, window_bounds = array<i64: 1, 32>}, {transform_indices = @transform_7, window_bounds = array<i64: 16, 32>}]} {
    %c0 = arith.constant 0 : index
    %c0_0 = arith.constant 0 : index
    %0 = vector.load %arg1[%c0, %c0_0] : memref<16x32xf32, #tpu.memory_space<vmem>>, vector<16x32xf32>
    %c0_1 = arith.constant 0 : index
    %c0_2 = arith.constant 0 : index
    %1 = vector.load %arg2[%c0_1, %c0_2] : memref<1x32xf32, #tpu.memory_space<vmem>>, vector<1x32xf32>
    %c0_3 = arith.constant 0 : index
    %c0_4 = arith.constant 0 : index
    %2 = vector.load %arg3[%c0_3, %c0_4] : memref<1x32xf32, #tpu.memory_space<vmem>>, vector<1x32xf32>
    %cst = arith.constant dense<0.000000e+00> : vector<16xf32>
    %3 = vector.multi_reduction <add>, %0, %cst [1] : vector<16x32xf32> to vector<16xf32>
    %4 = vector.shape_cast %3 : vector<16xf32> to vector<16x1xf32>
    %cst_5 = arith.constant 3.200000e+01 : f32
    %5 = vector.broadcast %cst_5 : f32 to vector<16x1xf32>
    %6 = arith.divf %4, %5 : vector<16x1xf32>
    %7 = vector.broadcast %6 : vector<16x1xf32> to vector<16x32xf32>
    %8 = arith.subf %0, %7 : vector<16x32xf32>
    %9 = arith.mulf %8, %8 : vector<16x32xf32>
    %cst_6 = arith.constant dense<0.000000e+00> : vector<16xf32>
    %10 = vector.multi_reduction <add>, %9, %cst_6 [1] : vector<16x32xf32> to vector<16xf32>
    %11 = vector.shape_cast %10 : vector<16xf32> to vector<16x1xf32>
    %cst_7 = arith.constant 3.200000e+01 : f32
    %12 = vector.broadcast %cst_7 : f32 to vector<16x1xf32>
    %13 = arith.divf %11, %12 : vector<16x1xf32>
    %14 = vector.broadcast %6 : vector<16x1xf32> to vector<16x32xf32>
    %15 = arith.subf %0, %14 : vector<16x32xf32>
    %cst_8 = arith.constant 9.99999974E-6 : f32
    %16 = vector.broadcast %cst_8 : f32 to vector<16x1xf32>
    %17 = arith.addf %13, %16 : vector<16x1xf32>
    %18 = math.rsqrt %17 : vector<16x1xf32>
    %19 = vector.broadcast %18 : vector<16x1xf32> to vector<16x32xf32>
    %20 = arith.mulf %15, %19 : vector<16x32xf32>
    %21 = vector.broadcast %1 : vector<1x32xf32> to vector<16x32xf32>
    %22 = arith.mulf %20, %21 : vector<16x32xf32>
    %23 = vector.broadcast %2 : vector<1x32xf32> to vector<16x32xf32>
    %24 = arith.addf %22, %23 : vector<16x32xf32>
    %25 = arith.truncf %24 : vector<16x32xf32> to vector<16x32xbf16>
    %c0_9 = arith.constant 0 : index
    %c0_10 = arith.constant 0 : index
    %26 = vector.load %arg4[%c0_9, %c0_10] : memref<32x64xbf16, #tpu.memory_space<vmem>>, vector<32x64xbf16>
    %cst_11 = arith.constant dense<0.000000e+00> : vector<16x64xf32>
    %27 = tpu.matmul %25, %26, %cst_11 {dimension_numbers = #tpu.dot_dimension_numbers<[1], [0], [0], [1], [0, 0, 1, 1], [], []>} : vector<16x32xbf16>, vector<32x64xbf16>, vector<16x64xf32> -> vector<16x64xf32>
    %c0_12 = arith.constant 0 : index
    %c0_13 = arith.constant 0 : index
    %28 = vector.load %arg5[%c0_12, %c0_13] : memref<1x64xf32, #tpu.memory_space<vmem>>, vector<1x64xf32>
    %29 = vector.broadcast %28 : vector<1x64xf32> to vector<16x64xf32>
    %30 = arith.addf %27, %29 : vector<16x64xf32>
    %cst_14 = arith.constant 0.000000e+00 : f32
    %31 = vector.broadcast %cst_14 : f32 to vector<16x64xf32>
    %32 = arith.maximumf %30, %31 : vector<16x64xf32>
    %33 = arith.truncf %32 : vector<16x64xf32> to vector<16x64xbf16>
    %c0_15 = arith.constant 0 : index
    %c0_16 = arith.constant 0 : index
    %34 = vector.load %arg6[%c0_15, %c0_16] : memref<64x32xbf16, #tpu.memory_space<vmem>>, vector<64x32xbf16>
    %cst_17 = arith.constant dense<0.000000e+00> : vector<16x32xf32>
    %35 = tpu.matmul %33, %34, %cst_17 {dimension_numbers = #tpu.dot_dimension_numbers<[1], [0], [0], [1], [0, 0, 1, 1], [], []>} : vector<16x64xbf16>, vector<64x32xbf16>, vector<16x32xf32> -> vector<16x32xf32>
    %c0_18 = arith.constant 0 : index
    %c0_19 = arith.constant 0 : index
    %36 = vector.load %arg7[%c0_18, %c0_19] : memref<1x32xf32, #tpu.memory_space<vmem>>, vector<1x32xf32>
    %37 = vector.broadcast %36 : vector<1x32xf32> to vector<16x32xf32>
    %38 = arith.addf %35, %37 : vector<16x32xf32>
    %39 = arith.addf %38, %0 : vector<16x32xf32>
    %c0_20 = arith.constant 0 : index
    %c0_21 = arith.constant 0 : index
    %40 = vector.load %arg8[%c0_20, %c0_21] : memref<16x32xf32, #tpu.memory_space<vmem>>, vector<16x32xf32>
    tpu.vector_store %arg8[%c0_20, %c0_21], %39 {strides = array<i32>} : memref<16x32xf32, #tpu.memory_space<vmem>>, vector<16x32xf32>,
    return
  }
  func.func @transform_0(%arg0: i32) -> (i32, i32) {
    %c0_i32 = arith.constant 0 : i32
    %c0_i32_0 = arith.constant 0 : i32
    return %arg0, %c0_i32 : i32, i32
  }
  func.func @transform_1(%arg0: i32) -> (i32, i32) {
    %c0_i32 = arith.constant 0 : i32
    %c0_i32_0 = arith.constant 0 : i32
    %c0_i32_1 = arith.constant 0 : i32
    return %c0_i32, %c0_i32_0 : i32, i32
  }
  func.func @transform_2(%arg0: i32) -> (i32, i32) {
    %c0_i32 = arith.constant 0 : i32
    %c0_i32_0 = arith.constant 0 : i32
    %c0_i32_1 = arith.constant 0 : i32
    return %c0_i32, %c0_i32_0 : i32, i32
  }
  func.func @transform_3(%arg0: i32) -> (i32, i32) {
    %c0_i32 = arith.constant 0 : i32
    %c0_i32_0 = arith.constant 0 : i32
    %c0_i32_1 = arith.constant 0 : i32
    return %c0_i32, %c0_i32_0 : i32, i32
  }
  func.func @transform_4(%arg0: i32) -> (i32, i32) {
    %c0_i32 = arith.constant 0 : i32
    %c0_i32_0 = arith.constant 0 : i32
    %c0_i32_1 = arith.constant 0 : i32
    return %c0_i32, %c0_i32_0 : i32, i32
  }
  func.func @transform_5(%arg0: i32) -> (i32, i32) {
    %c0_i32 = arith.constant 0 : i32
    %c0_i32_0 = arith.constant 0 : i32
    %c0_i32_1 = arith.constant 0 : i32
    return %c0_i32, %c0_i32_0 : i32, i32
  }
  func.func @transform_6(%arg0: i32) -> (i32, i32) {
    %c0_i32 = arith.constant 0 : i32
    %c0_i32_0 = arith.constant 0 : i32
    %c0_i32_1 = arith.constant 0 : i32
    return %c0_i32, %c0_i32_0 : i32, i32
  }
  func.func @transform_7(%arg0: i32) -> (i32, i32) {
    %c0_i32 = arith.constant 0 : i32
    %c0_i32_0 = arith.constant 0 : i32
    return %arg0, %c0_i32 : i32, i32
  }
}

module attributes {stable_mosaic.version = 11 : i64} {
  func.func @_logits_kernel(%arg0: i32, %arg1: memref<16x32xf32, #tpu.memory_space<vmem>>, %arg2: memref<128x32xbf16, #tpu.memory_space<vmem>>, %arg3: memref<16x128xf32, #tpu.memory_space<vmem>>) attributes {dimension_semantics = [#tpu.dimension_semantics<parallel>], iteration_bounds = array<i64: 1>, scalar_prefetch = 0 : i64, scratch_operands = 0 : i64, tpu.core_type = #tpu.core_type<tc>, window_params = [{transform_indices = @transform_0, window_bounds = array<i64: 16, 32>}, {pipeline_mode = #tpu.pipeline_mode<synchronous>, transform_indices = @transform_1, window_bounds = array<i64: 128, 32>}, {transform_indices = @transform_2, window_bounds = array<i64: 16, 128>}]} {
    %c0 = arith.constant 0 : index
    %c0_0 = arith.constant 0 : index
    %0 = vector.load %arg1[%c0, %c0_0] : memref<16x32xf32, #tpu.memory_space<vmem>>, vector<16x32xf32>
    %1 = arith.truncf %0 : vector<16x32xf32> to vector<16x32xbf16>
    %c0_1 = arith.constant 0 : index
    %c0_2 = arith.constant 0 : index
    %2 = vector.load %arg2[%c0_1, %c0_2] : memref<128x32xbf16, #tpu.memory_space<vmem>>, vector<128x32xbf16>
    %cst = arith.constant dense<0.000000e+00> : vector<16x128xf32>
    %3 = tpu.matmul %1, %2, %cst {dimension_numbers = #tpu.dot_dimension_numbers<[1], [1], [0], [0], [0, 0, 1, 0], [], []>} : vector<16x32xbf16>, vector<128x32xbf16>, vector<16x128xf32> -> vector<16x128xf32>
    %c0_3 = arith.constant 0 : index
    %c0_4 = arith.constant 0 : index
    %4 = vector.load %arg3[%c0_3, %c0_4] : memref<16x128xf32, #tpu.memory_space<vmem>>, vector<16x128xf32>
    tpu.vector_store %arg3[%c0_3, %c0_4], %3 {strides = array<i32>} : memref<16x128xf32, #tpu.memory_space<vmem>>, vector<16x128xf32>,
    return
  }
  func.func @transform_0(%arg0: i32) -> (i32, i32) {
    %c0_i32 = arith.constant 0 : i32
    %c0_i32_0 = arith.constant 0 : i32
    return %arg0, %c0_i32 : i32, i32
  }
  func.func @transform_1(%arg0: i32) -> (i32, i32) {
    %c0_i32 = arith.constant 0 : i32
    %c0_i32_0 = arith.constant 0 : i32
    %c0_i32_1 = arith.constant 0 : i32
    return %c0_i32, %c0_i32_0 : i32, i32
  }
  func.func @transform_2(%arg0: i32) -> (i32, i32) {
    %c0_i32 = arith.constant 0 : i32
    %c0_i32_0 = arith.constant 0 : i32
    return %arg0, %c0_i32 : i32, i32
  }
}

</mosaic_0001>

<llo_original>
// kernel: transformer_forward.12
$region0: #{transformer_forward.12}
  #allocation0 [shape = 'u32[]', space=smem, size = 0x4, offset = 0x4, fixed_abs, tag = 'smem constant byte address 0x4 - core index']
  #allocation1 [shape = 'u32[72,128]{1,0:T(1,128)}', space=vmem, size = 0x9000, scoped, tag = 'internal scratch']
  %s0 = inlined_call_operand.vmem [shape: f32[16,32], index: 0, kind: input, shape index: {}]
  %s1 = inlined_call_operand.vmem [shape: f32[1,32], index: 1, kind: input, shape index: {}]
  %s2 = inlined_call_operand.vmem [shape: f32[1,32], index: 2, kind: input, shape index: {}]
  %s3 = inlined_call_operand.vmem [shape: bf16[32,64], index: 3, kind: input, shape index: {}]
  %s4 = inlined_call_operand.vmem [shape: f32[1,64], index: 4, kind: input, shape index: {}]
  %s5 = inlined_call_operand.vmem [shape: bf16[64,32], index: 5, kind: input, shape index: {}]
  %s6 = inlined_call_operand.vmem [shape: f32[1,32], index: 6, kind: input, shape index: {}]
  %s7 = inlined_call_operand.vmem [shape: f32[16,32], index: 7, kind: output, shape index: {}]
  %s8 = sld [smem:[#allocation0]]
  $region38: #{transformer_forward.12} parent=0
    _
  %s10 = ssub.s32 1, %s8
  %s11 = scalar_select 0, %s10, %s8
  // Predicated region
  $region2: #{transformer_forward.12} parent=0 // pred_check
    _
  $region3: #{transformer_forward.12} parent=0 // pred_check_branch
    %13 = sbr.rel (0) target = $region5
  $region4: #{transformer_forward.12} parent=0 // pred_region
    _
  $region5: #{transformer_forward.12} parent=0 // pred_fallthru
    _
  // Predicated region
  $region6: #{transformer_forward.12} parent=0 // pred_check
    _
  $region7: #{transformer_forward.12} parent=0 // pred_check_branch
    %15 = sbr.rel (0) target = $region9
  $region8: #{transformer_forward.12} parent=0 // pred_region
    _
  $region9: #{transformer_forward.12} parent=0 // pred_fallthru
    _
  // Predicated region
  $region10: #{transformer_forward.12} parent=0 // pred_check
    _
  $region11: #{transformer_forward.12} parent=0 // pred_check_branch
    %17 = sbr.rel (0) target = $region13
  $region12: #{transformer_forward.12} parent=0 // pred_region
    _
  $region13: #{transformer_forward.12} parent=0 // pred_fallthru
    _
  // Predicated region
  $region14: #{transformer_forward.12} parent=0 // pred_check
    _
  $region15: #{transformer_forward.12} parent=0 // pred_check_branch
    %19 = sbr.rel (0) target = $region17
  $region16: #{transformer_forward.12} parent=0 // pred_region
    _
  $region17: #{transformer_forward.12} parent=0 // pred_fallthru
    _
  // Predicated region
  $region18: #{transformer_forward.12} parent=0 // pred_check
    _
  $region19: #{transformer_forward.12} parent=0 // pred_check_branch
    %21 = sbr.rel (0) target = $region21
  $region20: #{transformer_forward.12} parent=0 // pred_region
    _
  $region21: #{transformer_forward.12} parent=0 // pred_fallthru
    _
  // Predicated region
  $region22: #{transformer_forward.12} parent=0 // pred_check
    _
  $region23: #{transformer_forward.12} parent=0 // pred_check_branch
    %23 = sbr.rel (0) target = $region25
  $region24: #{transformer_forward.12} parent=0 // pred_region
    _
  $region25: #{transformer_forward.12} parent=0 // pred_fallthru
    _
  // Predicated region
  $region26: #{transformer_forward.12} parent=0 // pred_check
    _
  $region27: #{transformer_forward.12} parent=0 // pred_check_branch
    %25 = sbr.rel (0) target = $region29
  $region28: #{transformer_forward.12} parent=0 // pred_region
    _
  $region29: #{transformer_forward.12} parent=0 // pred_fallthru
    _
  %v27 = vld [vmem:[%s0] sm:$0xff]
  %v28 = vld [vmem:[%s0 + $0x8] sm:$0xff]
  %v29 = vld [vmem:[%s1] sm:$0x1]
  %v30 = vld [vmem:[%s2] sm:$0x1]
  %vm31 = vcmask 261120
  %v32 = vsel %vm31, %v27, 0.0
  %33 = vadd.xlane.f32.xlu0 %v32
  %v34 = vpop.xlane.xlu0 %33
  %v35 = vsel %vm31, %v28, 0.0
  %36 = vadd.xlane.f32.xlu0 %v35
  %v37 = vpop.xlane.xlu0 %36
  %v38 = vrcp.pop 32.0
  %v39 = vmul.f32 32.0, %v38
  %v40 = vsub.f32 1.0, %v39
  %v41 = vmul.f32 %v38, %v40
  %v42 = vadd.f32 %v38, %v41
  %vm43 = vweird.f32 %v38
  %v44 = vsel %vm43, %v38, %v42
  %v45 = vmul.f32 %v34, %v44
  %v46 = vmul.f32 %v37, %v44
  %v47 = vsub.f32 %v27, %v45
  %v48 = vsub.f32 %v28, %v46
  %v49 = vmul.f32 %v47, %v47
  %v50 = vmul.f32 %v48, %v48
  %v51 = vsel %vm31, %v49, 0.0
  %52 = vadd.xlane.f32.xlu0 %v51
  %v53 = vpop.xlane.xlu0 %52
  %v54 = vsel %vm31, %v50, 0.0
  %55 = vadd.xlane.f32.xlu0 %v54
  %v56 = vpop.xlane.xlu0 %55
  %v57 = vmul.f32 %v53, %v44
  %v58 = vmul.f32 %v56, %v44
  %v59 = vadd.f32 %v57, 1e-05
  %v60 = vadd.f32 %v58, 1e-05
  %v61 = vrsqrt.pop %v59
  %v62 = vmul.f32 %v61, %v59
  %v63 = vmul.f32 %v62, %v61
  %v64 = vmul.f32 0.5, %v63
  %v65 = vsub.f32 1.5, %v64
  %v66 = vmul.f32 %v61, %v65
  %vm67 = vweird.f32 %v59
  %vm68 = vweird.f32 %v61
  %vm69 = vmor %vm67, %vm68
  %v70 = vsel %vm69, %v61, %v66
  %v71 = vrsqrt.pop %v60
  %v72 = vmul.f32 %v71, %v60
  %v73 = vmul.f32 %v72, %v71
  %v74 = vmul.f32 0.5, %v73
  %v75 = vsub.f32 1.5, %v74
  %v76 = vmul.f32 %v71, %v75
  %vm77 = vweird.f32 %v60
  %vm78 = vweird.f32 %v71
  %vm79 = vmor %vm77, %vm78
  %v80 = vsel %vm79, %v71, %v76
  %v81 = vmul.f32 %v47, %v70
  %v82 = vmul.f32 %v48, %v80
  %v84 = vperm.slane %v29, 0
  %v86 = vmul.f32 %v81, %v84
  %v87 = vmul.f32 %v82, %v84
  %v89 = vperm.slane %v30, 0
  %v91 = vadd.f32 %v86, %v89
  %v92 = vadd.f32 %v87, %v89
  %v93 = vpack.c.bf16 %v92, %v91
  %v94 = vld [vmem:[%s3] sm:$0xf]
  %v95 = vld [vmem:[%s3 + $0x4] sm:$0xf]
  %v96 = vld [vmem:[%s3 + $0x8] sm:$0xf]
  %v97 = vld [vmem:[%s3 + $0xc] sm:$0xf]
  %v98 = vld [vmem:[%s4] sm:$0x1]
  %v100 = vperm.slane %v98, 0
  %v106 = vunpack.c.l.b16 %v94
  %v107 = vunpack.c.l.b16 %v95
  %v108 = vunpack.c.l.b16 %v96
  %v109 = vunpack.c.l.b16 %v97
  %v110 = vpack.c.b16 %v107, %v106
  %v111 = vpack.c.b16 %v109, %v108
  %v115 = vsel %vm31, %v93, 0
  %117 = vmatpush.bf16.msra.mxu0 0
  %118 = vmatpush.bf16.msra.mxu0 0
  %119 = vmatpush.bf16.msra.mxu0 0
  %120 = vmatpush.bf16.msra.mxu0 0
  %121 = vmatpush.bf16.msra.mxu0 0
  %122 = vmatpush.bf16.msra.mxu0 0
  %123 = vmatpush.bf16.msra.mxu0 %v111
  %124 = vmatpush.bf16.msra.mxu0 %v110
  %125 = vmatmul.bf16.gmra.mxu0 %v115
  %v126 = vpop.f32.mrf.mxu0
  %v127 = vadd.f32 %v100, %v126
  %v128 = vpop.f32.mrf.mxu0
  %v129 = vadd.f32 %v100, %v128
  %130 = vdwg.mxu0
  %v131 = vmax.f32 %v127, 0.0
  %v132 = vmax.f32 %v129, 0.0
  %v133 = vpack.c.bf16 %v132, %v131
  %v134 = vld [vmem:[%s5] sm:$0xf]
  %v135 = vld [vmem:[%s5 + $0x4] sm:$0xf]
  %v136 = vld [vmem:[%s5 + $0x8] sm:$0xf]
  %v137 = vld [vmem:[%s5 + $0xc] sm:$0xf]
  %v138 = vld [vmem:[%s5 + $0x10] sm:$0xf]
  %v139 = vld [vmem:[%s5 + $0x14] sm:$0xf]
  %v140 = vld [vmem:[%s5 + $0x18] sm:$0xf]
  %v141 = vld [vmem:[%s5 + $0x1c] sm:$0xf]
  %v142 = vld [vmem:[%s6] sm:$0x1]
  %v144 = vperm.slane %v142, 0
  %v154 = vunpack.c.l.b16 %v134
  %v155 = vunpack.c.l.b16 %v135
  %v156 = vunpack.c.l.b16 %v136
  %v157 = vunpack.c.l.b16 %v137
  %v158 = vunpack.c.l.b16 %v138
  %v159 = vunpack.c.l.b16 %v139
  %v160 = vunpack.c.l.b16 %v140
  %v161 = vunpack.c.l.b16 %v141
  %v162 = vpack.c.b16 %v155, %v154
  %v163 = vpack.c.b16 %v157, %v156
  %v164 = vpack.c.b16 %v159, %v158
  %v165 = vpack.c.b16 %v161, %v160
  %vm170 = vcmask 523264
  %v172 = vsel %vm170, %v133, 0
  %174 = vmatpush.bf16.msra.mxu0 0
  %175 = vmatpush.bf16.msra.mxu0 0
  %176 = vmatpush.bf16.msra.mxu0 0
  %177 = vmatpush.bf16.msra.mxu0 0
  %178 = vmatpush.bf16.msra.mxu0 %v165
  %179 = vmatpush.bf16.msra.mxu0 %v164
  %180 = vmatpush.bf16.msra.mxu0 %v163
  %181 = vmatpush.bf16.msra.mxu0 %v162
  %182 = vmatmul.bf16.gmra.mxu0 %v172
  %v183 = vpop.f32.mrf.mxu0
  %v184 = vadd.f32 %v144, %v183
  %v185 = vpop.f32.mrf.mxu0
  %v186 = vadd.f32 %v144, %v185
  %187 = vdwg.mxu0
  %v188 = vadd.f32 %v184, %v27
  %v189 = vadd.f32 %v186, %v28
  %190 = vst.msk [vmem:[%s7] sm:$0xff] %vm31, %v188
  %191 = vst.msk [vmem:[%s7 + $0x8] sm:$0xff] %vm31, %v189
  // Predicated region
  $region30: #{transformer_forward.12} parent=0 // pred_check
    _
  $region31: #{transformer_forward.12} parent=0 // pred_check_branch
    %193 = sbr.rel (0) target = $region33
  $region32: #{transformer_forward.12} parent=0 // pred_region
    _
  $region33: #{transformer_forward.12} parent=0 // pred_fallthru
    _
  // Predicated region
  $region34: #{transformer_forward.12} parent=0 // pred_check
    _
  $region35: #{transformer_forward.12} parent=0 // pred_check_branch
    %195 = sbr.rel (0) target = $region37
  $region36: #{transformer_forward.12} parent=0 // pred_region
    _
  $region37: #{transformer_forward.12} parent=0 // pred_fallthru
    _

// kernel: transformer_forward.16
$region0: #{transformer_forward.16}
  #allocation0 [shape = 'u32[]', space=smem, size = 0x4, offset = 0x4, fixed_abs, tag = 'smem constant byte address 0x4 - core index']
  #allocation1 [shape = 'u32[72,128]{1,0:T(1,128)}', space=vmem, size = 0x9000, scoped, tag = 'internal scratch']
  %s0 = inlined_call_operand.vmem [shape: f32[2,8,32], index: 0, kind: input, shape index: {}]
  %s1 = inlined_call_operand.vmem [shape: f32[2,8,32], index: 1, kind: input, shape index: {}]
  %s2 = inlined_call_operand.hbm [shape: f32[1,32], index: 2, kind: input, shape index: {}]
  %s3 = inlined_call_operand.hbm [shape: f32[1,32], index: 3, kind: input, shape index: {}]
  %s4 = inlined_call_operand.hbm [shape: f32[1,32], index: 4, kind: input, shape index: {}]
  %s5 = inlined_call_operand.hbm [shape: f32[1,32], index: 5, kind: input, shape index: {}]
  %s6 = inlined_call_operand.vmem [shape: bf16[32,32], index: 6, kind: input, shape index: {}]
  %s7 = inlined_call_operand.vmem [shape: bf16[32,32], index: 7, kind: input, shape index: {}]
  %s8 = inlined_call_operand.vmem [shape: bf16[32,32], index: 8, kind: input, shape index: {}]
  %s9 = inlined_call_operand.vmem [shape: bf16[4,8,32], index: 9, kind: input, shape index: {}]
  %s10 = inlined_call_operand.vmem [shape: f32[2,8,32], index: 10, kind: output, shape index: {}]
  %s11 = sld [smem:[#allocation0]]
  $region89: #{transformer_forward.16} parent=0
    _
  %s13 = ssub.s32 1, %s11
  %s14 = scalar_select 0, %s13, %s11
  $region1: #{transformer_forward.16} parent=0
    #allocation2 [shape = 'u8[512]{0}', space=vmem, size = 0x400, scoped, tag = 'input window, operand 2, single buffered']
    #allocation3 [shape = 's32[2]{0}', space=sflag, size = 0x8, scoped, tag = 'scoped memory for transformer_forward.16']
    #allocation4 [shape = 'u8[512]{0}', space=vmem, size = 0x400, scoped, tag = 'input window, operand 3, single buffered']
    #allocation5 [shape = 's32[1]{0}', space=sflag, size = 0x4, scoped, tag = 'scoped memory for transformer_forward.16']
    #allocation6 [shape = 'u8[512]{0}', space=vmem, size = 0x400, scoped, tag = 'input window, operand 4, single buffered']
    #allocation7 [shape = 'u8[512]{0}', space=vmem, size = 0x400, scoped, tag = 'input window, operand 5, single buffered']
    #allocation8 [shape = 's32[1]{0}', space=sflag, size = 0x4, scoped, tag = 'scoped memory for transformer_forward.16']
    %15 = vsyncpa [#allocation3], 0
    %16 = vsyncpa [#allocation5], 0
    %17 = vsyncpa [#allocation8], 0
    loop: start=0, step=1, limit=4
    $region2: #{transformer_forward.16} parent=1 // loop_pre_header
      _
    $region3: #{transformer_forward.16} parent=1 // loop_header
      %s19 = sphi 0, %s23
      %p20 = scmp.ge.s32.totalorder %s19, 4
      %s29 = sphi 0, %s31
      %s32 = sphi 0, %s29
      %s33 = sphi 0, %s32
      %s49 = sphi 0, %s33
      %s55 = sphi 0, %s57
      %s58 = sphi 0, %s55
      %s59 = sphi 0, %s58
      %s75 = sphi 0, %s59
      %s79 = sphi 0, %s79
      %s81 = sphi 0, %s79
      %s82 = sphi 0, %s81
      %s96 = sphi 0, %s82
      %s100 = sphi 0, %s100
      %s102 = sphi 0, %s100
      %s103 = sphi 0, %s102
      %s117 = sphi 0, %s103
      %s121 = sphi 0, %s121
      %s123 = sphi 0, %s121
      %s124 = sphi 0, %s123
      %s138 = sphi 0, %s124
      %s142 = sphi 0, %s142
      %s144 = sphi 0, %s142
      %s145 = sphi 0, %s144
      %s159 = sphi 0, %s145
      %s163 = sphi 0, %s163
      %s165 = sphi 0, %s163
      %s166 = sphi 0, %s165
      %s180 = sphi 0, %s166
      %s184 = sphi 0, %s184
      %s186 = sphi 0, %s184
      %s187 = sphi 0, %s186
      %s201 = sphi 0, %s187
      %s205 = sphi 0, %s205
      %s207 = sphi 0, %s205
      %s208 = sphi 0, %s207
      %s222 = sphi 0, %s208
      %s226 = sphi 0, %s226
      %s228 = sphi 0, %s226
      %s229 = sphi 0, %s228
      %s243 = sphi 0, %s229
      %s249 = sphi 0, %s251
      %s252 = sphi 0, %s249
      %s253 = sphi 0, %s252
      %s269 = sphi 0, %s253
    $region4: #{transformer_forward.16} parent=1 // loop_header_branch
      %22 = sbr.rel (%p20) target = $region8
    $region5: #{transformer_forward.16} parent=1 // loop_body
      %s24 = ssub.s32 %s19, 1
      %s25 = ssub.s32 %s19, 2
      %s26 = sadd.s32 %s19, 1
      %s27 = ssub.s32 %s19, %s26
      %p28 = scmp.eq.s32.totalorder %s27, 0
      %s30 = sadd.s32 %s29, 1
      %s31 = scalar_select %p28, %s29, %s30
      %p34 = pneg %p28
      %p35 = scmp.eq.s32.totalorder %s19, 1
      %p36 = por %p34, %p35
      %p37 = scmp.ne.s32.totalorder %s29, %s32
      %p38 = scmp.eq.s32.totalorder %s19, 0
      %p39 = por %p37, %p38
      %p40 = scmp.ne.s32.totalorder %s29, %s32
      %p41 = scmp.eq.s32.totalorder %s24, 1
      %p42 = por %p40, %p41
      %p43 = scmp.ne.s32.totalorder %s32, %s33
      %p44 = scmp.eq.s32.totalorder %s24, 0
      %p45 = por %p43, %p44
      %p46 = scmp.ne.s32.totalorder %s32, %s33
      %p47 = scmp.eq.s32.totalorder %s25, 1
      %p48 = por %p46, %p47
      %p50 = scmp.ne.s32.totalorder %s33, %s49
      %p51 = scmp.eq.s32.totalorder %s25, 0
      %p52 = por %p50, %p51
      %s53 = ssub.s32 %s19, %s26
      %p54 = scmp.eq.s32.totalorder %s53, 0
      %s56 = sadd.s32 %s55, 1
      %s57 = scalar_select %p54, %s55, %s56
      %p60 = pneg %p54
      %p61 = scmp.eq.s32.totalorder %s19, 1
      %p62 = por %p60, %p61
      %p63 = scmp.ne.s32.totalorder %s55, %s58
      %p64 = scmp.eq.s32.totalorder %s19, 0
      %p65 = por %p63, %p64
      %p66 = scmp.ne.s32.totalorder %s55, %s58
      %p67 = scmp.eq.s32.totalorder %s24, 1
      %p68 = por %p66, %p67
      %p69 = scmp.ne.s32.totalorder %s58, %s59
      %p70 = scmp.eq.s32.totalorder %s24, 0
      %p71 = por %p69, %p70
      %p72 = scmp.ne.s32.totalorder %s58, %s59
      %p73 = scmp.eq.s32.totalorder %s25, 1
      %p74 = por %p72, %p73
      %p76 = scmp.ne.s32.totalorder %s59, %s75
      %p77 = scmp.eq.s32.totalorder %s25, 0
      %p78 = por %p76, %p77
      %s80 = sadd.s32 %s79, 1
      %p83 = scmp.eq.s32.totalorder %s19, 1
      %p84 = scmp.ne.s32.totalorder %s79, %s81
      %p85 = scmp.eq.s32.totalorder %s19, 0
      %p86 = por %p84, %p85
      %p87 = scmp.ne.s32.totalorder %s79, %s81
      %p88 = scmp.eq.s32.totalorder %s24, 1
      %p89 = por %p87, %p88
      %p90 = scmp.ne.s32.totalorder %s81, %s82
      %p91 = scmp.eq.s32.totalorder %s24, 0
      %p92 = por %p90, %p91
      %p93 = scmp.ne.s32.totalorder %s81, %s82
      %p94 = scmp.eq.s32.totalorder %s25, 1
      %p95 = por %p93, %p94
      %p97 = scmp.ne.s32.totalorder %s82, %s96
      %p98 = scmp.eq.s32.totalorder %s25, 0
      %p99 = por %p97, %p98
      %s101 = sadd.s32 %s100, 1
      %p104 = scmp.eq.s32.totalorder %s19, 1
      %p105 = scmp.ne.s32.totalorder %s100, %s102
      %p106 = scmp.eq.s32.totalorder %s19, 0
      %p107 = por %p105, %p106
      %p108 = scmp.ne.s32.totalorder %s100, %s102
      %p109 = scmp.eq.s32.totalorder %s24, 1
      %p110 = por %p108, %p109
      %p111 = scmp.ne.s32.totalorder %s102, %s103
      %p112 = scmp.eq.s32.totalorder %s24, 0
      %p113 = por %p111, %p112
      %p114 = scmp.ne.s32.totalorder %s102, %s103
      %p115 = scmp.eq.s32.totalorder %s25, 1
      %p116 = por %p114, %p115
      %p118 = scmp.ne.s32.totalorder %s103, %s117
      %p119 = scmp.eq.s32.totalorder %s25, 0
      %p120 = por %p118, %p119
      %s122 = sadd.s32 %s121, 1
      %p125 = scmp.eq.s32.totalorder %s19, 1
      %p126 = scmp.ne.s32.totalorder %s121, %s123
      %p127 = scmp.eq.s32.totalorder %s19, 0
      %p128 = por %p126, %p127
      %p129 = scmp.ne.s32.totalorder %s121, %s123
      %p130 = scmp.eq.s32.totalorder %s24, 1
      %p131 = por %p129, %p130
      %p132 = scmp.ne.s32.totalorder %s123, %s124
      %p133 = scmp.eq.s32.totalorder %s24, 0
      %p134 = por %p132, %p133
      %p135 = scmp.ne.s32.totalorder %s123, %s124
      %p136 = scmp.eq.s32.totalorder %s25, 1
      %p137 = por %p135, %p136
      %p139 = scmp.ne.s32.totalorder %s124, %s138
      %p140 = scmp.eq.s32.totalorder %s25, 0
      %p141 = por %p139, %p140
      %s143 = sadd.s32 %s142, 1
      %p146 = scmp.eq.s32.totalorder %s19, 1
      %p147 = scmp.ne.s32.totalorder %s142, %s144
      %p148 = scmp.eq.s32.totalorder %s19, 0
      %p149 = por %p147, %p148
      %p150 = scmp.ne.s32.totalorder %s142, %s144
      %p151 = scmp.eq.s32.totalorder %s24, 1
      %p152 = por %p150, %p151
      %p153 = scmp.ne.s32.totalorder %s144, %s145
      %p154 = scmp.eq.s32.totalorder %s24, 0
      %p155 = por %p153, %p154
      %p156 = scmp.ne.s32.totalorder %s144, %s145
      %p157 = scmp.eq.s32.totalorder %s25, 1
      %p158 = por %p156, %p157
      %p160 = scmp.ne.s32.totalorder %s145, %s159
      %p161 = scmp.eq.s32.totalorder %s25, 0
      %p162 = por %p160, %p161
      %s164 = sadd.s32 %s163, 1
      %p167 = scmp.eq.s32.totalorder %s19, 1
      %p168 = scmp.ne.s32.totalorder %s163, %s165
      %p169 = scmp.eq.s32.totalorder %s19, 0
      %p170 = por %p168, %p169
      %p171 = scmp.ne.s32.totalorder %s163, %s165
      %p172 = scmp.eq.s32.totalorder %s24, 1
      %p173 = por %p171, %p172
      %p174 = scmp.ne.s32.totalorder %s165, %s166
      %p175 = scmp.eq.s32.totalorder %s24, 0
      %p176 = por %p174, %p175
      %p177 = scmp.ne.s32.totalorder %s165, %s166
      %p178 = scmp.eq.s32.totalorder %s25, 1
      %p179 = por %p177, %p178
      %p181 = scmp.ne.s32.totalorder %s166, %s180
      %p182 = scmp.eq.s32.totalorder %s25, 0
      %p183 = por %p181, %p182
      %s185 = sadd.s32 %s184, 1
      %p188 = scmp.eq.s32.totalorder %s19, 1
      %p189 = scmp.ne.s32.totalorder %s184, %s186
      %p190 = scmp.eq.s32.totalorder %s19, 0
      %p191 = por %p189, %p190
      %p192 = scmp.ne.s32.totalorder %s184, %s186
      %p193 = scmp.eq.s32.totalorder %s24, 1
      %p194 = por %p192, %p193
      %p195 = scmp.ne.s32.totalorder %s186, %s187
      %p196 = scmp.eq.s32.totalorder %s24, 0
      %p197 = por %p195, %p196
      %p198 = scmp.ne.s32.totalorder %s186, %s187
      %p199 = scmp.eq.s32.totalorder %s25, 1
      %p200 = por %p198, %p199
      %p202 = scmp.ne.s32.totalorder %s187, %s201
      %p203 = scmp.eq.s32.totalorder %s25, 0
      %p204 = por %p202, %p203
      %s206 = sadd.s32 %s205, 1
      %p209 = scmp.eq.s32.totalorder %s19, 1
      %p210 = scmp.ne.s32.totalorder %s205, %s207
      %p211 = scmp.eq.s32.totalorder %s19, 0
      %p212 = por %p210, %p211
      %p213 = scmp.ne.s32.totalorder %s205, %s207
      %p214 = scmp.eq.s32.totalorder %s24, 1
      %p215 = por %p213, %p214
      %p216 = scmp.ne.s32.totalorder %s207, %s208
      %p217 = scmp.eq.s32.totalorder %s24, 0
      %p218 = por %p216, %p217
      %p219 = scmp.ne.s32.totalorder %s207, %s208
      %p220 = scmp.eq.s32.totalorder %s25, 1
      %p221 = por %p219, %p220
      %p223 = scmp.ne.s32.totalorder %s208, %s222
      %p224 = scmp.eq.s32.totalorder %s25, 0
      %p225 = por %p223, %p224
      %s227 = sadd.s32 %s226, 1
      %p230 = scmp.eq.s32.totalorder %s19, 1
      %p231 = scmp.ne.s32.totalorder %s226, %s228
      %p232 = scmp.eq.s32.totalorder %s19, 0
      %p233 = por %p231, %p232
      %p234 = scmp.ne.s32.totalorder %s226, %s228
      %p235 = scmp.eq.s32.totalorder %s24, 1
      %p236 = por %p234, %p235
      %p237 = scmp.ne.s32.totalorder %s228, %s229
      %p238 = scmp.eq.s32.totalorder %s24, 0
      %p239 = por %p237, %p238
      %p240 = scmp.ne.s32.totalorder %s228, %s229
      %p241 = scmp.eq.s32.totalorder %s25, 1
      %p242 = por %p240, %p241
      %p244 = scmp.ne.s32.totalorder %s229, %s243
      %p245 = scmp.eq.s32.totalorder %s25, 0
      %p246 = por %p244, %p245
      %s247 = ssub.s32 %s19, %s26
      %p248 = scmp.eq.s32.totalorder %s247, 0
      %s250 = sadd.s32 %s249, 1
      %s251 = scalar_select %p248, %s249, %s250
      %p254 = pneg %p248
      %p255 = scmp.eq.s32.totalorder %s19, 1
      %p256 = por %p254, %p255
      %p257 = scmp.ne.s32.totalorder %s249, %s252
      %p258 = scmp.eq.s32.totalorder %s19, 0
      %p259 = por %p257, %p258
      %p260 = scmp.ne.s32.totalorder %s249, %s252
      %p261 = scmp.eq.s32.totalorder %s24, 1
      %p262 = por %p260, %p261
      %p263 = scmp.ne.s32.totalorder %s252, %s253
      %p264 = scmp.eq.s32.totalorder %s24, 0
      %p265 = por %p263, %p264
      %p266 = scmp.ne.s32.totalorder %s252, %s253
      %p267 = scmp.eq.s32.totalorder %s25, 1
      %p268 = por %p266, %p267
      %p270 = scmp.ne.s32.totalorder %s253, %s269
      %p271 = scmp.eq.s32.totalorder %s25, 0
      %p272 = por %p270, %p271
      %p273 = scmp.le.s32.totalorder 1, %s19
      %p274 = scmp.lt.s32.totalorder %s19, 3
      %p275 = pnand %p273, %p274
      %p276 = pneg %p275
      // Predicated region
      $region9: #{transformer_forward.16} parent=5 // pred_check
        _
      $region10: #{transformer_forward.16} parent=5 // pred_check_branch
        %278 = sbr.rel (%p275) target = $region12
      $region11: #{transformer_forward.16} parent=5 // pred_region
        %s279 = ssub.s32 %s19, 1
        // Predicated region
        $region13: #{transformer_forward.16} parent=11 // pred_check
          %p280 = pneg %p92
        $region14: #{transformer_forward.16} parent=11 // pred_check_branch
          %282 = sbr.rel (%p280) target = $region16
        $region15: #{transformer_forward.16} parent=11 // pred_region
          %284 = vsyncadd [#allocation3], 0
          %s286 = sshll.u32 %s2, 4
          %s287 = int_to_ptr.hbm [resolvable:$true] %s286
          %s288 = sshll.u32 [#allocation2], 4
          %s289 = int_to_ptr.vmem [resolvable:$true] %s288
          %291 = dma.hbm_to_vmem [thread:$0]  %s287, 16, %s289, [#allocation3]
        $region16: #{transformer_forward.16} parent=11 // pred_fallthru
          _
        // Predicated region
        $region17: #{transformer_forward.16} parent=11 // pred_check
          %p292 = pneg %p113
        $region18: #{transformer_forward.16} parent=11 // pred_check_branch
          %294 = sbr.rel (%p292) target = $region20
        $region19: #{transformer_forward.16} parent=11 // pred_region
          %296 = vsyncadd [#allocation5], 0
          %s298 = sshll.u32 %s3, 4
          %s299 = int_to_ptr.hbm [resolvable:$true] %s298
          %s300 = sshll.u32 [#allocation4], 4
          %s301 = int_to_ptr.vmem [resolvable:$true] %s300
          %303 = dma.hbm_to_vmem [thread:$0]  %s299, 16, %s301, [#allocation5]
        $region20: #{transformer_forward.16} parent=11 // pred_fallthru
          _
        // Predicated region
        $region21: #{transformer_forward.16} parent=11 // pred_check
          %p304 = pneg %p134
        $region22: #{transformer_forward.16} parent=11 // pred_check_branch
          %306 = sbr.rel (%p304) target = $region24
        $region23: #{transformer_forward.16} parent=11 // pred_region
          %308 = vsyncadd [#allocation5], 0
          %s310 = sshll.u32 %s4, 4
          %s311 = int_to_ptr.hbm [resolvable:$true] %s310
          %s312 = sshll.u32 [#allocation6], 4
          %s313 = int_to_ptr.vmem [resolvable:$true] %s312
          %315 = dma.hbm_to_vmem [thread:$0]  %s311, 16, %s313, [#allocation5]
        $region24: #{transformer_forward.16} parent=11 // pred_fallthru
          _
        // Predicated region
        $region25: #{transformer_forward.16} parent=11 // pred_check
          %p316 = pneg %p155
        $region26: #{transformer_forward.16} parent=11 // pred_check_branch
          %318 = sbr.rel (%p316) target = $region28
        $region27: #{transformer_forward.16} parent=11 // pred_region
          %320 = vsyncadd [#allocation8], 0
          %s322 = sshll.u32 %s5, 4
          %s323 = int_to_ptr.hbm [resolvable:$true] %s322
          %s324 = sshll.u32 [#allocation7], 4
          %s325 = int_to_ptr.vmem [resolvable:$true] %s324
          %327 = dma.hbm_to_vmem [thread:$0]  %s323, 16, %s325, [#allocation8]
        $region28: #{transformer_forward.16} parent=11 // pred_fallthru
          _
        // Predicated region
        $region29: #{transformer_forward.16} parent=11 // pred_check
          %p328 = pneg %p176
        $region30: #{transformer_forward.16} parent=11 // pred_check_branch
          %330 = sbr.rel (%p328) target = $region32
        $region31: #{transformer_forward.16} parent=11 // pred_region
          _
        $region32: #{transformer_forward.16} parent=11 // pred_fallthru
          _
        // Predicated region
        $region33: #{transformer_forward.16} parent=11 // pred_check
          %p331 = pneg %p197
        $region34: #{transformer_forward.16} parent=11 // pred_check_branch
          %333 = sbr.rel (%p331) target = $region36
        $region35: #{transformer_forward.16} parent=11 // pred_region
          _
        $region36: #{transformer_forward.16} parent=11 // pred_fallthru
          _
        // Predicated region
        $region37: #{transformer_forward.16} parent=11 // pred_check
          %p334 = pneg %p218
        $region38: #{transformer_forward.16} parent=11 // pred_check_branch
          %336 = sbr.rel (%p334) target = $region40
        $region39: #{transformer_forward.16} parent=11 // pred_region
          _
        $region40: #{transformer_forward.16} parent=11 // pred_fallthru
          _
        // Predicated region
        $region41: #{transformer_forward.16} parent=11 // pred_check
          %p337 = pneg %p239
        $region42: #{transformer_forward.16} parent=11 // pred_check_branch
          %339 = sbr.rel (%p337) target = $region44
        $region43: #{transformer_forward.16} parent=11 // pred_region
          _
        $region44: #{transformer_forward.16} parent=11 // pred_fallthru
          _
      $region12: #{transformer_forward.16} parent=5 // pred_fallthru
        _
      %p340 = scmp.lt.s32.totalorder %s19, 2
      // Predicated region
      $region45: #{transformer_forward.16} parent=5 // pred_check
        %p341 = pneg %p340
      $region46: #{transformer_forward.16} parent=5 // pred_check_branch
        %343 = sbr.rel (%p341) target = $region48
      $region47: #{transformer_forward.16} parent=5 // pred_region
        // Predicated region
        $region49: #{transformer_forward.16} parent=47 // pred_check
          %p344 = pneg %p39
        $region50: #{transformer_forward.16} parent=47 // pred_check_branch
          %346 = sbr.rel (%p344) target = $region52
        $region51: #{transformer_forward.16} parent=47 // pred_region
          %p347 = scmp.lt.s32.totalorder %s19, 1
          %s348 = scalar_select %p347, %s19, 1
          %s349 = smul.addr %s348, 8
          %s350 = scalar_lea.vmem %s0, %s349
        $region52: #{transformer_forward.16} parent=47 // pred_fallthru
          _
        // Predicated region
        $region53: #{transformer_forward.16} parent=47 // pred_check
          %p351 = pneg %p65
        $region54: #{transformer_forward.16} parent=47 // pred_check_branch
          %353 = sbr.rel (%p351) target = $region56
        $region55: #{transformer_forward.16} parent=47 // pred_region
          %p354 = scmp.lt.s32.totalorder %s19, 1
          %s355 = scalar_select %p354, %s19, 1
          %s356 = smul.addr %s355, 8
          %s357 = scalar_lea.vmem %s1, %s356
        $region56: #{transformer_forward.16} parent=47 // pred_fallthru
          _
      $region48: #{transformer_forward.16} parent=5 // pred_fallthru
        _
      %p358 = scmp.le.s32.totalorder 1, %s19
      %p359 = scmp.lt.s32.totalorder %s19, 3
      %p360 = pnand %p358, %p359
      %p361 = pneg %p360
      // Predicated region
      $region57: #{transformer_forward.16} parent=5 // pred_check
        _
      $region58: #{transformer_forward.16} parent=5 // pred_check_branch
        %363 = sbr.rel (%p360) target = $region60
      $region59: #{transformer_forward.16} parent=5 // pred_region
        %s364 = ssub.s32 %s19, 1
        // Predicated region
        $region61: #{transformer_forward.16} parent=59 // pred_check
          %p365 = pneg %p92
        $region62: #{transformer_forward.16} parent=59 // pred_check_branch
          %367 = sbr.rel (%p365) target = $region64
        $region63: #{transformer_forward.16} parent=59 // pred_region
          %369 = dma.done [#allocation3], 16
        $region64: #{transformer_forward.16} parent=59 // pred_fallthru
          _
        // Predicated region
        $region65: #{transformer_forward.16} parent=59 // pred_check
          %p370 = pneg %p113
        $region66: #{transformer_forward.16} parent=59 // pred_check_branch
          %372 = sbr.rel (%p370) target = $region68
        $region67: #{transformer_forward.16} parent=59 // pred_region
          %374 = dma.done [#allocation5], 16
        $region68: #{transformer_forward.16} parent=59 // pred_fallthru
          _
        // Predicated region
        $region69: #{transformer_forward.16} parent=59 // pred_check
          %p375 = pneg %p134
        $region70: #{transformer_forward.16} parent=59 // pred_check_branch
          %377 = sbr.rel (%p375) target = $region72
        $region71: #{transformer_forward.16} parent=59 // pred_region
          %379 = dma.done [#allocation5], 16
        $region72: #{transformer_forward.16} parent=59 // pred_fallthru
          _
        // Predicated region
        $region73: #{transformer_forward.16} parent=59 // pred_check
          %p380 = pneg %p155
        $region74: #{transformer_forward.16} parent=59 // pred_check_branch
          %382 = sbr.rel (%p380) target = $region76
        $region75: #{transformer_forward.16} parent=59 // pred_region
          %384 = dma.done [#allocation8], 16
        $region76: #{transformer_forward.16} parent=59 // pred_fallthru
          _
        %p385 = scmp.lt.s32.totalorder %s24, 1
        %s386 = scalar_select %p385, %s24, 1
        %s387 = smul.addr %s386, 8
        %s388 = scalar_lea.vmem %s0, %s387
        %p389 = pneg %p45
        %p390 = pneg %p42
        %p391 = scmp.lt.s32.totalorder %s24, 1
        %s392 = scalar_select %p391, %s24, 1
        %s393 = smul.addr %s392, 8
        %s394 = scalar_lea.vmem %s1, %s393
        %p395 = pneg %p71
        %p396 = pneg %p68
        %p397 = pneg %p92
        %p398 = pneg %p89
        %p399 = pneg %p113
        %p400 = pneg %p110
        %p401 = pneg %p134
        %p402 = pneg %p131
        %p403 = pneg %p155
        %p404 = pneg %p152
        %p405 = pneg %p176
        %p406 = pneg %p173
        %p407 = pneg %p197
        %p408 = pneg %p194
        %p409 = pneg %p218
        %p410 = pneg %p215
        %p411 = pneg %p239
        %p412 = pneg %p236
        %p413 = pneg %p265
        %p414 = pneg %p262
        %p415 = scmp.lt.s32.totalorder %s24, 1
        %s416 = scalar_select %p415, %s24, 1
        %s417 = smul.addr %s416, 8
        %s418 = scalar_lea.vmem %s10, %s417
        %p419 = scmp.lt.s32.totalorder %s24, 1
        %s420 = scalar_select %p419, %s24, 1
        %s421 = smul.addr %s420, 8
        %s422 = scalar_lea.vmem %s0, %s421
        %p423 = scmp.lt.s32.totalorder %s24, 1
        %s424 = scalar_select %p423, %s24, 1
        %s425 = smul.addr %s424, 8
        %s426 = scalar_lea.vmem %s1, %s425
        %p427 = scmp.lt.s32.totalorder %s24, 1
        %s428 = scalar_select %p427, %s24, 1
        %s429 = smul.addr %s428, 8
        %s430 = scalar_lea.vmem %s10, %s429
        %v432 = vld [vmem:[%s422] sm:$0xff]
        %v433 = vld [vmem:[%s426] sm:$0xff]
        %v434 = vld [vmem:[#allocation2] sm:$0x1]
        %v435 = vld [vmem:[#allocation4] sm:$0x1]
        %vm436 = vcmask 261120
        %v437 = vsel %vm436, %v432, 0.0
        %438 = vadd.xlane.f32.xlu0 %v437
        %v439 = vpop.xlane.xlu0 %438
        %v440 = vrcp.pop 32.0
        %v441 = vmul.f32 32.0, %v440
        %v442 = vsub.f32 1.0, %v441
        %v443 = vmul.f32 %v440, %v442
        %v444 = vadd.f32 %v440, %v443
        %vm445 = vweird.f32 %v440
        %v446 = vsel %vm445, %v440, %v444
        %v447 = vmul.f32 %v439, %v446
        %v448 = vsub.f32 %v432, %v447
        %v449 = vmul.f32 %v448, %v448
        %v450 = vsel %vm436, %v449, 0.0
        %451 = vadd.xlane.f32.xlu0 %v450
        %v452 = vpop.xlane.xlu0 %451
        %v453 = vmul.f32 %v452, %v446
        %v454 = vadd.f32 %v453, 1e-05
        %v455 = vrsqrt.pop %v454
        %v456 = vmul.f32 %v455, %v454
        %v457 = vmul.f32 %v456, %v455
        %v458 = vmul.f32 0.5, %v457
        %v459 = vsub.f32 1.5, %v458
        %v460 = vmul.f32 %v455, %v459
        %vm461 = vweird.f32 %v454
        %vm462 = vweird.f32 %v455
        %vm463 = vmor %vm461, %vm462
        %v464 = vsel %vm463, %v455, %v460
        %v465 = vmul.f32 %v448, %v464
        %v467 = vperm.slane %v434, 0
        %v469 = vmul.f32 %v465, %v467
        %v471 = vperm.slane %v435, 0
        %v473 = vadd.f32 %v469, %v471
        %v474 = vpack.c.bf16 %v473, %v473
        %v475 = vld [vmem:[#allocation6] sm:$0x1]
        %v476 = vld [vmem:[#allocation7] sm:$0x1]
        %v477 = vsel %vm436, %v433, 0.0
        %478 = vadd.xlane.f32.xlu0 %v477
        %v479 = vpop.xlane.xlu0 %478
        %v480 = vmul.f32 %v479, %v446
        %v481 = vsub.f32 %v433, %v480
        %v482 = vmul.f32 %v481, %v481
        %v483 = vsel %vm436, %v482, 0.0
        %484 = vadd.xlane.f32.xlu0 %v483
        %v485 = vpop.xlane.xlu0 %484
        %v486 = vmul.f32 %v485, %v446
        %v487 = vadd.f32 %v486, 1e-05
        %v488 = vrsqrt.pop %v487
        %v489 = vmul.f32 %v488, %v487
        %v490 = vmul.f32 %v489, %v488
        %v491 = vmul.f32 0.5, %v490
        %v492 = vsub.f32 1.5, %v491
        %v493 = vmul.f32 %v488, %v492
        %vm494 = vweird.f32 %v487
        %vm495 = vweird.f32 %v488
        %vm496 = vmor %vm494, %vm495
        %v497 = vsel %vm496, %v488, %v493
        %v498 = vmul.f32 %v481, %v497
        %v500 = vperm.slane %v475, 0
        %v502 = vmul.f32 %v498, %v500
        %v504 = vperm.slane %v476, 0
        %v506 = vadd.f32 %v502, %v504
        %v507 = vpack.c.bf16 %v506, %v506
        %v508 = vld [vmem:[%s6] sm:$0xf]
        %v509 = vld [vmem:[%s6 + $0x4] sm:$0xf]
        %v510 = vld [vmem:[%s6 + $0x8] sm:$0xf]
        %v511 = vld [vmem:[%s6 + $0xc] sm:$0xf]
        %v516 = vunpack.c.l.b16 %v508
        %v517 = vunpack.c.l.b16 %v509
        %v518 = vunpack.c.l.b16 %v510
        %v519 = vunpack.c.l.b16 %v511
        %v520 = vpack.c.b16 %v517, %v516
        %v521 = vpack.c.b16 %v519, %v518
        %v525 = vsel %vm436, %v474, 0
        %527 = vmatpush.bf16.msra.mxu0 0
        %528 = vmatpush.bf16.msra.mxu0 0
        %529 = vmatpush.bf16.msra.mxu0 0
        %530 = vmatpush.bf16.msra.mxu0 0
        %531 = vmatpush.bf16.msra.mxu0 0
        %532 = vmatpush.bf16.msra.mxu0 0
        %533 = vmatpush.bf16.msra.mxu0 %v521
        %534 = vmatpush.bf16.msra.mxu0 %v520
        %535 = vmatmul.bf16.gmra.mxu0 %v525
        %v536 = vpop.f32.mrf.mxu0
        %v537 = vadd.f32 0.0, %v536
        %v538 = vpop.f32.mrf.mxu0
        %539 = vdwg.mxu0
        %v540 = vld [vmem:[%s7] sm:$0xf]
        %v541 = vld [vmem:[%s7 + $0x4] sm:$0xf]
        %v542 = vld [vmem:[%s7 + $0x8] sm:$0xf]
        %v543 = vld [vmem:[%s7 + $0xc] sm:$0xf]
        %v548 = vunpack.c.l.b16 %v540
        %v549 = vunpack.c.l.b16 %v541
        %v550 = vunpack.c.l.b16 %v542
        %v551 = vunpack.c.l.b16 %v543
        %v552 = vpack.c.b16 %v549, %v548
        %v553 = vpack.c.b16 %v551, %v550
        %v557 = vsel %vm436, %v507, 0
        %559 = vmatpush.bf16.msra.mxu0 0
        %560 = vmatpush.bf16.msra.mxu0 0
        %561 = vmatpush.bf16.msra.mxu0 0
        %562 = vmatpush.bf16.msra.mxu0 0
        %563 = vmatpush.bf16.msra.mxu0 0
        %564 = vmatpush.bf16.msra.mxu0 0
        %565 = vmatpush.bf16.msra.mxu0 %v553
        %566 = vmatpush.bf16.msra.mxu0 %v552
        %567 = vmatmul.bf16.gmra.mxu0 %v557
        %v568 = vpop.f32.mrf.mxu0
        %v569 = vadd.f32 0.0, %v568
        %v570 = vpop.f32.mrf.mxu0
        %571 = vdwg.mxu0
        %v572 = vld [vmem:[%s8] sm:$0xf]
        %v573 = vld [vmem:[%s8 + $0x4] sm:$0xf]
        %v574 = vld [vmem:[%s8 + $0x8] sm:$0xf]
        %v575 = vld [vmem:[%s8 + $0xc] sm:$0xf]
        %v580 = vunpack.c.l.b16 %v572
        %v581 = vunpack.c.l.b16 %v573
        %v582 = vunpack.c.l.b16 %v574
        %v583 = vunpack.c.l.b16 %v575
        %v584 = vpack.c.b16 %v581, %v580
        %v585 = vpack.c.b16 %v583, %v582
        %588 = vmatpush.bf16.msra.mxu0 0
        %589 = vmatpush.bf16.msra.mxu0 0
        %590 = vmatpush.bf16.msra.mxu0 0
        %591 = vmatpush.bf16.msra.mxu0 0
        %592 = vmatpush.bf16.msra.mxu0 0
        %593 = vmatpush.bf16.msra.mxu0 0
        %594 = vmatpush.bf16.msra.mxu0 %v585
        %595 = vmatpush.bf16.msra.mxu0 %v584
        %596 = vmatmul.bf16.gmra.mxu0 %v557
        %v597 = vpop.f32.mrf.mxu0
        %v598 = vadd.f32 0.0, %v597
        %v599 = vpop.f32.mrf.mxu0
        %600 = vdwg.mxu0
        %v601 = vpack.c.bf16 %v537, %v537
        %v602 = vpack.c.bf16 %v569, %v569
        %v603 = vpack.c.bf16 %v598, %v598
        %vm604 = vcmask 64512
        %v606 = vsel %vm604, %v601, 0
        %v609 = vsel %vm604, %v602, 0
        %611 = vmatpush.bf16.xpose.msra.mxu0 0
        %612 = vmatpush.bf16.xpose.msra.mxu0 0
        %613 = vmatpush.bf16.xpose.msra.mxu0 0
        %614 = vmatpush.bf16.xpose.msra.mxu0 0
        %615 = vmatpush.bf16.xpose.msra.mxu0 0
        %616 = vmatpush.bf16.xpose.msra.mxu0 0
        %617 = vmatpush.bf16.xpose.msra.mxu0 0
        %618 = vmatpush.bf16.xpose.msra.mxu0 %v609
        %619 = vmatmul.bf16.gmra.mxu0 %v606
        %v620 = vpop.f32.mrf.mxu0
        %v621 = vadd.f32 0.0, %v620
        %v622 = vpop.f32.mrf.mxu0
        %623 = vdwg.mxu0
        %v624 = vmul.f32 %v621, 0.35355338
        %v625 = vsel %vm604, %v624, -inf
        %626 = vmax.xlane.f32.xlu0 %v625
        %v627 = vpop.xlane.xlu0 %626
        %v628 = vsub.f32 %v624, %v627
        %v629 = vmul.f32 %v628, 1.442695
        %v630 = vpow.pop %v629
        %v631 = vsel %vm604, %v630, 0.0
        %632 = vadd.xlane.f32.xlu0 %v631
        %v633 = vpop.xlane.xlu0 %632
        %v634 = vrcp.pop %v633
        %v635 = vmul.f32 %v630, %v634
        %v636 = vpack.c.bf16 %v635, %v635
        %v638 = vsel %vm604, %v636, 0
        %vm640 = vcmask 1043456
        %v642 = vsel %vm640, %v603, 0
        %644 = vmatpush.bf16.msra.mxu0 0
        %645 = vmatpush.bf16.msra.mxu0 0
        %646 = vmatpush.bf16.msra.mxu0 0
        %647 = vmatpush.bf16.msra.mxu0 0
        %648 = vmatpush.bf16.msra.mxu0 0
        %649 = vmatpush.bf16.msra.mxu0 0
        %650 = vmatpush.bf16.msra.mxu0 0
        %651 = vmatpush.bf16.msra.mxu0 %v642
        %652 = vmatmul.bf16.gmra.mxu0 %v638
        %v653 = vpop.f32.mrf.mxu0
        %v654 = vadd.f32 0.0, %v653
        %v655 = vpop.f32.mrf.mxu0
        %656 = vdwg.mxu0
        %v657 = vpack.c.bf16 %v654, %v654
        %v658 = vld [vmem:[%s9] sm:$0xf]
        %v660 = vsel %vm604, %v657, 0
        %v663 = vsel %vm640, %v658, 0
        %665 = vmatpush.bf16.msra.mxu0 0
        %666 = vmatpush.bf16.msra.mxu0 0
        %667 = vmatpush.bf16.msra.mxu0 0
        %668 = vmatpush.bf16.msra.mxu0 0
        %669 = vmatpush.bf16.msra.mxu0 0
        %670 = vmatpush.bf16.msra.mxu0 0
        %671 = vmatpush.bf16.msra.mxu0 0
        %672 = vmatpush.bf16.msra.mxu0 %v663
        %673 = vmatmul.bf16.gmra.mxu0 %v660
        %v674 = vpop.f32.mrf.mxu0
        %v675 = vadd.f32 0.0, %v674
        %v676 = vpop.f32.mrf.mxu0
        %677 = vdwg.mxu0
        %v678 = vadd.f32 %v432, %v675
        %680 = vrot.lane.b32.xlu0 %v601, 120
        %v681 = vpop.permute.xlu0 %680
        %683 = vrot.lane.b32.xlu0 %v602, 120
        %v684 = vpop.permute.xlu0 %683
        %v686 = vsel %vm604, %v681, 0
        %v689 = vsel %vm604, %v684, 0
        %691 = vmatpush.bf16.xpose.msra.mxu0 0
        %692 = vmatpush.bf16.xpose.msra.mxu0 0
        %693 = vmatpush.bf16.xpose.msra.mxu0 0
        %694 = vmatpush.bf16.xpose.msra.mxu0 0
        %695 = vmatpush.bf16.xpose.msra.mxu0 0
        %696 = vmatpush.bf16.xpose.msra.mxu0 0
        %697 = vmatpush.bf16.xpose.msra.mxu0 0
        %698 = vmatpush.bf16.xpose.msra.mxu0 %v689
        %699 = vmatmul.bf16.gmra.mxu0 %v686
        %v700 = vpop.f32.mrf.mxu0
        %v701 = vadd.f32 0.0, %v700
        %v702 = vpop.f32.mrf.mxu0
        %703 = vdwg.mxu0
        %v704 = vmul.f32 %v701, 0.35355338
        %v705 = vsel %vm604, %v704, -inf
        %706 = vmax.xlane.f32.xlu0 %v705
        %v707 = vpop.xlane.xlu0 %706
        %v708 = vsub.f32 %v704, %v707
        %v709 = vmul.f32 %v708, 1.442695
        %v710 = vpow.pop %v709
        %v711 = vsel %vm604, %v710, 0.0
        %712 = vadd.xlane.f32.xlu0 %v711
        %v713 = vpop.xlane.xlu0 %712
        %v714 = vrcp.pop %v713
        %v715 = vmul.f32 %v710, %v714
        %v716 = vpack.c.bf16 %v715, %v715
        %718 = vrot.lane.b32.xlu0 %v603, 120
        %v719 = vpop.permute.xlu0 %718
        %v721 = vsel %vm604, %v716, 0
        %v724 = vsel %vm640, %v719, 0
        %726 = vmatpush.bf16.msra.mxu0 0
        %727 = vmatpush.bf16.msra.mxu0 0
        %728 = vmatpush.bf16.msra.mxu0 0
        %729 = vmatpush.bf16.msra.mxu0 0
        %730 = vmatpush.bf16.msra.mxu0 0
        %731 = vmatpush.bf16.msra.mxu0 0
        %732 = vmatpush.bf16.msra.mxu0 0
        %733 = vmatpush.bf16.msra.mxu0 %v724
        %734 = vmatmul.bf16.gmra.mxu0 %v721
        %v735 = vpop.f32.mrf.mxu0
        %v736 = vadd.f32 0.0, %v735
        %v737 = vpop.f32.mrf.mxu0
        %738 = vdwg.mxu0
        %v739 = vpack.c.bf16 %v736, %v736
        %s740 = scalar_lea.vmem %s9, 4
        %v741 = vld [vmem:[%s740] sm:$0xf]
        %v743 = vsel %vm604, %v739, 0
        %v746 = vsel %vm640, %v741, 0
        %748 = vmatpush.bf16.msra.mxu0 0
        %749 = vmatpush.bf16.msra.mxu0 0
        %750 = vmatpush.bf16.msra.mxu0 0
        %751 = vmatpush.bf16.msra.mxu0 0
        %752 = vmatpush.bf16.msra.mxu0 0
        %753 = vmatpush.bf16.msra.mxu0 0
        %754 = vmatpush.bf16.msra.mxu0 0
        %755 = vmatpush.bf16.msra.mxu0 %v746
        %756 = vmatmul.bf16.gmra.mxu0 %v743
        %v757 = vpop.f32.mrf.mxu0
        %v758 = vadd.f32 0.0, %v757
        %v759 = vpop.f32.mrf.mxu0
        %760 = vdwg.mxu0
        %v761 = vadd.f32 %v678, %v758
        %762 = vrot.lane.b32.xlu0 %v601, 112
        %v763 = vpop.permute.xlu0 %762
        %764 = vrot.lane.b32.xlu0 %v602, 112
        %v765 = vpop.permute.xlu0 %764
        %v767 = vsel %vm604, %v763, 0
        %v770 = vsel %vm604, %v765, 0
        %772 = vmatpush.bf16.xpose.msra.mxu0 0
        %773 = vmatpush.bf16.xpose.msra.mxu0 0
        %774 = vmatpush.bf16.xpose.msra.mxu0 0
        %775 = vmatpush.bf16.xpose.msra.mxu0 0
        %776 = vmatpush.bf16.xpose.msra.mxu0 0
        %777 = vmatpush.bf16.xpose.msra.mxu0 0
        %778 = vmatpush.bf16.xpose.msra.mxu0 0
        %779 = vmatpush.bf16.xpose.msra.mxu0 %v770
        %780 = vmatmul.bf16.gmra.mxu0 %v767
        %v781 = vpop.f32.mrf.mxu0
        %v782 = vadd.f32 0.0, %v781
        %v783 = vpop.f32.mrf.mxu0
        %784 = vdwg.mxu0
        %v785 = vmul.f32 %v782, 0.35355338
        %v786 = vsel %vm604, %v785, -inf
        %787 = vmax.xlane.f32.xlu0 %v786
        %v788 = vpop.xlane.xlu0 %787
        %v789 = vsub.f32 %v785, %v788
        %v790 = vmul.f32 %v789, 1.442695
        %v791 = vpow.pop %v790
        %v792 = vsel %vm604, %v791, 0.0
        %793 = vadd.xlane.f32.xlu0 %v792
        %v794 = vpop.xlane.xlu0 %793
        %v795 = vrcp.pop %v794
        %v796 = vmul.f32 %v791, %v795
        %v797 = vpack.c.bf16 %v796, %v796
        %798 = vrot.lane.b32.xlu0 %v603, 112
        %v799 = vpop.permute.xlu0 %798
        %v801 = vsel %vm604, %v797, 0
        %v804 = vsel %vm640, %v799, 0
        %806 = vmatpush.bf16.msra.mxu0 0
        %807 = vmatpush.bf16.msra.mxu0 0
        %808 = vmatpush.bf16.msra.mxu0 0
        %809 = vmatpush.bf16.msra.mxu0 0
        %810 = vmatpush.bf16.msra.mxu0 0
        %811 = vmatpush.bf16.msra.mxu0 0
        %812 = vmatpush.bf16.msra.mxu0 0
        %813 = vmatpush.bf16.msra.mxu0 %v804
        %814 = vmatmul.bf16.gmra.mxu0 %v801
        %v815 = vpop.f32.mrf.mxu0
        %v816 = vadd.f32 0.0, %v815
        %v817 = vpop.f32.mrf.mxu0
        %818 = vdwg.mxu0
        %v819 = vpack.c.bf16 %v816, %v816
        %s820 = scalar_lea.vmem %s9, 8
        %v821 = vld [vmem:[%s820] sm:$0xf]
        %v823 = vsel %vm604, %v819, 0
        %v826 = vsel %vm640, %v821, 0
        %828 = vmatpush.bf16.msra.mxu0 0
        %829 = vmatpush.bf16.msra.mxu0 0
        %830 = vmatpush.bf16.msra.mxu0 0
        %831 = vmatpush.bf16.msra.mxu0 0
        %832 = vmatpush.bf16.msra.mxu0 0
        %833 = vmatpush.bf16.msra.mxu0 0
        %834 = vmatpush.bf16.msra.mxu0 0
        %835 = vmatpush.bf16.msra.mxu0 %v826
        %836 = vmatmul.bf16.gmra.mxu0 %v823
        %v837 = vpop.f32.mrf.mxu0
        %v838 = vadd.f32 0.0, %v837
        %v839 = vpop.f32.mrf.mxu0
        %840 = vdwg.mxu0
        %v841 = vadd.f32 %v761, %v838
        %842 = vrot.lane.b32.xlu0 %v601, 104
        %v843 = vpop.permute.xlu0 %842
        %844 = vrot.lane.b32.xlu0 %v602, 104
        %v845 = vpop.permute.xlu0 %844
        %v847 = vsel %vm604, %v843, 0
        %v850 = vsel %vm604, %v845, 0
        %852 = vmatpush.bf16.xpose.msra.mxu0 0
        %853 = vmatpush.bf16.xpose.msra.mxu0 0
        %854 = vmatpush.bf16.xpose.msra.mxu0 0
        %855 = vmatpush.bf16.xpose.msra.mxu0 0
        %856 = vmatpush.bf16.xpose.msra.mxu0 0
        %857 = vmatpush.bf16.xpose.msra.mxu0 0
        %858 = vmatpush.bf16.xpose.msra.mxu0 0
        %859 = vmatpush.bf16.xpose.msra.mxu0 %v850
        %860 = vmatmul.bf16.gmra.mxu0 %v847
        %v861 = vpop.f32.mrf.mxu0
        %v862 = vadd.f32 0.0, %v861
        %v863 = vpop.f32.mrf.mxu0
        %864 = vdwg.mxu0
        %v865 = vmul.f32 %v862, 0.35355338
        %v866 = vsel %vm604, %v865, -inf
        %867 = vmax.xlane.f32.xlu0 %v866
        %v868 = vpop.xlane.xlu0 %867
        %v869 = vsub.f32 %v865, %v868
        %v870 = vmul.f32 %v869, 1.442695
        %v871 = vpow.pop %v870
        %v872 = vsel %vm604, %v871, 0.0
        %873 = vadd.xlane.f32.xlu0 %v872
        %v874 = vpop.xlane.xlu0 %873
        %v875 = vrcp.pop %v874
        %v876 = vmul.f32 %v871, %v875
        %v877 = vpack.c.bf16 %v876, %v876
        %878 = vrot.lane.b32.xlu0 %v603, 104
        %v879 = vpop.permute.xlu0 %878
        %v881 = vsel %vm604, %v877, 0
        %v884 = vsel %vm640, %v879, 0
        %886 = vmatpush.bf16.msra.mxu0 0
        %887 = vmatpush.bf16.msra.mxu0 0
        %888 = vmatpush.bf16.msra.mxu0 0
        %889 = vmatpush.bf16.msra.mxu0 0
        %890 = vmatpush.bf16.msra.mxu0 0
        %891 = vmatpush.bf16.msra.mxu0 0
        %892 = vmatpush.bf16.msra.mxu0 0
        %893 = vmatpush.bf16.msra.mxu0 %v884
        %894 = vmatmul.bf16.gmra.mxu0 %v881
        %v895 = vpop.f32.mrf.mxu0
        %v896 = vadd.f32 0.0, %v895
        %v897 = vpop.f32.mrf.mxu0
        %898 = vdwg.mxu0
        %v899 = vpack.c.bf16 %v896, %v896
        %s900 = scalar_lea.vmem %s9, 12
        %v901 = vld [vmem:[%s900] sm:$0xf]
        %v903 = vsel %vm604, %v899, 0
        %v906 = vsel %vm640, %v901, 0
        %908 = vmatpush.bf16.msra.mxu0 0
        %909 = vmatpush.bf16.msra.mxu0 0
        %910 = vmatpush.bf16.msra.mxu0 0
        %911 = vmatpush.bf16.msra.mxu0 0
        %912 = vmatpush.bf16.msra.mxu0 0
        %913 = vmatpush.bf16.msra.mxu0 0
        %914 = vmatpush.bf16.msra.mxu0 0
        %915 = vmatpush.bf16.msra.mxu0 %v906
        %916 = vmatmul.bf16.gmra.mxu0 %v903
        %v917 = vpop.f32.mrf.mxu0
        %v918 = vadd.f32 0.0, %v917
        %v919 = vpop.f32.mrf.mxu0
        %920 = vdwg.mxu0
        %v921 = vadd.f32 %v841, %v918
        %922 = vst.msk [vmem:[%s430] sm:$0xff] %vm436, %v921
        %p923 = scmp.lt.s32.totalorder %s24, 1
        %s924 = scalar_select %p923, %s24, 1
        %s925 = smul.addr %s924, 8
        %s926 = scalar_lea.vmem %s10, %s925
        // Predicated region
        $region77: #{transformer_forward.16} parent=59 // pred_check
          %p927 = pneg %p262
        $region78: #{transformer_forward.16} parent=59 // pred_check_branch
          %929 = sbr.rel (%p927) target = $region80
        $region79: #{transformer_forward.16} parent=59 // pred_region
          _
        $region80: #{transformer_forward.16} parent=59 // pred_fallthru
          _
      $region60: #{transformer_forward.16} parent=5 // pred_fallthru
        _
      %p930 = scmp.le.s32.totalorder 2, %s19
      // Predicated region
      $region81: #{transformer_forward.16} parent=5 // pred_check
        %p931 = pneg %p930
      $region82: #{transformer_forward.16} parent=5 // pred_check_branch
        %933 = sbr.rel (%p931) target = $region84
      $region83: #{transformer_forward.16} parent=5 // pred_region
        %s934 = ssub.s32 %s19, 2
        // Predicated region
        $region85: #{transformer_forward.16} parent=83 // pred_check
          %p935 = pneg %p268
        $region86: #{transformer_forward.16} parent=83 // pred_check_branch
          %937 = sbr.rel (%p935) target = $region88
        $region87: #{transformer_forward.16} parent=83 // pred_region
          %p938 = scmp.lt.s32.totalorder %s25, 1
          %s939 = scalar_select %p938, %s25, 1
          %s940 = smul.addr %s939, 8
          %s941 = scalar_lea.vmem %s10, %s940
        $region88: #{transformer_forward.16} parent=83 // pred_fallthru
          _
      $region84: #{transformer_forward.16} parent=5 // pred_fallthru
        _
    $region6: #{transformer_forward.16} parent=1 // loop_footer
      %s23 = sadd.s32 1, %s19
    $region7: #{transformer_forward.16} parent=1 // loop_footer_branch
      %18 = sbr.rel target = $region3
    $region8: #{transformer_forward.16} parent=1 // loop_exit
      _
    %942 = vsyncpa [#allocation3], 1
    %s943 = scalar_lea.sflag [#allocation3], 1
    %944 = vsyncpa %s943, 1
    %945 = vsyncpa [#allocation5], 1
    %946 = vsyncpa [#allocation8], 1

// kernel: transformer_forward.11
$region0: #{transformer_forward.11}
  #allocation0 [shape = 'u32[]', space=smem, size = 0x4, offset = 0x4, fixed_abs, tag = 'smem constant byte address 0x4 - core index']
  #allocation1 [shape = 'u32[72,128]{1,0:T(1,128)}', space=vmem, size = 0x9000, scoped, tag = 'internal scratch']
  %s0 = inlined_call_operand.vmem [shape: f32[2,8,32], index: 0, kind: input, shape index: {}, may-alias: {0,1}]
  %s1 = inlined_call_operand.vmem [shape: f32[2,8,32], index: 1, kind: input, shape index: {}, may-alias: {0,1}]
  %s2 = inlined_call_operand.vmem [shape: f32[1,32], index: 2, kind: input, shape index: {}, may-alias: {2,4}]
  %s3 = inlined_call_operand.vmem [shape: f32[1,32], index: 3, kind: input, shape index: {}, may-alias: {3,5}]
  %s4 = inlined_call_operand.vmem [shape: f32[1,32], index: 4, kind: input, shape index: {}, may-alias: {2,4}]
  %s5 = inlined_call_operand.vmem [shape: f32[1,32], index: 5, kind: input, shape index: {}, may-alias: {3,5}]
  %s6 = inlined_call_operand.vmem [shape: bf16[32,32], index: 6, kind: input, shape index: {}]
  %s7 = inlined_call_operand.vmem [shape: bf16[32,32], index: 7, kind: input, shape index: {}]
  %s8 = inlined_call_operand.vmem [shape: bf16[32,32], index: 8, kind: input, shape index: {}]
  %s9 = inlined_call_operand.vmem [shape: bf16[4,8,32], index: 9, kind: input, shape index: {}]
  %s10 = inlined_call_operand.vmem [shape: f32[2,8,32], index: 10, kind: output, shape index: {}]
  %s11 = sld [smem:[#allocation0]]
  $region73: #{transformer_forward.11} parent=0
    _
  %s13 = ssub.s32 1, %s11
  %s14 = scalar_select 0, %s13, %s11
  loop: start=0, step=1, limit=4
  $region2: #{transformer_forward.11} parent=0 // loop_pre_header
    _
  $region3: #{transformer_forward.11} parent=0 // loop_header
    %s16 = sphi 0, %s20
    %p17 = scmp.ge.s32.totalorder %s16, 4
    %s26 = sphi 0, %s28
    %s29 = sphi 0, %s26
    %s30 = sphi 0, %s29
    %s46 = sphi 0, %s30
    %s52 = sphi 0, %s54
    %s55 = sphi 0, %s52
    %s56 = sphi 0, %s55
    %s72 = sphi 0, %s56
    %s76 = sphi 0, %s76
    %s78 = sphi 0, %s76
    %s79 = sphi 0, %s78
    %s93 = sphi 0, %s79
    %s97 = sphi 0, %s97
    %s99 = sphi 0, %s97
    %s100 = sphi 0, %s99
    %s114 = sphi 0, %s100
    %s118 = sphi 0, %s118
    %s120 = sphi 0, %s118
    %s121 = sphi 0, %s120
    %s135 = sphi 0, %s121
    %s139 = sphi 0, %s139
    %s141 = sphi 0, %s139
    %s142 = sphi 0, %s141
    %s156 = sphi 0, %s142
    %s160 = sphi 0, %s160
    %s162 = sphi 0, %s160
    %s163 = sphi 0, %s162
    %s177 = sphi 0, %s163
    %s181 = sphi 0, %s181
    %s183 = sphi 0, %s181
    %s184 = sphi 0, %s183
    %s198 = sphi 0, %s184
    %s202 = sphi 0, %s202
    %s204 = sphi 0, %s202
    %s205 = sphi 0, %s204
    %s219 = sphi 0, %s205
    %s223 = sphi 0, %s223
    %s225 = sphi 0, %s223
    %s226 = sphi 0, %s225
    %s240 = sphi 0, %s226
    %s246 = sphi 0, %s248
    %s249 = sphi 0, %s246
    %s250 = sphi 0, %s249
    %s266 = sphi 0, %s250
  $region4: #{transformer_forward.11} parent=0 // loop_header_branch
    %19 = sbr.rel (%p17) target = $region8
  $region5: #{transformer_forward.11} parent=0 // loop_body
    %s21 = ssub.s32 %s16, 1
    %s22 = ssub.s32 %s16, 2
    %s23 = sadd.s32 %s16, 1
    %s24 = ssub.s32 %s16, %s23
    %p25 = scmp.eq.s32.totalorder %s24, 0
    %s27 = sadd.s32 %s26, 1
    %s28 = scalar_select %p25, %s26, %s27
    %p31 = pneg %p25
    %p32 = scmp.eq.s32.totalorder %s16, 1
    %p33 = por %p31, %p32
    %p34 = scmp.ne.s32.totalorder %s26, %s29
    %p35 = scmp.eq.s32.totalorder %s16, 0
    %p36 = por %p34, %p35
    %p37 = scmp.ne.s32.totalorder %s26, %s29
    %p38 = scmp.eq.s32.totalorder %s21, 1
    %p39 = por %p37, %p38
    %p40 = scmp.ne.s32.totalorder %s29, %s30
    %p41 = scmp.eq.s32.totalorder %s21, 0
    %p42 = por %p40, %p41
    %p43 = scmp.ne.s32.totalorder %s29, %s30
    %p44 = scmp.eq.s32.totalorder %s22, 1
    %p45 = por %p43, %p44
    %p47 = scmp.ne.s32.totalorder %s30, %s46
    %p48 = scmp.eq.s32.totalorder %s22, 0
    %p49 = por %p47, %p48
    %s50 = ssub.s32 %s16, %s23
    %p51 = scmp.eq.s32.totalorder %s50, 0
    %s53 = sadd.s32 %s52, 1
    %s54 = scalar_select %p51, %s52, %s53
    %p57 = pneg %p51
    %p58 = scmp.eq.s32.totalorder %s16, 1
    %p59 = por %p57, %p58
    %p60 = scmp.ne.s32.totalorder %s52, %s55
    %p61 = scmp.eq.s32.totalorder %s16, 0
    %p62 = por %p60, %p61
    %p63 = scmp.ne.s32.totalorder %s52, %s55
    %p64 = scmp.eq.s32.totalorder %s21, 1
    %p65 = por %p63, %p64
    %p66 = scmp.ne.s32.totalorder %s55, %s56
    %p67 = scmp.eq.s32.totalorder %s21, 0
    %p68 = por %p66, %p67
    %p69 = scmp.ne.s32.totalorder %s55, %s56
    %p70 = scmp.eq.s32.totalorder %s22, 1
    %p71 = por %p69, %p70
    %p73 = scmp.ne.s32.totalorder %s56, %s72
    %p74 = scmp.eq.s32.totalorder %s22, 0
    %p75 = por %p73, %p74
    %s77 = sadd.s32 %s76, 1
    %p80 = scmp.eq.s32.totalorder %s16, 1
    %p81 = scmp.ne.s32.totalorder %s76, %s78
    %p82 = scmp.eq.s32.totalorder %s16, 0
    %p83 = por %p81, %p82
    %p84 = scmp.ne.s32.totalorder %s76, %s78
    %p85 = scmp.eq.s32.totalorder %s21, 1
    %p86 = por %p84, %p85
    %p87 = scmp.ne.s32.totalorder %s78, %s79
    %p88 = scmp.eq.s32.totalorder %s21, 0
    %p89 = por %p87, %p88
    %p90 = scmp.ne.s32.totalorder %s78, %s79
    %p91 = scmp.eq.s32.totalorder %s22, 1
    %p92 = por %p90, %p91
    %p94 = scmp.ne.s32.totalorder %s79, %s93
    %p95 = scmp.eq.s32.totalorder %s22, 0
    %p96 = por %p94, %p95
    %s98 = sadd.s32 %s97, 1
    %p101 = scmp.eq.s32.totalorder %s16, 1
    %p102 = scmp.ne.s32.totalorder %s97, %s99
    %p103 = scmp.eq.s32.totalorder %s16, 0
    %p104 = por %p102, %p103
    %p105 = scmp.ne.s32.totalorder %s97, %s99
    %p106 = scmp.eq.s32.totalorder %s21, 1
    %p107 = por %p105, %p106
    %p108 = scmp.ne.s32.totalorder %s99, %s100
    %p109 = scmp.eq.s32.totalorder %s21, 0
    %p110 = por %p108, %p109
    %p111 = scmp.ne.s32.totalorder %s99, %s100
    %p112 = scmp.eq.s32.totalorder %s22, 1
    %p113 = por %p111, %p112
    %p115 = scmp.ne.s32.totalorder %s100, %s114
    %p116 = scmp.eq.s32.totalorder %s22, 0
    %p117 = por %p115, %p116
    %s119 = sadd.s32 %s118, 1
    %p122 = scmp.eq.s32.totalorder %s16, 1
    %p123 = scmp.ne.s32.totalorder %s118, %s120
    %p124 = scmp.eq.s32.totalorder %s16, 0
    %p125 = por %p123, %p124
    %p126 = scmp.ne.s32.totalorder %s118, %s120
    %p127 = scmp.eq.s32.totalorder %s21, 1
    %p128 = por %p126, %p127
    %p129 = scmp.ne.s32.totalorder %s120, %s121
    %p130 = scmp.eq.s32.totalorder %s21, 0
    %p131 = por %p129, %p130
    %p132 = scmp.ne.s32.totalorder %s120, %s121
    %p133 = scmp.eq.s32.totalorder %s22, 1
    %p134 = por %p132, %p133
    %p136 = scmp.ne.s32.totalorder %s121, %s135
    %p137 = scmp.eq.s32.totalorder %s22, 0
    %p138 = por %p136, %p137
    %s140 = sadd.s32 %s139, 1
    %p143 = scmp.eq.s32.totalorder %s16, 1
    %p144 = scmp.ne.s32.totalorder %s139, %s141
    %p145 = scmp.eq.s32.totalorder %s16, 0
    %p146 = por %p144, %p145
    %p147 = scmp.ne.s32.totalorder %s139, %s141
    %p148 = scmp.eq.s32.totalorder %s21, 1
    %p149 = por %p147, %p148
    %p150 = scmp.ne.s32.totalorder %s141, %s142
    %p151 = scmp.eq.s32.totalorder %s21, 0
    %p152 = por %p150, %p151
    %p153 = scmp.ne.s32.totalorder %s141, %s142
    %p154 = scmp.eq.s32.totalorder %s22, 1
    %p155 = por %p153, %p154
    %p157 = scmp.ne.s32.totalorder %s142, %s156
    %p158 = scmp.eq.s32.totalorder %s22, 0
    %p159 = por %p157, %p158
    %s161 = sadd.s32 %s160, 1
    %p164 = scmp.eq.s32.totalorder %s16, 1
    %p165 = scmp.ne.s32.totalorder %s160, %s162
    %p166 = scmp.eq.s32.totalorder %s16, 0
    %p167 = por %p165, %p166
    %p168 = scmp.ne.s32.totalorder %s160, %s162
    %p169 = scmp.eq.s32.totalorder %s21, 1
    %p170 = por %p168, %p169
    %p171 = scmp.ne.s32.totalorder %s162, %s163
    %p172 = scmp.eq.s32.totalorder %s21, 0
    %p173 = por %p171, %p172
    %p174 = scmp.ne.s32.totalorder %s162, %s163
    %p175 = scmp.eq.s32.totalorder %s22, 1
    %p176 = por %p174, %p175
    %p178 = scmp.ne.s32.totalorder %s163, %s177
    %p179 = scmp.eq.s32.totalorder %s22, 0
    %p180 = por %p178, %p179
    %s182 = sadd.s32 %s181, 1
    %p185 = scmp.eq.s32.totalorder %s16, 1
    %p186 = scmp.ne.s32.totalorder %s181, %s183
    %p187 = scmp.eq.s32.totalorder %s16, 0
    %p188 = por %p186, %p187
    %p189 = scmp.ne.s32.totalorder %s181, %s183
    %p190 = scmp.eq.s32.totalorder %s21, 1
    %p191 = por %p189, %p190
    %p192 = scmp.ne.s32.totalorder %s183, %s184
    %p193 = scmp.eq.s32.totalorder %s21, 0
    %p194 = por %p192, %p193
    %p195 = scmp.ne.s32.totalorder %s183, %s184
    %p196 = scmp.eq.s32.totalorder %s22, 1
    %p197 = por %p195, %p196
    %p199 = scmp.ne.s32.totalorder %s184, %s198
    %p200 = scmp.eq.s32.totalorder %s22, 0
    %p201 = por %p199, %p200
    %s203 = sadd.s32 %s202, 1
    %p206 = scmp.eq.s32.totalorder %s16, 1
    %p207 = scmp.ne.s32.totalorder %s202, %s204
    %p208 = scmp.eq.s32.totalorder %s16, 0
    %p209 = por %p207, %p208
    %p210 = scmp.ne.s32.totalorder %s202, %s204
    %p211 = scmp.eq.s32.totalorder %s21, 1
    %p212 = por %p210, %p211
    %p213 = scmp.ne.s32.totalorder %s204, %s205
    %p214 = scmp.eq.s32.totalorder %s21, 0
    %p215 = por %p213, %p214
    %p216 = scmp.ne.s32.totalorder %s204, %s205
    %p217 = scmp.eq.s32.totalorder %s22, 1
    %p218 = por %p216, %p217
    %p220 = scmp.ne.s32.totalorder %s205, %s219
    %p221 = scmp.eq.s32.totalorder %s22, 0
    %p222 = por %p220, %p221
    %s224 = sadd.s32 %s223, 1
    %p227 = scmp.eq.s32.totalorder %s16, 1
    %p228 = scmp.ne.s32.totalorder %s223, %s225
    %p229 = scmp.eq.s32.totalorder %s16, 0
    %p230 = por %p228, %p229
    %p231 = scmp.ne.s32.totalorder %s223, %s225
    %p232 = scmp.eq.s32.totalorder %s21, 1
    %p233 = por %p231, %p232
    %p234 = scmp.ne.s32.totalorder %s225, %s226
    %p235 = scmp.eq.s32.totalorder %s21, 0
    %p236 = por %p234, %p235
    %p237 = scmp.ne.s32.totalorder %s225, %s226
    %p238 = scmp.eq.s32.totalorder %s22, 1
    %p239 = por %p237, %p238
    %p241 = scmp.ne.s32.totalorder %s226, %s240
    %p242 = scmp.eq.s32.totalorder %s22, 0
    %p243 = por %p241, %p242
    %s244 = ssub.s32 %s16, %s23
    %p245 = scmp.eq.s32.totalorder %s244, 0
    %s247 = sadd.s32 %s246, 1
    %s248 = scalar_select %p245, %s246, %s247
    %p251 = pneg %p245
    %p252 = scmp.eq.s32.totalorder %s16, 1
    %p253 = por %p251, %p252
    %p254 = scmp.ne.s32.totalorder %s246, %s249
    %p255 = scmp.eq.s32.totalorder %s16, 0
    %p256 = por %p254, %p255
    %p257 = scmp.ne.s32.totalorder %s246, %s249
    %p258 = scmp.eq.s32.totalorder %s21, 1
    %p259 = por %p257, %p258
    %p260 = scmp.ne.s32.totalorder %s249, %s250
    %p261 = scmp.eq.s32.totalorder %s21, 0
    %p262 = por %p260, %p261
    %p263 = scmp.ne.s32.totalorder %s249, %s250
    %p264 = scmp.eq.s32.totalorder %s22, 1
    %p265 = por %p263, %p264
    %p267 = scmp.ne.s32.totalorder %s250, %s266
    %p268 = scmp.eq.s32.totalorder %s22, 0
    %p269 = por %p267, %p268
    %p270 = scmp.le.s32.totalorder 1, %s16
    %p271 = scmp.lt.s32.totalorder %s16, 3
    %p272 = pnand %p270, %p271
    %p273 = pneg %p272
    // Predicated region
    $region9: #{transformer_forward.11} parent=5 // pred_check
      _
    $region10: #{transformer_forward.11} parent=5 // pred_check_branch
      %275 = sbr.rel (%p272) target = $region12
    $region11: #{transformer_forward.11} parent=5 // pred_region
      %s276 = ssub.s32 %s16, 1
      // Predicated region
      $region13: #{transformer_forward.11} parent=11 // pred_check
        %p277 = pneg %p89
      $region14: #{transformer_forward.11} parent=11 // pred_check_branch
        %279 = sbr.rel (%p277) target = $region16
      $region15: #{transformer_forward.11} parent=11 // pred_region
        _
      $region16: #{transformer_forward.11} parent=11 // pred_fallthru
        _
      // Predicated region
      $region17: #{transformer_forward.11} parent=11 // pred_check
        %p280 = pneg %p110
      $region18: #{transformer_forward.11} parent=11 // pred_check_branch
        %282 = sbr.rel (%p280) target = $region20
      $region19: #{transformer_forward.11} parent=11 // pred_region
        _
      $region20: #{transformer_forward.11} parent=11 // pred_fallthru
        _
      // Predicated region
      $region21: #{transformer_forward.11} parent=11 // pred_check
        %p283 = pneg %p131
      $region22: #{transformer_forward.11} parent=11 // pred_check_branch
        %285 = sbr.rel (%p283) target = $region24
      $region23: #{transformer_forward.11} parent=11 // pred_region
        _
      $region24: #{transformer_forward.11} parent=11 // pred_fallthru
        _
      // Predicated region
      $region25: #{transformer_forward.11} parent=11 // pred_check
        %p286 = pneg %p152
      $region26: #{transformer_forward.11} parent=11 // pred_check_branch
        %288 = sbr.rel (%p286) target = $region28
      $region27: #{transformer_forward.11} parent=11 // pred_region
        _
      $region28: #{transformer_forward.11} parent=11 // pred_fallthru
        _
      // Predicated region
      $region29: #{transformer_forward.11} parent=11 // pred_check
        %p289 = pneg %p173
      $region30: #{transformer_forward.11} parent=11 // pred_check_branch
        %291 = sbr.rel (%p289) target = $region32
      $region31: #{transformer_forward.11} parent=11 // pred_region
        _
      $region32: #{transformer_forward.11} parent=11 // pred_fallthru
        _
      // Predicated region
      $region33: #{transformer_forward.11} parent=11 // pred_check
        %p292 = pneg %p194
      $region34: #{transformer_forward.11} parent=11 // pred_check_branch
        %294 = sbr.rel (%p292) target = $region36
      $region35: #{transformer_forward.11} parent=11 // pred_region
        _
      $region36: #{transformer_forward.11} parent=11 // pred_fallthru
        _
      // Predicated region
      $region37: #{transformer_forward.11} parent=11 // pred_check
        %p295 = pneg %p215
      $region38: #{transformer_forward.11} parent=11 // pred_check_branch
        %297 = sbr.rel (%p295) target = $region40
      $region39: #{transformer_forward.11} parent=11 // pred_region
        _
      $region40: #{transformer_forward.11} parent=11 // pred_fallthru
        _
      // Predicated region
      $region41: #{transformer_forward.11} parent=11 // pred_check
        %p298 = pneg %p236
      $region42: #{transformer_forward.11} parent=11 // pred_check_branch
        %300 = sbr.rel (%p298) target = $region44
      $region43: #{transformer_forward.11} parent=11 // pred_region
        _
      $region44: #{transformer_forward.11} parent=11 // pred_fallthru
        _
    $region12: #{transformer_forward.11} parent=5 // pred_fallthru
      _
    %p301 = scmp.lt.s32.totalorder %s16, 2
    // Predicated region
    $region45: #{transformer_forward.11} parent=5 // pred_check
      %p302 = pneg %p301
    $region46: #{transformer_forward.11} parent=5 // pred_check_branch
      %304 = sbr.rel (%p302) target = $region48
    $region47: #{transformer_forward.11} parent=5 // pred_region
      // Predicated region
      $region49: #{transformer_forward.11} parent=47 // pred_check
        %p305 = pneg %p36
      $region50: #{transformer_forward.11} parent=47 // pred_check_branch
        %307 = sbr.rel (%p305) target = $region52
      $region51: #{transformer_forward.11} parent=47 // pred_region
        %p308 = scmp.lt.s32.totalorder %s16, 1
        %s309 = scalar_select %p308, %s16, 1
        %s310 = smul.addr %s309, 8
        %s311 = scalar_lea.vmem %s0, %s310
      $region52: #{transformer_forward.11} parent=47 // pred_fallthru
        _
      // Predicated region
      $region53: #{transformer_forward.11} parent=47 // pred_check
        %p312 = pneg %p62
      $region54: #{transformer_forward.11} parent=47 // pred_check_branch
        %314 = sbr.rel (%p312) target = $region56
      $region55: #{transformer_forward.11} parent=47 // pred_region
        %p315 = scmp.lt.s32.totalorder %s16, 1
        %s316 = scalar_select %p315, %s16, 1
        %s317 = smul.addr %s316, 8
        %s318 = scalar_lea.vmem %s1, %s317
      $region56: #{transformer_forward.11} parent=47 // pred_fallthru
        _
    $region48: #{transformer_forward.11} parent=5 // pred_fallthru
      _
    %p319 = scmp.le.s32.totalorder 1, %s16
    %p320 = scmp.lt.s32.totalorder %s16, 3
    %p321 = pnand %p319, %p320
    %p322 = pneg %p321
    // Predicated region
    $region57: #{transformer_forward.11} parent=5 // pred_check
      _
    $region58: #{transformer_forward.11} parent=5 // pred_check_branch
      %324 = sbr.rel (%p321) target = $region60
    $region59: #{transformer_forward.11} parent=5 // pred_region
      %s325 = ssub.s32 %s16, 1
      %p326 = scmp.lt.s32.totalorder %s21, 1
      %s327 = scalar_select %p326, %s21, 1
      %s328 = smul.addr %s327, 8
      %s329 = scalar_lea.vmem %s0, %s328
      %p330 = pneg %p42
      %p331 = pneg %p39
      %p332 = scmp.lt.s32.totalorder %s21, 1
      %s333 = scalar_select %p332, %s21, 1
      %s334 = smul.addr %s333, 8
      %s335 = scalar_lea.vmem %s1, %s334
      %p336 = pneg %p68
      %p337 = pneg %p65
      %p338 = pneg %p89
      %p339 = pneg %p86
      %p340 = pneg %p110
      %p341 = pneg %p107
      %p342 = pneg %p131
      %p343 = pneg %p128
      %p344 = pneg %p152
      %p345 = pneg %p149
      %p346 = pneg %p173
      %p347 = pneg %p170
      %p348 = pneg %p194
      %p349 = pneg %p191
      %p350 = pneg %p215
      %p351 = pneg %p212
      %p352 = pneg %p236
      %p353 = pneg %p233
      %p354 = pneg %p262
      %p355 = pneg %p259
      %p356 = scmp.lt.s32.totalorder %s21, 1
      %s357 = scalar_select %p356, %s21, 1
      %s358 = smul.addr %s357, 8
      %s359 = scalar_lea.vmem %s10, %s358
      %p360 = scmp.lt.s32.totalorder %s21, 1
      %s361 = scalar_select %p360, %s21, 1
      %s362 = smul.addr %s361, 8
      %s363 = scalar_lea.vmem %s0, %s362
      %p364 = scmp.lt.s32.totalorder %s21, 1
      %s365 = scalar_select %p364, %s21, 1
      %s366 = smul.addr %s365, 8
      %s367 = scalar_lea.vmem %s1, %s366
      %p368 = scmp.lt.s32.totalorder %s21, 1
      %s369 = scalar_select %p368, %s21, 1
      %s370 = smul.addr %s369, 8
      %s371 = scalar_lea.vmem %s10, %s370
      %v373 = vld [vmem:[%s363] sm:$0xff]
      %v374 = vld [vmem:[%s367] sm:$0xff]
      %v375 = vld [vmem:[%s2] sm:$0x1]
      %v376 = vld [vmem:[%s3] sm:$0x1]
      %vm377 = vcmask 261120
      %v378 = vsel %vm377, %v373, 0.0
      %379 = vadd.xlane.f32.xlu0 %v378
      %v380 = vpop.xlane.xlu0 %379
      %v381 = vrcp.pop 32.0
      %v382 = vmul.f32 32.0, %v381
      %v383 = vsub.f32 1.0, %v382
      %v384 = vmul.f32 %v381, %v383
      %v385 = vadd.f32 %v381, %v384
      %vm386 = vweird.f32 %v381
      %v387 = vsel %vm386, %v381, %v385
      %v388 = vmul.f32 %v380, %v387
      %v389 = vsub.f32 %v373, %v388
      %v390 = vmul.f32 %v389, %v389
      %v391 = vsel %vm377, %v390, 0.0
      %392 = vadd.xlane.f32.xlu0 %v391
      %v393 = vpop.xlane.xlu0 %392
      %v394 = vmul.f32 %v393, %v387
      %v395 = vadd.f32 %v394, 1e-05
      %v396 = vrsqrt.pop %v395
      %v397 = vmul.f32 %v396, %v395
      %v398 = vmul.f32 %v397, %v396
      %v399 = vmul.f32 0.5, %v398
      %v400 = vsub.f32 1.5, %v399
      %v401 = vmul.f32 %v396, %v400
      %vm402 = vweird.f32 %v395
      %vm403 = vweird.f32 %v396
      %vm404 = vmor %vm402, %vm403
      %v405 = vsel %vm404, %v396, %v401
      %v406 = vmul.f32 %v389, %v405
      %v408 = vperm.slane %v375, 0
      %v410 = vmul.f32 %v406, %v408
      %v412 = vperm.slane %v376, 0
      %v414 = vadd.f32 %v410, %v412
      %v415 = vpack.c.bf16 %v414, %v414
      %v416 = vld [vmem:[%s4] sm:$0x1]
      %v417 = vld [vmem:[%s5] sm:$0x1]
      %v418 = vsel %vm377, %v374, 0.0
      %419 = vadd.xlane.f32.xlu0 %v418
      %v420 = vpop.xlane.xlu0 %419
      %v421 = vmul.f32 %v420, %v387
      %v422 = vsub.f32 %v374, %v421
      %v423 = vmul.f32 %v422, %v422
      %v424 = vsel %vm377, %v423, 0.0
      %425 = vadd.xlane.f32.xlu0 %v424
      %v426 = vpop.xlane.xlu0 %425
      %v427 = vmul.f32 %v426, %v387
      %v428 = vadd.f32 %v427, 1e-05
      %v429 = vrsqrt.pop %v428
      %v430 = vmul.f32 %v429, %v428
      %v431 = vmul.f32 %v430, %v429
      %v432 = vmul.f32 0.5, %v431
      %v433 = vsub.f32 1.5, %v432
      %v434 = vmul.f32 %v429, %v433
      %vm435 = vweird.f32 %v428
      %vm436 = vweird.f32 %v429
      %vm437 = vmor %vm435, %vm436
      %v438 = vsel %vm437, %v429, %v434
      %v439 = vmul.f32 %v422, %v438
      %v441 = vperm.slane %v416, 0
      %v443 = vmul.f32 %v439, %v441
      %v445 = vperm.slane %v417, 0
      %v447 = vadd.f32 %v443, %v445
      %v448 = vpack.c.bf16 %v447, %v447
      %v449 = vld [vmem:[%s6] sm:$0xf]
      %v450 = vld [vmem:[%s6 + $0x4] sm:$0xf]
      %v451 = vld [vmem:[%s6 + $0x8] sm:$0xf]
      %v452 = vld [vmem:[%s6 + $0xc] sm:$0xf]
      %v457 = vunpack.c.l.b16 %v449
      %v458 = vunpack.c.l.b16 %v450
      %v459 = vunpack.c.l.b16 %v451
      %v460 = vunpack.c.l.b16 %v452
      %v461 = vpack.c.b16 %v458, %v457
      %v462 = vpack.c.b16 %v460, %v459
      %v466 = vsel %vm377, %v415, 0
      %468 = vmatpush.bf16.msra.mxu0 0
      %469 = vmatpush.bf16.msra.mxu0 0
      %470 = vmatpush.bf16.msra.mxu0 0
      %471 = vmatpush.bf16.msra.mxu0 0
      %472 = vmatpush.bf16.msra.mxu0 0
      %473 = vmatpush.bf16.msra.mxu0 0
      %474 = vmatpush.bf16.msra.mxu0 %v462
      %475 = vmatpush.bf16.msra.mxu0 %v461
      %476 = vmatmul.bf16.gmra.mxu0 %v466
      %v477 = vpop.f32.mrf.mxu0
      %v478 = vadd.f32 0.0, %v477
      %v479 = vpop.f32.mrf.mxu0
      %480 = vdwg.mxu0
      %v481 = vld [vmem:[%s7] sm:$0xf]
      %v482 = vld [vmem:[%s7 + $0x4] sm:$0xf]
      %v483 = vld [vmem:[%s7 + $0x8] sm:$0xf]
      %v484 = vld [vmem:[%s7 + $0xc] sm:$0xf]
      %v489 = vunpack.c.l.b16 %v481
      %v490 = vunpack.c.l.b16 %v482
      %v491 = vunpack.c.l.b16 %v483
      %v492 = vunpack.c.l.b16 %v484
      %v493 = vpack.c.b16 %v490, %v489
      %v494 = vpack.c.b16 %v492, %v491
      %v498 = vsel %vm377, %v448, 0
      %500 = vmatpush.bf16.msra.mxu0 0
      %501 = vmatpush.bf16.msra.mxu0 0
      %502 = vmatpush.bf16.msra.mxu0 0
      %503 = vmatpush.bf16.msra.mxu0 0
      %504 = vmatpush.bf16.msra.mxu0 0
      %505 = vmatpush.bf16.msra.mxu0 0
      %506 = vmatpush.bf16.msra.mxu0 %v494
      %507 = vmatpush.bf16.msra.mxu0 %v493
      %508 = vmatmul.bf16.gmra.mxu0 %v498
      %v509 = vpop.f32.mrf.mxu0
      %v510 = vadd.f32 0.0, %v509
      %v511 = vpop.f32.mrf.mxu0
      %512 = vdwg.mxu0
      %v513 = vld [vmem:[%s8] sm:$0xf]
      %v514 = vld [vmem:[%s8 + $0x4] sm:$0xf]
      %v515 = vld [vmem:[%s8 + $0x8] sm:$0xf]
      %v516 = vld [vmem:[%s8 + $0xc] sm:$0xf]
      %v521 = vunpack.c.l.b16 %v513
      %v522 = vunpack.c.l.b16 %v514
      %v523 = vunpack.c.l.b16 %v515
      %v524 = vunpack.c.l.b16 %v516
      %v525 = vpack.c.b16 %v522, %v521
      %v526 = vpack.c.b16 %v524, %v523
      %529 = vmatpush.bf16.msra.mxu0 0
      %530 = vmatpush.bf16.msra.mxu0 0
      %531 = vmatpush.bf16.msra.mxu0 0
      %532 = vmatpush.bf16.msra.mxu0 0
      %533 = vmatpush.bf16.msra.mxu0 0
      %534 = vmatpush.bf16.msra.mxu0 0
      %535 = vmatpush.bf16.msra.mxu0 %v526
      %536 = vmatpush.bf16.msra.mxu0 %v525
      %537 = vmatmul.bf16.gmra.mxu0 %v498
      %v538 = vpop.f32.mrf.mxu0
      %v539 = vadd.f32 0.0, %v538
      %v540 = vpop.f32.mrf.mxu0
      %541 = vdwg.mxu0
      %v542 = vpack.c.bf16 %v478, %v478
      %v543 = vpack.c.bf16 %v510, %v510
      %v544 = vpack.c.bf16 %v539, %v539
      %vm545 = vcmask 64512
      %v547 = vsel %vm545, %v542, 0
      %v550 = vsel %vm545, %v543, 0
      %552 = vmatpush.bf16.xpose.msra.mxu0 0
      %553 = vmatpush.bf16.xpose.msra.mxu0 0
      %554 = vmatpush.bf16.xpose.msra.mxu0 0
      %555 = vmatpush.bf16.xpose.msra.mxu0 0
      %556 = vmatpush.bf16.xpose.msra.mxu0 0
      %557 = vmatpush.bf16.xpose.msra.mxu0 0
      %558 = vmatpush.bf16.xpose.msra.mxu0 0
      %559 = vmatpush.bf16.xpose.msra.mxu0 %v550
      %560 = vmatmul.bf16.gmra.mxu0 %v547
      %v561 = vpop.f32.mrf.mxu0
      %v562 = vadd.f32 0.0, %v561
      %v563 = vpop.f32.mrf.mxu0
      %564 = vdwg.mxu0
      %v565 = vmul.f32 %v562, 0.35355338
      %v566 = vsel %vm545, %v565, -inf
      %567 = vmax.xlane.f32.xlu0 %v566
      %v568 = vpop.xlane.xlu0 %567
      %v569 = vsub.f32 %v565, %v568
      %v570 = vmul.f32 %v569, 1.442695
      %v571 = vpow.pop %v570
      %v572 = vsel %vm545, %v571, 0.0
      %573 = vadd.xlane.f32.xlu0 %v572
      %v574 = vpop.xlane.xlu0 %573
      %v575 = vrcp.pop %v574
      %v576 = vmul.f32 %v571, %v575
      %v577 = vpack.c.bf16 %v576, %v576
      %v579 = vsel %vm545, %v577, 0
      %vm581 = vcmask 1043456
      %v583 = vsel %vm581, %v544, 0
      %585 = vmatpush.bf16.msra.mxu0 0
      %586 = vmatpush.bf16.msra.mxu0 0
      %587 = vmatpush.bf16.msra.mxu0 0
      %588 = vmatpush.bf16.msra.mxu0 0
      %589 = vmatpush.bf16.msra.mxu0 0
      %590 = vmatpush.bf16.msra.mxu0 0
      %591 = vmatpush.bf16.msra.mxu0 0
      %592 = vmatpush.bf16.msra.mxu0 %v583
      %593 = vmatmul.bf16.gmra.mxu0 %v579
      %v594 = vpop.f32.mrf.mxu0
      %v595 = vadd.f32 0.0, %v594
      %v596 = vpop.f32.mrf.mxu0
      %597 = vdwg.mxu0
      %v598 = vpack.c.bf16 %v595, %v595
      %v599 = vld [vmem:[%s9] sm:$0xf]
      %v601 = vsel %vm545, %v598, 0
      %v604 = vsel %vm581, %v599, 0
      %606 = vmatpush.bf16.msra.mxu0 0
      %607 = vmatpush.bf16.msra.mxu0 0
      %608 = vmatpush.bf16.msra.mxu0 0
      %609 = vmatpush.bf16.msra.mxu0 0
      %610 = vmatpush.bf16.msra.mxu0 0
      %611 = vmatpush.bf16.msra.mxu0 0
      %612 = vmatpush.bf16.msra.mxu0 0
      %613 = vmatpush.bf16.msra.mxu0 %v604
      %614 = vmatmul.bf16.gmra.mxu0 %v601
      %v615 = vpop.f32.mrf.mxu0
      %v616 = vadd.f32 0.0, %v615
      %v617 = vpop.f32.mrf.mxu0
      %618 = vdwg.mxu0
      %v619 = vadd.f32 %v373, %v616
      %621 = vrot.lane.b32.xlu0 %v542, 120
      %v622 = vpop.permute.xlu0 %621
      %624 = vrot.lane.b32.xlu0 %v543, 120
      %v625 = vpop.permute.xlu0 %624
      %v627 = vsel %vm545, %v622, 0
      %v630 = vsel %vm545, %v625, 0
      %632 = vmatpush.bf16.xpose.msra.mxu0 0
      %633 = vmatpush.bf16.xpose.msra.mxu0 0
      %634 = vmatpush.bf16.xpose.msra.mxu0 0
      %635 = vmatpush.bf16.xpose.msra.mxu0 0
      %636 = vmatpush.bf16.xpose.msra.mxu0 0
      %637 = vmatpush.bf16.xpose.msra.mxu0 0
      %638 = vmatpush.bf16.xpose.msra.mxu0 0
      %639 = vmatpush.bf16.xpose.msra.mxu0 %v630
      %640 = vmatmul.bf16.gmra.mxu0 %v627
      %v641 = vpop.f32.mrf.mxu0
      %v642 = vadd.f32 0.0, %v641
      %v643 = vpop.f32.mrf.mxu0
      %644 = vdwg.mxu0
      %v645 = vmul.f32 %v642, 0.35355338
      %v646 = vsel %vm545, %v645, -inf
      %647 = vmax.xlane.f32.xlu0 %v646
      %v648 = vpop.xlane.xlu0 %647
      %v649 = vsub.f32 %v645, %v648
      %v650 = vmul.f32 %v649, 1.442695
      %v651 = vpow.pop %v650
      %v652 = vsel %vm545, %v651, 0.0
      %653 = vadd.xlane.f32.xlu0 %v652
      %v654 = vpop.xlane.xlu0 %653
      %v655 = vrcp.pop %v654
      %v656 = vmul.f32 %v651, %v655
      %v657 = vpack.c.bf16 %v656, %v656
      %659 = vrot.lane.b32.xlu0 %v544, 120
      %v660 = vpop.permute.xlu0 %659
      %v662 = vsel %vm545, %v657, 0
      %v665 = vsel %vm581, %v660, 0
      %667 = vmatpush.bf16.msra.mxu0 0
      %668 = vmatpush.bf16.msra.mxu0 0
      %669 = vmatpush.bf16.msra.mxu0 0
      %670 = vmatpush.bf16.msra.mxu0 0
      %671 = vmatpush.bf16.msra.mxu0 0
      %672 = vmatpush.bf16.msra.mxu0 0
      %673 = vmatpush.bf16.msra.mxu0 0
      %674 = vmatpush.bf16.msra.mxu0 %v665
      %675 = vmatmul.bf16.gmra.mxu0 %v662
      %v676 = vpop.f32.mrf.mxu0
      %v677 = vadd.f32 0.0, %v676
      %v678 = vpop.f32.mrf.mxu0
      %679 = vdwg.mxu0
      %v680 = vpack.c.bf16 %v677, %v677
      %s681 = scalar_lea.vmem %s9, 4
      %v682 = vld [vmem:[%s681] sm:$0xf]
      %v684 = vsel %vm545, %v680, 0
      %v687 = vsel %vm581, %v682, 0
      %689 = vmatpush.bf16.msra.mxu0 0
      %690 = vmatpush.bf16.msra.mxu0 0
      %691 = vmatpush.bf16.msra.mxu0 0
      %692 = vmatpush.bf16.msra.mxu0 0
      %693 = vmatpush.bf16.msra.mxu0 0
      %694 = vmatpush.bf16.msra.mxu0 0
      %695 = vmatpush.bf16.msra.mxu0 0
      %696 = vmatpush.bf16.msra.mxu0 %v687
      %697 = vmatmul.bf16.gmra.mxu0 %v684
      %v698 = vpop.f32.mrf.mxu0
      %v699 = vadd.f32 0.0, %v698
      %v700 = vpop.f32.mrf.mxu0
      %701 = vdwg.mxu0
      %v702 = vadd.f32 %v619, %v699
      %703 = vrot.lane.b32.xlu0 %v542, 112
      %v704 = vpop.permute.xlu0 %703
      %705 = vrot.lane.b32.xlu0 %v543, 112
      %v706 = vpop.permute.xlu0 %705
      %v708 = vsel %vm545, %v704, 0
      %v711 = vsel %vm545, %v706, 0
      %713 = vmatpush.bf16.xpose.msra.mxu0 0
      %714 = vmatpush.bf16.xpose.msra.mxu0 0
      %715 = vmatpush.bf16.xpose.msra.mxu0 0
      %716 = vmatpush.bf16.xpose.msra.mxu0 0
      %717 = vmatpush.bf16.xpose.msra.mxu0 0
      %718 = vmatpush.bf16.xpose.msra.mxu0 0
      %719 = vmatpush.bf16.xpose.msra.mxu0 0
      %720 = vmatpush.bf16.xpose.msra.mxu0 %v711
      %721 = vmatmul.bf16.gmra.mxu0 %v708
      %v722 = vpop.f32.mrf.mxu0
      %v723 = vadd.f32 0.0, %v722
      %v724 = vpop.f32.mrf.mxu0
      %725 = vdwg.mxu0
      %v726 = vmul.f32 %v723, 0.35355338
      %v727 = vsel %vm545, %v726, -inf
      %728 = vmax.xlane.f32.xlu0 %v727
      %v729 = vpop.xlane.xlu0 %728
      %v730 = vsub.f32 %v726, %v729
      %v731 = vmul.f32 %v730, 1.442695
      %v732 = vpow.pop %v731
      %v733 = vsel %vm545, %v732, 0.0
      %734 = vadd.xlane.f32.xlu0 %v733
      %v735 = vpop.xlane.xlu0 %734
      %v736 = vrcp.pop %v735
      %v737 = vmul.f32 %v732, %v736
      %v738 = vpack.c.bf16 %v737, %v737
      %739 = vrot.lane.b32.xlu0 %v544, 112
      %v740 = vpop.permute.xlu0 %739
      %v742 = vsel %vm545, %v738, 0
      %v745 = vsel %vm581, %v740, 0
      %747 = vmatpush.bf16.msra.mxu0 0
      %748 = vmatpush.bf16.msra.mxu0 0
      %749 = vmatpush.bf16.msra.mxu0 0
      %750 = vmatpush.bf16.msra.mxu0 0
      %751 = vmatpush.bf16.msra.mxu0 0
      %752 = vmatpush.bf16.msra.mxu0 0
      %753 = vmatpush.bf16.msra.mxu0 0
      %754 = vmatpush.bf16.msra.mxu0 %v745
      %755 = vmatmul.bf16.gmra.mxu0 %v742
      %v756 = vpop.f32.mrf.mxu0
      %v757 = vadd.f32 0.0, %v756
      %v758 = vpop.f32.mrf.mxu0
      %759 = vdwg.mxu0
      %v760 = vpack.c.bf16 %v757, %v757
      %s761 = scalar_lea.vmem %s9, 8
      %v762 = vld [vmem:[%s761] sm:$0xf]
      %v764 = vsel %vm545, %v760, 0
      %v767 = vsel %vm581, %v762, 0
      %769 = vmatpush.bf16.msra.mxu0 0
      %770 = vmatpush.bf16.msra.mxu0 0
      %771 = vmatpush.bf16.msra.mxu0 0
      %772 = vmatpush.bf16.msra.mxu0 0
      %773 = vmatpush.bf16.msra.mxu0 0
      %774 = vmatpush.bf16.msra.mxu0 0
      %775 = vmatpush.bf16.msra.mxu0 0
      %776 = vmatpush.bf16.msra.mxu0 %v767
      %777 = vmatmul.bf16.gmra.mxu0 %v764
      %v778 = vpop.f32.mrf.mxu0
      %v779 = vadd.f32 0.0, %v778
      %v780 = vpop.f32.mrf.mxu0
      %781 = vdwg.mxu0
      %v782 = vadd.f32 %v702, %v779
      %783 = vrot.lane.b32.xlu0 %v542, 104
      %v784 = vpop.permute.xlu0 %783
      %785 = vrot.lane.b32.xlu0 %v543, 104
      %v786 = vpop.permute.xlu0 %785
      %v788 = vsel %vm545, %v784, 0
      %v791 = vsel %vm545, %v786, 0
      %793 = vmatpush.bf16.xpose.msra.mxu0 0
      %794 = vmatpush.bf16.xpose.msra.mxu0 0
      %795 = vmatpush.bf16.xpose.msra.mxu0 0
      %796 = vmatpush.bf16.xpose.msra.mxu0 0
      %797 = vmatpush.bf16.xpose.msra.mxu0 0
      %798 = vmatpush.bf16.xpose.msra.mxu0 0
      %799 = vmatpush.bf16.xpose.msra.mxu0 0
      %800 = vmatpush.bf16.xpose.msra.mxu0 %v791
      %801 = vmatmul.bf16.gmra.mxu0 %v788
      %v802 = vpop.f32.mrf.mxu0
      %v803 = vadd.f32 0.0, %v802
      %v804 = vpop.f32.mrf.mxu0
      %805 = vdwg.mxu0
      %v806 = vmul.f32 %v803, 0.35355338
      %v807 = vsel %vm545, %v806, -inf
      %808 = vmax.xlane.f32.xlu0 %v807
      %v809 = vpop.xlane.xlu0 %808
      %v810 = vsub.f32 %v806, %v809
      %v811 = vmul.f32 %v810, 1.442695
      %v812 = vpow.pop %v811
      %v813 = vsel %vm545, %v812, 0.0
      %814 = vadd.xlane.f32.xlu0 %v813
      %v815 = vpop.xlane.xlu0 %814
      %v816 = vrcp.pop %v815
      %v817 = vmul.f32 %v812, %v816
      %v818 = vpack.c.bf16 %v817, %v817
      %819 = vrot.lane.b32.xlu0 %v544, 104
      %v820 = vpop.permute.xlu0 %819
      %v822 = vsel %vm545, %v818, 0
      %v825 = vsel %vm581, %v820, 0
      %827 = vmatpush.bf16.msra.mxu0 0
      %828 = vmatpush.bf16.msra.mxu0 0
      %829 = vmatpush.bf16.msra.mxu0 0
      %830 = vmatpush.bf16.msra.mxu0 0
      %831 = vmatpush.bf16.msra.mxu0 0
      %832 = vmatpush.bf16.msra.mxu0 0
      %833 = vmatpush.bf16.msra.mxu0 0
      %834 = vmatpush.bf16.msra.mxu0 %v825
      %835 = vmatmul.bf16.gmra.mxu0 %v822
      %v836 = vpop.f32.mrf.mxu0
      %v837 = vadd.f32 0.0, %v836
      %v838 = vpop.f32.mrf.mxu0
      %839 = vdwg.mxu0
      %v840 = vpack.c.bf16 %v837, %v837
      %s841 = scalar_lea.vmem %s9, 12
      %v842 = vld [vmem:[%s841] sm:$0xf]
      %v844 = vsel %vm545, %v840, 0
      %v847 = vsel %vm581, %v842, 0
      %849 = vmatpush.bf16.msra.mxu0 0
      %850 = vmatpush.bf16.msra.mxu0 0
      %851 = vmatpush.bf16.msra.mxu0 0
      %852 = vmatpush.bf16.msra.mxu0 0
      %853 = vmatpush.bf16.msra.mxu0 0
      %854 = vmatpush.bf16.msra.mxu0 0
      %855 = vmatpush.bf16.msra.mxu0 0
      %856 = vmatpush.bf16.msra.mxu0 %v847
      %857 = vmatmul.bf16.gmra.mxu0 %v844
      %v858 = vpop.f32.mrf.mxu0
      %v859 = vadd.f32 0.0, %v858
      %v860 = vpop.f32.mrf.mxu0
      %861 = vdwg.mxu0
      %v862 = vadd.f32 %v782, %v859
      %863 = vst.msk [vmem:[%s371] sm:$0xff] %vm377, %v862
      %p864 = scmp.lt.s32.totalorder %s21, 1
      %s865 = scalar_select %p864, %s21, 1
      %s866 = smul.addr %s865, 8
      %s867 = scalar_lea.vmem %s10, %s866
      // Predicated region
      $region61: #{transformer_forward.11} parent=59 // pred_check
        %p868 = pneg %p259
      $region62: #{transformer_forward.11} parent=59 // pred_check_branch
        %870 = sbr.rel (%p868) target = $region64
      $region63: #{transformer_forward.11} parent=59 // pred_region
        _
      $region64: #{transformer_forward.11} parent=59 // pred_fallthru
        _
    $region60: #{transformer_forward.11} parent=5 // pred_fallthru
      _
    %p871 = scmp.le.s32.totalorder 2, %s16
    // Predicated region
    $region65: #{transformer_forward.11} parent=5 // pred_check
      %p872 = pneg %p871
    $region66: #{transformer_forward.11} parent=5 // pred_check_branch
      %874 = sbr.rel (%p872) target = $region68
    $region67: #{transformer_forward.11} parent=5 // pred_region
      %s875 = ssub.s32 %s16, 2
      // Predicated region
      $region69: #{transformer_forward.11} parent=67 // pred_check
        %p876 = pneg %p265
      $region70: #{transformer_forward.11} parent=67 // pred_check_branch
        %878 = sbr.rel (%p876) target = $region72
      $region71: #{transformer_forward.11} parent=67 // pred_region
        %p879 = scmp.lt.s32.totalorder %s22, 1
        %s880 = scalar_select %p879, %s22, 1
        %s881 = smul.addr %s880, 8
        %s882 = scalar_lea.vmem %s10, %s881
      $region72: #{transformer_forward.11} parent=67 // pred_fallthru
        _
    $region68: #{transformer_forward.11} parent=5 // pred_fallthru
      _
  $region6: #{transformer_forward.11} parent=0 // loop_footer
    %s20 = sadd.s32 1, %s16
  $region7: #{transformer_forward.11} parent=0 // loop_footer_branch
    %15 = sbr.rel target = $region3
  $region8: #{transformer_forward.11} parent=0 // loop_exit
    _

// kernel: transformer_forward.15
$region0: #{transformer_forward.15}
  #allocation0 [shape = 'u32[]', space=smem, size = 0x4, offset = 0x4, fixed_abs, tag = 'smem constant byte address 0x4 - core index']
  #allocation1 [shape = 'u32[72,128]{1,0:T(1,128)}', space=vmem, size = 0x9000, scoped, tag = 'internal scratch']
  %s0 = inlined_call_operand.vmem [shape: f32[2,8,32], index: 0, kind: input, shape index: {}, may-alias: {0,1}]
  %s1 = inlined_call_operand.vmem [shape: f32[2,8,32], index: 1, kind: input, shape index: {}, may-alias: {0,1}]
  %s2 = inlined_call_operand.hbm [shape: f32[1,32], index: 2, kind: input, shape index: {}, may-alias: {2,4}]
  %s3 = inlined_call_operand.hbm [shape: f32[1,32], index: 3, kind: input, shape index: {}, may-alias: {3,5}]
  %s4 = inlined_call_operand.hbm [shape: f32[1,32], index: 4, kind: input, shape index: {}, may-alias: {2,4}]
  %s5 = inlined_call_operand.hbm [shape: f32[1,32], index: 5, kind: input, shape index: {}, may-alias: {3,5}]
  %s6 = inlined_call_operand.vmem [shape: bf16[32,32], index: 6, kind: input, shape index: {}]
  %s7 = inlined_call_operand.vmem [shape: bf16[32,32], index: 7, kind: input, shape index: {}]
  %s8 = inlined_call_operand.vmem [shape: bf16[32,32], index: 8, kind: input, shape index: {}]
  %s9 = inlined_call_operand.vmem [shape: bf16[4,8,32], index: 9, kind: input, shape index: {}]
  %s10 = inlined_call_operand.vmem [shape: f32[2,8,32], index: 10, kind: output, shape index: {}]
  %s11 = sld [smem:[#allocation0]]
  $region89: #{transformer_forward.15} parent=0
    _
  %s13 = ssub.s32 1, %s11
  %s14 = scalar_select 0, %s13, %s11
  $region1: #{transformer_forward.15} parent=0
    #allocation2 [shape = 'u8[512]{0}', space=vmem, size = 0x400, scoped, tag = 'input window, operand 2, single buffered']
    #allocation3 [shape = 's32[2]{0}', space=sflag, size = 0x8, scoped, tag = 'scoped memory for transformer_forward.15']
    #allocation4 [shape = 'u8[512]{0}', space=vmem, size = 0x400, scoped, tag = 'input window, operand 3, single buffered']
    #allocation5 [shape = 's32[1]{0}', space=sflag, size = 0x4, scoped, tag = 'scoped memory for transformer_forward.15']
    #allocation6 [shape = 'u8[512]{0}', space=vmem, size = 0x400, scoped, tag = 'input window, operand 4, single buffered']
    #allocation7 [shape = 'u8[512]{0}', space=vmem, size = 0x400, scoped, tag = 'input window, operand 5, single buffered']
    #allocation8 [shape = 's32[1]{0}', space=sflag, size = 0x4, scoped, tag = 'scoped memory for transformer_forward.15']
    %15 = vsyncpa [#allocation3], 0
    %16 = vsyncpa [#allocation5], 0
    %17 = vsyncpa [#allocation8], 0
    loop: start=0, step=1, limit=4
    $region2: #{transformer_forward.15} parent=1 // loop_pre_header
      _
    $region3: #{transformer_forward.15} parent=1 // loop_header
      %s19 = sphi 0, %s23
      %p20 = scmp.ge.s32.totalorder %s19, 4
      %s29 = sphi 0, %s31
      %s32 = sphi 0, %s29
      %s33 = sphi 0, %s32
      %s49 = sphi 0, %s33
      %s55 = sphi 0, %s57
      %s58 = sphi 0, %s55
      %s59 = sphi 0, %s58
      %s75 = sphi 0, %s59
      %s79 = sphi 0, %s79
      %s81 = sphi 0, %s79
      %s82 = sphi 0, %s81
      %s96 = sphi 0, %s82
      %s100 = sphi 0, %s100
      %s102 = sphi 0, %s100
      %s103 = sphi 0, %s102
      %s117 = sphi 0, %s103
      %s121 = sphi 0, %s121
      %s123 = sphi 0, %s121
      %s124 = sphi 0, %s123
      %s138 = sphi 0, %s124
      %s142 = sphi 0, %s142
      %s144 = sphi 0, %s142
      %s145 = sphi 0, %s144
      %s159 = sphi 0, %s145
      %s163 = sphi 0, %s163
      %s165 = sphi 0, %s163
      %s166 = sphi 0, %s165
      %s180 = sphi 0, %s166
      %s184 = sphi 0, %s184
      %s186 = sphi 0, %s184
      %s187 = sphi 0, %s186
      %s201 = sphi 0, %s187
      %s205 = sphi 0, %s205
      %s207 = sphi 0, %s205
      %s208 = sphi 0, %s207
      %s222 = sphi 0, %s208
      %s226 = sphi 0, %s226
      %s228 = sphi 0, %s226
      %s229 = sphi 0, %s228
      %s243 = sphi 0, %s229
      %s249 = sphi 0, %s251
      %s252 = sphi 0, %s249
      %s253 = sphi 0, %s252
      %s269 = sphi 0, %s253
    $region4: #{transformer_forward.15} parent=1 // loop_header_branch
      %22 = sbr.rel (%p20) target = $region8
    $region5: #{transformer_forward.15} parent=1 // loop_body
      %s24 = ssub.s32 %s19, 1
      %s25 = ssub.s32 %s19, 2
      %s26 = sadd.s32 %s19, 1
      %s27 = ssub.s32 %s19, %s26
      %p28 = scmp.eq.s32.totalorder %s27, 0
      %s30 = sadd.s32 %s29, 1
      %s31 = scalar_select %p28, %s29, %s30
      %p34 = pneg %p28
      %p35 = scmp.eq.s32.totalorder %s19, 1
      %p36 = por %p34, %p35
      %p37 = scmp.ne.s32.totalorder %s29, %s32
      %p38 = scmp.eq.s32.totalorder %s19, 0
      %p39 = por %p37, %p38
      %p40 = scmp.ne.s32.totalorder %s29, %s32
      %p41 = scmp.eq.s32.totalorder %s24, 1
      %p42 = por %p40, %p41
      %p43 = scmp.ne.s32.totalorder %s32, %s33
      %p44 = scmp.eq.s32.totalorder %s24, 0
      %p45 = por %p43, %p44
      %p46 = scmp.ne.s32.totalorder %s32, %s33
      %p47 = scmp.eq.s32.totalorder %s25, 1
      %p48 = por %p46, %p47
      %p50 = scmp.ne.s32.totalorder %s33, %s49
      %p51 = scmp.eq.s32.totalorder %s25, 0
      %p52 = por %p50, %p51
      %s53 = ssub.s32 %s19, %s26
      %p54 = scmp.eq.s32.totalorder %s53, 0
      %s56 = sadd.s32 %s55, 1
      %s57 = scalar_select %p54, %s55, %s56
      %p60 = pneg %p54
      %p61 = scmp.eq.s32.totalorder %s19, 1
      %p62 = por %p60, %p61
      %p63 = scmp.ne.s32.totalorder %s55, %s58
      %p64 = scmp.eq.s32.totalorder %s19, 0
      %p65 = por %p63, %p64
      %p66 = scmp.ne.s32.totalorder %s55, %s58
      %p67 = scmp.eq.s32.totalorder %s24, 1
      %p68 = por %p66, %p67
      %p69 = scmp.ne.s32.totalorder %s58, %s59
      %p70 = scmp.eq.s32.totalorder %s24, 0
      %p71 = por %p69, %p70
      %p72 = scmp.ne.s32.totalorder %s58, %s59
      %p73 = scmp.eq.s32.totalorder %s25, 1
      %p74 = por %p72, %p73
      %p76 = scmp.ne.s32.totalorder %s59, %s75
      %p77 = scmp.eq.s32.totalorder %s25, 0
      %p78 = por %p76, %p77
      %s80 = sadd.s32 %s79, 1
      %p83 = scmp.eq.s32.totalorder %s19, 1
      %p84 = scmp.ne.s32.totalorder %s79, %s81
      %p85 = scmp.eq.s32.totalorder %s19, 0
      %p86 = por %p84, %p85
      %p87 = scmp.ne.s32.totalorder %s79, %s81
      %p88 = scmp.eq.s32.totalorder %s24, 1
      %p89 = por %p87, %p88
      %p90 = scmp.ne.s32.totalorder %s81, %s82
      %p91 = scmp.eq.s32.totalorder %s24, 0
      %p92 = por %p90, %p91
      %p93 = scmp.ne.s32.totalorder %s81, %s82
      %p94 = scmp.eq.s32.totalorder %s25, 1
      %p95 = por %p93, %p94
      %p97 = scmp.ne.s32.totalorder %s82, %s96
      %p98 = scmp.eq.s32.totalorder %s25, 0
      %p99 = por %p97, %p98
      %s101 = sadd.s32 %s100, 1
      %p104 = scmp.eq.s32.totalorder %s19, 1
      %p105 = scmp.ne.s32.totalorder %s100, %s102
      %p106 = scmp.eq.s32.totalorder %s19, 0
      %p107 = por %p105, %p106
      %p108 = scmp.ne.s32.totalorder %s100, %s102
      %p109 = scmp.eq.s32.totalorder %s24, 1
      %p110 = por %p108, %p109
      %p111 = scmp.ne.s32.totalorder %s102, %s103
      %p112 = scmp.eq.s32.totalorder %s24, 0
      %p113 = por %p111, %p112
      %p114 = scmp.ne.s32.totalorder %s102, %s103
      %p115 = scmp.eq.s32.totalorder %s25, 1
      %p116 = por %p114, %p115
      %p118 = scmp.ne.s32.totalorder %s103, %s117
      %p119 = scmp.eq.s32.totalorder %s25, 0
      %p120 = por %p118, %p119
      %s122 = sadd.s32 %s121, 1
      %p125 = scmp.eq.s32.totalorder %s19, 1
      %p126 = scmp.ne.s32.totalorder %s121, %s123
      %p127 = scmp.eq.s32.totalorder %s19, 0
      %p128 = por %p126, %p127
      %p129 = scmp.ne.s32.totalorder %s121, %s123
      %p130 = scmp.eq.s32.totalorder %s24, 1
      %p131 = por %p129, %p130
      %p132 = scmp.ne.s32.totalorder %s123, %s124
      %p133 = scmp.eq.s32.totalorder %s24, 0
      %p134 = por %p132, %p133
      %p135 = scmp.ne.s32.totalorder %s123, %s124
      %p136 = scmp.eq.s32.totalorder %s25, 1
      %p137 = por %p135, %p136
      %p139 = scmp.ne.s32.totalorder %s124, %s138
      %p140 = scmp.eq.s32.totalorder %s25, 0
      %p141 = por %p139, %p140
      %s143 = sadd.s32 %s142, 1
      %p146 = scmp.eq.s32.totalorder %s19, 1
      %p147 = scmp.ne.s32.totalorder %s142, %s144
      %p148 = scmp.eq.s32.totalorder %s19, 0
      %p149 = por %p147, %p148
      %p150 = scmp.ne.s32.totalorder %s142, %s144
      %p151 = scmp.eq.s32.totalorder %s24, 1
      %p152 = por %p150, %p151
      %p153 = scmp.ne.s32.totalorder %s144, %s145
      %p154 = scmp.eq.s32.totalorder %s24, 0
      %p155 = por %p153, %p154
      %p156 = scmp.ne.s32.totalorder %s144, %s145
      %p157 = scmp.eq.s32.totalorder %s25, 1
      %p158 = por %p156, %p157
      %p160 = scmp.ne.s32.totalorder %s145, %s159
      %p161 = scmp.eq.s32.totalorder %s25, 0
      %p162 = por %p160, %p161
      %s164 = sadd.s32 %s163, 1
      %p167 = scmp.eq.s32.totalorder %s19, 1
      %p168 = scmp.ne.s32.totalorder %s163, %s165
      %p169 = scmp.eq.s32.totalorder %s19, 0
      %p170 = por %p168, %p169
      %p171 = scmp.ne.s32.totalorder %s163, %s165
      %p172 = scmp.eq.s32.totalorder %s24, 1
      %p173 = por %p171, %p172
      %p174 = scmp.ne.s32.totalorder %s165, %s166
      %p175 = scmp.eq.s32.totalorder %s24, 0
      %p176 = por %p174, %p175
      %p177 = scmp.ne.s32.totalorder %s165, %s166
      %p178 = scmp.eq.s32.totalorder %s25, 1
      %p179 = por %p177, %p178
      %p181 = scmp.ne.s32.totalorder %s166, %s180
      %p182 = scmp.eq.s32.totalorder %s25, 0
      %p183 = por %p181, %p182
      %s185 = sadd.s32 %s184, 1
      %p188 = scmp.eq.s32.totalorder %s19, 1
      %p189 = scmp.ne.s32.totalorder %s184, %s186
      %p190 = scmp.eq.s32.totalorder %s19, 0
      %p191 = por %p189, %p190
      %p192 = scmp.ne.s32.totalorder %s184, %s186
      %p193 = scmp.eq.s32.totalorder %s24, 1
      %p194 = por %p192, %p193
      %p195 = scmp.ne.s32.totalorder %s186, %s187
      %p196 = scmp.eq.s32.totalorder %s24, 0
      %p197 = por %p195, %p196
      %p198 = scmp.ne.s32.totalorder %s186, %s187
      %p199 = scmp.eq.s32.totalorder %s25, 1
      %p200 = por %p198, %p199
      %p202 = scmp.ne.s32.totalorder %s187, %s201
      %p203 = scmp.eq.s32.totalorder %s25, 0
      %p204 = por %p202, %p203
      %s206 = sadd.s32 %s205, 1
      %p209 = scmp.eq.s32.totalorder %s19, 1
      %p210 = scmp.ne.s32.totalorder %s205, %s207
      %p211 = scmp.eq.s32.totalorder %s19, 0
      %p212 = por %p210, %p211
      %p213 = scmp.ne.s32.totalorder %s205, %s207
      %p214 = scmp.eq.s32.totalorder %s24, 1
      %p215 = por %p213, %p214
      %p216 = scmp.ne.s32.totalorder %s207, %s208
      %p217 = scmp.eq.s32.totalorder %s24, 0
      %p218 = por %p216, %p217
      %p219 = scmp.ne.s32.totalorder %s207, %s208
      %p220 = scmp.eq.s32.totalorder %s25, 1
      %p221 = por %p219, %p220
      %p223 = scmp.ne.s32.totalorder %s208, %s222
      %p224 = scmp.eq.s32.totalorder %s25, 0
      %p225 = por %p223, %p224
      %s227 = sadd.s32 %s226, 1
      %p230 = scmp.eq.s32.totalorder %s19, 1
      %p231 = scmp.ne.s32.totalorder %s226, %s228
      %p232 = scmp.eq.s32.totalorder %s19, 0
      %p233 = por %p231, %p232
      %p234 = scmp.ne.s32.totalorder %s226, %s228
      %p235 = scmp.eq.s32.totalorder %s24, 1
      %p236 = por %p234, %p235
      %p237 = scmp.ne.s32.totalorder %s228, %s229
      %p238 = scmp.eq.s32.totalorder %s24, 0
      %p239 = por %p237, %p238
      %p240 = scmp.ne.s32.totalorder %s228, %s229
      %p241 = scmp.eq.s32.totalorder %s25, 1
      %p242 = por %p240, %p241
      %p244 = scmp.ne.s32.totalorder %s229, %s243
      %p245 = scmp.eq.s32.totalorder %s25, 0
      %p246 = por %p244, %p245
      %s247 = ssub.s32 %s19, %s26
      %p248 = scmp.eq.s32.totalorder %s247, 0
      %s250 = sadd.s32 %s249, 1
      %s251 = scalar_select %p248, %s249, %s250
      %p254 = pneg %p248
      %p255 = scmp.eq.s32.totalorder %s19, 1
      %p256 = por %p254, %p255
      %p257 = scmp.ne.s32.totalorder %s249, %s252
      %p258 = scmp.eq.s32.totalorder %s19, 0
      %p259 = por %p257, %p258
      %p260 = scmp.ne.s32.totalorder %s249, %s252
      %p261 = scmp.eq.s32.totalorder %s24, 1
      %p262 = por %p260, %p261
      %p263 = scmp.ne.s32.totalorder %s252, %s253
      %p264 = scmp.eq.s32.totalorder %s24, 0
      %p265 = por %p263, %p264
      %p266 = scmp.ne.s32.totalorder %s252, %s253
      %p267 = scmp.eq.s32.totalorder %s25, 1
      %p268 = por %p266, %p267
      %p270 = scmp.ne.s32.totalorder %s253, %s269
      %p271 = scmp.eq.s32.totalorder %s25, 0
      %p272 = por %p270, %p271
      %p273 = scmp.le.s32.totalorder 1, %s19
      %p274 = scmp.lt.s32.totalorder %s19, 3
      %p275 = pnand %p273, %p274
      %p276 = pneg %p275
      // Predicated region
      $region9: #{transformer_forward.15} parent=5 // pred_check
        _
      $region10: #{transformer_forward.15} parent=5 // pred_check_branch
        %278 = sbr.rel (%p275) target = $region12
      $region11: #{transformer_forward.15} parent=5 // pred_region
        %s279 = ssub.s32 %s19, 1
        // Predicated region
        $region13: #{transformer_forward.15} parent=11 // pred_check
          %p280 = pneg %p92
        $region14: #{transformer_forward.15} parent=11 // pred_check_branch
          %282 = sbr.rel (%p280) target = $region16
        $region15: #{transformer_forward.15} parent=11 // pred_region
          %284 = vsyncadd [#allocation3], 0
          %s286 = sshll.u32 %s2, 4
          %s287 = int_to_ptr.hbm [resolvable:$true] %s286
          %s288 = sshll.u32 [#allocation2], 4
          %s289 = int_to_ptr.vmem [resolvable:$true] %s288
          %291 = dma.hbm_to_vmem [thread:$0]  %s287, 16, %s289, [#allocation3]
        $region16: #{transformer_forward.15} parent=11 // pred_fallthru
          _
        // Predicated region
        $region17: #{transformer_forward.15} parent=11 // pred_check
          %p292 = pneg %p113
        $region18: #{transformer_forward.15} parent=11 // pred_check_branch
          %294 = sbr.rel (%p292) target = $region20
        $region19: #{transformer_forward.15} parent=11 // pred_region
          %296 = vsyncadd [#allocation5], 0
          %s298 = sshll.u32 %s3, 4
          %s299 = int_to_ptr.hbm [resolvable:$true] %s298
          %s300 = sshll.u32 [#allocation4], 4
          %s301 = int_to_ptr.vmem [resolvable:$true] %s300
          %303 = dma.hbm_to_vmem [thread:$0]  %s299, 16, %s301, [#allocation5]
        $region20: #{transformer_forward.15} parent=11 // pred_fallthru
          _
        // Predicated region
        $region21: #{transformer_forward.15} parent=11 // pred_check
          %p304 = pneg %p134
        $region22: #{transformer_forward.15} parent=11 // pred_check_branch
          %306 = sbr.rel (%p304) target = $region24
        $region23: #{transformer_forward.15} parent=11 // pred_region
          %308 = vsyncadd [#allocation5], 0
          %s310 = sshll.u32 %s4, 4
          %s311 = int_to_ptr.hbm [resolvable:$true] %s310
          %s312 = sshll.u32 [#allocation6], 4
          %s313 = int_to_ptr.vmem [resolvable:$true] %s312
          %315 = dma.hbm_to_vmem [thread:$0]  %s311, 16, %s313, [#allocation5]
        $region24: #{transformer_forward.15} parent=11 // pred_fallthru
          _
        // Predicated region
        $region25: #{transformer_forward.15} parent=11 // pred_check
          %p316 = pneg %p155
        $region26: #{transformer_forward.15} parent=11 // pred_check_branch
          %318 = sbr.rel (%p316) target = $region28
        $region27: #{transformer_forward.15} parent=11 // pred_region
          %320 = vsyncadd [#allocation8], 0
          %s322 = sshll.u32 %s5, 4
          %s323 = int_to_ptr.hbm [resolvable:$true] %s322
          %s324 = sshll.u32 [#allocation7], 4
          %s325 = int_to_ptr.vmem [resolvable:$true] %s324
          %327 = dma.hbm_to_vmem [thread:$0]  %s323, 16, %s325, [#allocation8]
        $region28: #{transformer_forward.15} parent=11 // pred_fallthru
          _
        // Predicated region
        $region29: #{transformer_forward.15} parent=11 // pred_check
          %p328 = pneg %p176
        $region30: #{transformer_forward.15} parent=11 // pred_check_branch
          %330 = sbr.rel (%p328) target = $region32
        $region31: #{transformer_forward.15} parent=11 // pred_region
          _
        $region32: #{transformer_forward.15} parent=11 // pred_fallthru
          _
        // Predicated region
        $region33: #{transformer_forward.15} parent=11 // pred_check
          %p331 = pneg %p197
        $region34: #{transformer_forward.15} parent=11 // pred_check_branch
          %333 = sbr.rel (%p331) target = $region36
        $region35: #{transformer_forward.15} parent=11 // pred_region
          _
        $region36: #{transformer_forward.15} parent=11 // pred_fallthru
          _
        // Predicated region
        $region37: #{transformer_forward.15} parent=11 // pred_check
          %p334 = pneg %p218
        $region38: #{transformer_forward.15} parent=11 // pred_check_branch
          %336 = sbr.rel (%p334) target = $region40
        $region39: #{transformer_forward.15} parent=11 // pred_region
          _
        $region40: #{transformer_forward.15} parent=11 // pred_fallthru
          _
        // Predicated region
        $region41: #{transformer_forward.15} parent=11 // pred_check
          %p337 = pneg %p239
        $region42: #{transformer_forward.15} parent=11 // pred_check_branch
          %339 = sbr.rel (%p337) target = $region44
        $region43: #{transformer_forward.15} parent=11 // pred_region
          _
        $region44: #{transformer_forward.15} parent=11 // pred_fallthru
          _
      $region12: #{transformer_forward.15} parent=5 // pred_fallthru
        _
      %p340 = scmp.lt.s32.totalorder %s19, 2
      // Predicated region
      $region45: #{transformer_forward.15} parent=5 // pred_check
        %p341 = pneg %p340
      $region46: #{transformer_forward.15} parent=5 // pred_check_branch
        %343 = sbr.rel (%p341) target = $region48
      $region47: #{transformer_forward.15} parent=5 // pred_region
        // Predicated region
        $region49: #{transformer_forward.15} parent=47 // pred_check
          %p344 = pneg %p39
        $region50: #{transformer_forward.15} parent=47 // pred_check_branch
          %346 = sbr.rel (%p344) target = $region52
        $region51: #{transformer_forward.15} parent=47 // pred_region
          %p347 = scmp.lt.s32.totalorder %s19, 1
          %s348 = scalar_select %p347, %s19, 1
          %s349 = smul.addr %s348, 8
          %s350 = scalar_lea.vmem %s0, %s349
        $region52: #{transformer_forward.15} parent=47 // pred_fallthru
          _
        // Predicated region
        $region53: #{transformer_forward.15} parent=47 // pred_check
          %p351 = pneg %p65
        $region54: #{transformer_forward.15} parent=47 // pred_check_branch
          %353 = sbr.rel (%p351) target = $region56
        $region55: #{transformer_forward.15} parent=47 // pred_region
          %p354 = scmp.lt.s32.totalorder %s19, 1
          %s355 = scalar_select %p354, %s19, 1
          %s356 = smul.addr %s355, 8
          %s357 = scalar_lea.vmem %s1, %s356
        $region56: #{transformer_forward.15} parent=47 // pred_fallthru
          _
      $region48: #{transformer_forward.15} parent=5 // pred_fallthru
        _
      %p358 = scmp.le.s32.totalorder 1, %s19
      %p359 = scmp.lt.s32.totalorder %s19, 3
      %p360 = pnand %p358, %p359
      %p361 = pneg %p360
      // Predicated region
      $region57: #{transformer_forward.15} parent=5 // pred_check
        _
      $region58: #{transformer_forward.15} parent=5 // pred_check_branch
        %363 = sbr.rel (%p360) target = $region60
      $region59: #{transformer_forward.15} parent=5 // pred_region
        %s364 = ssub.s32 %s19, 1
        // Predicated region
        $region61: #{transformer_forward.15} parent=59 // pred_check
          %p365 = pneg %p92
        $region62: #{transformer_forward.15} parent=59 // pred_check_branch
          %367 = sbr.rel (%p365) target = $region64
        $region63: #{transformer_forward.15} parent=59 // pred_region
          %369 = dma.done [#allocation3], 16
        $region64: #{transformer_forward.15} parent=59 // pred_fallthru
          _
        // Predicated region
        $region65: #{transformer_forward.15} parent=59 // pred_check
          %p370 = pneg %p113
        $region66: #{transformer_forward.15} parent=59 // pred_check_branch
          %372 = sbr.rel (%p370) target = $region68
        $region67: #{transformer_forward.15} parent=59 // pred_region
          %374 = dma.done [#allocation5], 16
        $region68: #{transformer_forward.15} parent=59 // pred_fallthru
          _
        // Predicated region
        $region69: #{transformer_forward.15} parent=59 // pred_check
          %p375 = pneg %p134
        $region70: #{transformer_forward.15} parent=59 // pred_check_branch
          %377 = sbr.rel (%p375) target = $region72
        $region71: #{transformer_forward.15} parent=59 // pred_region
          %379 = dma.done [#allocation5], 16
        $region72: #{transformer_forward.15} parent=59 // pred_fallthru
          _
        // Predicated region
        $region73: #{transformer_forward.15} parent=59 // pred_check
          %p380 = pneg %p155
        $region74: #{transformer_forward.15} parent=59 // pred_check_branch
          %382 = sbr.rel (%p380) target = $region76
        $region75: #{transformer_forward.15} parent=59 // pred_region
          %384 = dma.done [#allocation8], 16
        $region76: #{transformer_forward.15} parent=59 // pred_fallthru
          _
        %p385 = scmp.lt.s32.totalorder %s24, 1
        %s386 = scalar_select %p385, %s24, 1
        %s387 = smul.addr %s386, 8
        %s388 = scalar_lea.vmem %s0, %s387
        %p389 = pneg %p45
        %p390 = pneg %p42
        %p391 = scmp.lt.s32.totalorder %s24, 1
        %s392 = scalar_select %p391, %s24, 1
        %s393 = smul.addr %s392, 8
        %s394 = scalar_lea.vmem %s1, %s393
        %p395 = pneg %p71
        %p396 = pneg %p68
        %p397 = pneg %p92
        %p398 = pneg %p89
        %p399 = pneg %p113
        %p400 = pneg %p110
        %p401 = pneg %p134
        %p402 = pneg %p131
        %p403 = pneg %p155
        %p404 = pneg %p152
        %p405 = pneg %p176
        %p406 = pneg %p173
        %p407 = pneg %p197
        %p408 = pneg %p194
        %p409 = pneg %p218
        %p410 = pneg %p215
        %p411 = pneg %p239
        %p412 = pneg %p236
        %p413 = pneg %p265
        %p414 = pneg %p262
        %p415 = scmp.lt.s32.totalorder %s24, 1
        %s416 = scalar_select %p415, %s24, 1
        %s417 = smul.addr %s416, 8
        %s418 = scalar_lea.vmem %s10, %s417
        %p419 = scmp.lt.s32.totalorder %s24, 1
        %s420 = scalar_select %p419, %s24, 1
        %s421 = smul.addr %s420, 8
        %s422 = scalar_lea.vmem %s0, %s421
        %p423 = scmp.lt.s32.totalorder %s24, 1
        %s424 = scalar_select %p423, %s24, 1
        %s425 = smul.addr %s424, 8
        %s426 = scalar_lea.vmem %s1, %s425
        %p427 = scmp.lt.s32.totalorder %s24, 1
        %s428 = scalar_select %p427, %s24, 1
        %s429 = smul.addr %s428, 8
        %s430 = scalar_lea.vmem %s10, %s429
        %v432 = vld [vmem:[%s422] sm:$0xff]
        %v433 = vld [vmem:[%s426] sm:$0xff]
        %v434 = vld [vmem:[#allocation2] sm:$0x1]
        %v435 = vld [vmem:[#allocation4] sm:$0x1]
        %vm436 = vcmask 261120
        %v437 = vsel %vm436, %v432, 0.0
        %438 = vadd.xlane.f32.xlu0 %v437
        %v439 = vpop.xlane.xlu0 %438
        %v440 = vrcp.pop 32.0
        %v441 = vmul.f32 32.0, %v440
        %v442 = vsub.f32 1.0, %v441
        %v443 = vmul.f32 %v440, %v442
        %v444 = vadd.f32 %v440, %v443
        %vm445 = vweird.f32 %v440
        %v446 = vsel %vm445, %v440, %v444
        %v447 = vmul.f32 %v439, %v446
        %v448 = vsub.f32 %v432, %v447
        %v449 = vmul.f32 %v448, %v448
        %v450 = vsel %vm436, %v449, 0.0
        %451 = vadd.xlane.f32.xlu0 %v450
        %v452 = vpop.xlane.xlu0 %451
        %v453 = vmul.f32 %v452, %v446
        %v454 = vadd.f32 %v453, 1e-05
        %v455 = vrsqrt.pop %v454
        %v456 = vmul.f32 %v455, %v454
        %v457 = vmul.f32 %v456, %v455
        %v458 = vmul.f32 0.5, %v457
        %v459 = vsub.f32 1.5, %v458
        %v460 = vmul.f32 %v455, %v459
        %vm461 = vweird.f32 %v454
        %vm462 = vweird.f32 %v455
        %vm463 = vmor %vm461, %vm462
        %v464 = vsel %vm463, %v455, %v460
        %v465 = vmul.f32 %v448, %v464
        %v467 = vperm.slane %v434, 0
        %v469 = vmul.f32 %v465, %v467
        %v471 = vperm.slane %v435, 0
        %v473 = vadd.f32 %v469, %v471
        %v474 = vpack.c.bf16 %v473, %v473
        %v475 = vld [vmem:[#allocation6] sm:$0x1]
        %v476 = vld [vmem:[#allocation7] sm:$0x1]
        %v477 = vsel %vm436, %v433, 0.0
        %478 = vadd.xlane.f32.xlu0 %v477
        %v479 = vpop.xlane.xlu0 %478
        %v480 = vmul.f32 %v479, %v446
        %v481 = vsub.f32 %v433, %v480
        %v482 = vmul.f32 %v481, %v481
        %v483 = vsel %vm436, %v482, 0.0
        %484 = vadd.xlane.f32.xlu0 %v483
        %v485 = vpop.xlane.xlu0 %484
        %v486 = vmul.f32 %v485, %v446
        %v487 = vadd.f32 %v486, 1e-05
        %v488 = vrsqrt.pop %v487
        %v489 = vmul.f32 %v488, %v487
        %v490 = vmul.f32 %v489, %v488
        %v491 = vmul.f32 0.5, %v490
        %v492 = vsub.f32 1.5, %v491
        %v493 = vmul.f32 %v488, %v492
        %vm494 = vweird.f32 %v487
        %vm495 = vweird.f32 %v488
        %vm496 = vmor %vm494, %vm495
        %v497 = vsel %vm496, %v488, %v493
        %v498 = vmul.f32 %v481, %v497
        %v500 = vperm.slane %v475, 0
        %v502 = vmul.f32 %v498, %v500
        %v504 = vperm.slane %v476, 0
        %v506 = vadd.f32 %v502, %v504
        %v507 = vpack.c.bf16 %v506, %v506
        %v508 = vld [vmem:[%s6] sm:$0xf]
        %v509 = vld [vmem:[%s6 + $0x4] sm:$0xf]
        %v510 = vld [vmem:[%s6 + $0x8] sm:$0xf]
        %v511 = vld [vmem:[%s6 + $0xc] sm:$0xf]
        %v516 = vunpack.c.l.b16 %v508
        %v517 = vunpack.c.l.b16 %v509
        %v518 = vunpack.c.l.b16 %v510
        %v519 = vunpack.c.l.b16 %v511
        %v520 = vpack.c.b16 %v517, %v516
        %v521 = vpack.c.b16 %v519, %v518
        %v525 = vsel %vm436, %v474, 0
        %527 = vmatpush.bf16.msra.mxu0 0
        %528 = vmatpush.bf16.msra.mxu0 0
        %529 = vmatpush.bf16.msra.mxu0 0
        %530 = vmatpush.bf16.msra.mxu0 0
        %531 = vmatpush.bf16.msra.mxu0 0
        %532 = vmatpush.bf16.msra.mxu0 0
        %533 = vmatpush.bf16.msra.mxu0 %v521
        %534 = vmatpush.bf16.msra.mxu0 %v520
        %535 = vmatmul.bf16.gmra.mxu0 %v525
        %v536 = vpop.f32.mrf.mxu0
        %v537 = vadd.f32 0.0, %v536
        %v538 = vpop.f32.mrf.mxu0
        %539 = vdwg.mxu0
        %v540 = vld [vmem:[%s7] sm:$0xf]
        %v541 = vld [vmem:[%s7 + $0x4] sm:$0xf]
        %v542 = vld [vmem:[%s7 + $0x8] sm:$0xf]
        %v543 = vld [vmem:[%s7 + $0xc] sm:$0xf]
        %v548 = vunpack.c.l.b16 %v540
        %v549 = vunpack.c.l.b16 %v541
        %v550 = vunpack.c.l.b16 %v542
        %v551 = vunpack.c.l.b16 %v543
        %v552 = vpack.c.b16 %v549, %v548
        %v553 = vpack.c.b16 %v551, %v550
        %v557 = vsel %vm436, %v507, 0
        %559 = vmatpush.bf16.msra.mxu0 0
        %560 = vmatpush.bf16.msra.mxu0 0
        %561 = vmatpush.bf16.msra.mxu0 0
        %562 = vmatpush.bf16.msra.mxu0 0
        %563 = vmatpush.bf16.msra.mxu0 0
        %564 = vmatpush.bf16.msra.mxu0 0
        %565 = vmatpush.bf16.msra.mxu0 %v553
        %566 = vmatpush.bf16.msra.mxu0 %v552
        %567 = vmatmul.bf16.gmra.mxu0 %v557
        %v568 = vpop.f32.mrf.mxu0
        %v569 = vadd.f32 0.0, %v568
        %v570 = vpop.f32.mrf.mxu0
        %571 = vdwg.mxu0
        %v572 = vld [vmem:[%s8] sm:$0xf]
        %v573 = vld [vmem:[%s8 + $0x4] sm:$0xf]
        %v574 = vld [vmem:[%s8 + $0x8] sm:$0xf]
        %v575 = vld [vmem:[%s8 + $0xc] sm:$0xf]
        %v580 = vunpack.c.l.b16 %v572
        %v581 = vunpack.c.l.b16 %v573
        %v582 = vunpack.c.l.b16 %v574
        %v583 = vunpack.c.l.b16 %v575
        %v584 = vpack.c.b16 %v581, %v580
        %v585 = vpack.c.b16 %v583, %v582
        %588 = vmatpush.bf16.msra.mxu0 0
        %589 = vmatpush.bf16.msra.mxu0 0
        %590 = vmatpush.bf16.msra.mxu0 0
        %591 = vmatpush.bf16.msra.mxu0 0
        %592 = vmatpush.bf16.msra.mxu0 0
        %593 = vmatpush.bf16.msra.mxu0 0
        %594 = vmatpush.bf16.msra.mxu0 %v585
        %595 = vmatpush.bf16.msra.mxu0 %v584
        %596 = vmatmul.bf16.gmra.mxu0 %v557
        %v597 = vpop.f32.mrf.mxu0
        %v598 = vadd.f32 0.0, %v597
        %v599 = vpop.f32.mrf.mxu0
        %600 = vdwg.mxu0
        %v601 = vlaneseq
        %v602 = vshrl.u32 %v601, 7
        %v603 = vlaneseq
        %v604 = vand.u32 %v603, 127
        %vm605 = vcmp.ge.s32.totalorder %v602, %v604
        %v606 = vsel %vm605, 1, 0
        %v607 = vcvt.s32.f32 %v606
        %v608 = vsub.f32 1.0, %v607
        %v609 = vmul.f32 %v608, -1e+09
        %v610 = vpack.c.bf16 %v537, %v537
        %v611 = vpack.c.bf16 %v569, %v569
        %v612 = vpack.c.bf16 %v598, %v598
        %vm613 = vcmask 64512
        %v615 = vsel %vm613, %v610, 0
        %v618 = vsel %vm613, %v611, 0
        %620 = vmatpush.bf16.xpose.msra.mxu0 0
        %621 = vmatpush.bf16.xpose.msra.mxu0 0
        %622 = vmatpush.bf16.xpose.msra.mxu0 0
        %623 = vmatpush.bf16.xpose.msra.mxu0 0
        %624 = vmatpush.bf16.xpose.msra.mxu0 0
        %625 = vmatpush.bf16.xpose.msra.mxu0 0
        %626 = vmatpush.bf16.xpose.msra.mxu0 0
        %627 = vmatpush.bf16.xpose.msra.mxu0 %v618
        %628 = vmatmul.bf16.gmra.mxu0 %v615
        %v629 = vpop.f32.mrf.mxu0
        %v630 = vadd.f32 0.0, %v629
        %v631 = vpop.f32.mrf.mxu0
        %632 = vdwg.mxu0
        %v633 = vmul.f32 %v630, 0.35355338
        %v634 = vadd.f32 %v633, %v609
        %v635 = vsel %vm613, %v634, -inf
        %636 = vmax.xlane.f32.xlu0 %v635
        %v637 = vpop.xlane.xlu0 %636
        %v638 = vsub.f32 %v634, %v637
        %v639 = vmul.f32 %v638, 1.442695
        %v640 = vpow.pop %v639
        %v641 = vsel %vm613, %v640, 0.0
        %642 = vadd.xlane.f32.xlu0 %v641
        %v643 = vpop.xlane.xlu0 %642
        %v644 = vrcp.pop %v643
        %v645 = vmul.f32 %v640, %v644
        %v646 = vpack.c.bf16 %v645, %v645
        %v648 = vsel %vm613, %v646, 0
        %vm650 = vcmask 1043456
        %v652 = vsel %vm650, %v612, 0
        %654 = vmatpush.bf16.msra.mxu0 0
        %655 = vmatpush.bf16.msra.mxu0 0
        %656 = vmatpush.bf16.msra.mxu0 0
        %657 = vmatpush.bf16.msra.mxu0 0
        %658 = vmatpush.bf16.msra.mxu0 0
        %659 = vmatpush.bf16.msra.mxu0 0
        %660 = vmatpush.bf16.msra.mxu0 0
        %661 = vmatpush.bf16.msra.mxu0 %v652
        %662 = vmatmul.bf16.gmra.mxu0 %v648
        %v663 = vpop.f32.mrf.mxu0
        %v664 = vadd.f32 0.0, %v663
        %v665 = vpop.f32.mrf.mxu0
        %666 = vdwg.mxu0
        %v667 = vpack.c.bf16 %v664, %v664
        %v668 = vld [vmem:[%s9] sm:$0xf]
        %v670 = vsel %vm613, %v667, 0
        %v673 = vsel %vm650, %v668, 0
        %675 = vmatpush.bf16.msra.mxu0 0
        %676 = vmatpush.bf16.msra.mxu0 0
        %677 = vmatpush.bf16.msra.mxu0 0
        %678 = vmatpush.bf16.msra.mxu0 0
        %679 = vmatpush.bf16.msra.mxu0 0
        %680 = vmatpush.bf16.msra.mxu0 0
        %681 = vmatpush.bf16.msra.mxu0 0
        %682 = vmatpush.bf16.msra.mxu0 %v673
        %683 = vmatmul.bf16.gmra.mxu0 %v670
        %v684 = vpop.f32.mrf.mxu0
        %v685 = vadd.f32 0.0, %v684
        %v686 = vpop.f32.mrf.mxu0
        %687 = vdwg.mxu0
        %v688 = vadd.f32 %v432, %v685
        %690 = vrot.lane.b32.xlu0 %v610, 120
        %v691 = vpop.permute.xlu0 %690
        %693 = vrot.lane.b32.xlu0 %v611, 120
        %v694 = vpop.permute.xlu0 %693
        %v696 = vsel %vm613, %v691, 0
        %v699 = vsel %vm613, %v694, 0
        %701 = vmatpush.bf16.xpose.msra.mxu0 0
        %702 = vmatpush.bf16.xpose.msra.mxu0 0
        %703 = vmatpush.bf16.xpose.msra.mxu0 0
        %704 = vmatpush.bf16.xpose.msra.mxu0 0
        %705 = vmatpush.bf16.xpose.msra.mxu0 0
        %706 = vmatpush.bf16.xpose.msra.mxu0 0
        %707 = vmatpush.bf16.xpose.msra.mxu0 0
        %708 = vmatpush.bf16.xpose.msra.mxu0 %v699
        %709 = vmatmul.bf16.gmra.mxu0 %v696
        %v710 = vpop.f32.mrf.mxu0
        %v711 = vadd.f32 0.0, %v710
        %v712 = vpop.f32.mrf.mxu0
        %713 = vdwg.mxu0
        %v714 = vmul.f32 %v711, 0.35355338
        %v715 = vadd.f32 %v714, %v609
        %v716 = vsel %vm613, %v715, -inf
        %717 = vmax.xlane.f32.xlu0 %v716
        %v718 = vpop.xlane.xlu0 %717
        %v719 = vsub.f32 %v715, %v718
        %v720 = vmul.f32 %v719, 1.442695
        %v721 = vpow.pop %v720
        %v722 = vsel %vm613, %v721, 0.0
        %723 = vadd.xlane.f32.xlu0 %v722
        %v724 = vpop.xlane.xlu0 %723
        %v725 = vrcp.pop %v724
        %v726 = vmul.f32 %v721, %v725
        %v727 = vpack.c.bf16 %v726, %v726
        %729 = vrot.lane.b32.xlu0 %v612, 120
        %v730 = vpop.permute.xlu0 %729
        %v732 = vsel %vm613, %v727, 0
        %v735 = vsel %vm650, %v730, 0
        %737 = vmatpush.bf16.msra.mxu0 0
        %738 = vmatpush.bf16.msra.mxu0 0
        %739 = vmatpush.bf16.msra.mxu0 0
        %740 = vmatpush.bf16.msra.mxu0 0
        %741 = vmatpush.bf16.msra.mxu0 0
        %742 = vmatpush.bf16.msra.mxu0 0
        %743 = vmatpush.bf16.msra.mxu0 0
        %744 = vmatpush.bf16.msra.mxu0 %v735
        %745 = vmatmul.bf16.gmra.mxu0 %v732
        %v746 = vpop.f32.mrf.mxu0
        %v747 = vadd.f32 0.0, %v746
        %v748 = vpop.f32.mrf.mxu0
        %749 = vdwg.mxu0
        %v750 = vpack.c.bf16 %v747, %v747
        %s751 = scalar_lea.vmem %s9, 4
        %v752 = vld [vmem:[%s751] sm:$0xf]
        %v754 = vsel %vm613, %v750, 0
        %v757 = vsel %vm650, %v752, 0
        %759 = vmatpush.bf16.msra.mxu0 0
        %760 = vmatpush.bf16.msra.mxu0 0
        %761 = vmatpush.bf16.msra.mxu0 0
        %762 = vmatpush.bf16.msra.mxu0 0
        %763 = vmatpush.bf16.msra.mxu0 0
        %764 = vmatpush.bf16.msra.mxu0 0
        %765 = vmatpush.bf16.msra.mxu0 0
        %766 = vmatpush.bf16.msra.mxu0 %v757
        %767 = vmatmul.bf16.gmra.mxu0 %v754
        %v768 = vpop.f32.mrf.mxu0
        %v769 = vadd.f32 0.0, %v768
        %v770 = vpop.f32.mrf.mxu0
        %771 = vdwg.mxu0
        %v772 = vadd.f32 %v688, %v769
        %773 = vrot.lane.b32.xlu0 %v610, 112
        %v774 = vpop.permute.xlu0 %773
        %775 = vrot.lane.b32.xlu0 %v611, 112
        %v776 = vpop.permute.xlu0 %775
        %v778 = vsel %vm613, %v774, 0
        %v781 = vsel %vm613, %v776, 0
        %783 = vmatpush.bf16.xpose.msra.mxu0 0
        %784 = vmatpush.bf16.xpose.msra.mxu0 0
        %785 = vmatpush.bf16.xpose.msra.mxu0 0
        %786 = vmatpush.bf16.xpose.msra.mxu0 0
        %787 = vmatpush.bf16.xpose.msra.mxu0 0
        %788 = vmatpush.bf16.xpose.msra.mxu0 0
        %789 = vmatpush.bf16.xpose.msra.mxu0 0
        %790 = vmatpush.bf16.xpose.msra.mxu0 %v781
        %791 = vmatmul.bf16.gmra.mxu0 %v778
        %v792 = vpop.f32.mrf.mxu0
        %v793 = vadd.f32 0.0, %v792
        %v794 = vpop.f32.mrf.mxu0
        %795 = vdwg.mxu0
        %v796 = vmul.f32 %v793, 0.35355338
        %v797 = vadd.f32 %v796, %v609
        %v798 = vsel %vm613, %v797, -inf
        %799 = vmax.xlane.f32.xlu0 %v798
        %v800 = vpop.xlane.xlu0 %799
        %v801 = vsub.f32 %v797, %v800
        %v802 = vmul.f32 %v801, 1.442695
        %v803 = vpow.pop %v802
        %v804 = vsel %vm613, %v803, 0.0
        %805 = vadd.xlane.f32.xlu0 %v804
        %v806 = vpop.xlane.xlu0 %805
        %v807 = vrcp.pop %v806
        %v808 = vmul.f32 %v803, %v807
        %v809 = vpack.c.bf16 %v808, %v808
        %810 = vrot.lane.b32.xlu0 %v612, 112
        %v811 = vpop.permute.xlu0 %810
        %v813 = vsel %vm613, %v809, 0
        %v816 = vsel %vm650, %v811, 0
        %818 = vmatpush.bf16.msra.mxu0 0
        %819 = vmatpush.bf16.msra.mxu0 0
        %820 = vmatpush.bf16.msra.mxu0 0
        %821 = vmatpush.bf16.msra.mxu0 0
        %822 = vmatpush.bf16.msra.mxu0 0
        %823 = vmatpush.bf16.msra.mxu0 0
        %824 = vmatpush.bf16.msra.mxu0 0
        %825 = vmatpush.bf16.msra.mxu0 %v816
        %826 = vmatmul.bf16.gmra.mxu0 %v813
        %v827 = vpop.f32.mrf.mxu0
        %v828 = vadd.f32 0.0, %v827
        %v829 = vpop.f32.mrf.mxu0
        %830 = vdwg.mxu0
        %v831 = vpack.c.bf16 %v828, %v828
        %s832 = scalar_lea.vmem %s9, 8
        %v833 = vld [vmem:[%s832] sm:$0xf]
        %v835 = vsel %vm613, %v831, 0
        %v838 = vsel %vm650, %v833, 0
        %840 = vmatpush.bf16.msra.mxu0 0
        %841 = vmatpush.bf16.msra.mxu0 0
        %842 = vmatpush.bf16.msra.mxu0 0
        %843 = vmatpush.bf16.msra.mxu0 0
        %844 = vmatpush.bf16.msra.mxu0 0
        %845 = vmatpush.bf16.msra.mxu0 0
        %846 = vmatpush.bf16.msra.mxu0 0
        %847 = vmatpush.bf16.msra.mxu0 %v838
        %848 = vmatmul.bf16.gmra.mxu0 %v835
        %v849 = vpop.f32.mrf.mxu0
        %v850 = vadd.f32 0.0, %v849
        %v851 = vpop.f32.mrf.mxu0
        %852 = vdwg.mxu0
        %v853 = vadd.f32 %v772, %v850
        %854 = vrot.lane.b32.xlu0 %v610, 104
        %v855 = vpop.permute.xlu0 %854
        %856 = vrot.lane.b32.xlu0 %v611, 104
        %v857 = vpop.permute.xlu0 %856
        %v859 = vsel %vm613, %v855, 0
        %v862 = vsel %vm613, %v857, 0
        %864 = vmatpush.bf16.xpose.msra.mxu0 0
        %865 = vmatpush.bf16.xpose.msra.mxu0 0
        %866 = vmatpush.bf16.xpose.msra.mxu0 0
        %867 = vmatpush.bf16.xpose.msra.mxu0 0
        %868 = vmatpush.bf16.xpose.msra.mxu0 0
        %869 = vmatpush.bf16.xpose.msra.mxu0 0
        %870 = vmatpush.bf16.xpose.msra.mxu0 0
        %871 = vmatpush.bf16.xpose.msra.mxu0 %v862
        %872 = vmatmul.bf16.gmra.mxu0 %v859
        %v873 = vpop.f32.mrf.mxu0
        %v874 = vadd.f32 0.0, %v873
        %v875 = vpop.f32.mrf.mxu0
        %876 = vdwg.mxu0
        %v877 = vmul.f32 %v874, 0.35355338
        %v878 = vadd.f32 %v877, %v609
        %v879 = vsel %vm613, %v878, -inf
        %880 = vmax.xlane.f32.xlu0 %v879
        %v881 = vpop.xlane.xlu0 %880
        %v882 = vsub.f32 %v878, %v881
        %v883 = vmul.f32 %v882, 1.442695
        %v884 = vpow.pop %v883
        %v885 = vsel %vm613, %v884, 0.0
        %886 = vadd.xlane.f32.xlu0 %v885
        %v887 = vpop.xlane.xlu0 %886
        %v888 = vrcp.pop %v887
        %v889 = vmul.f32 %v884, %v888
        %v890 = vpack.c.bf16 %v889, %v889
        %891 = vrot.lane.b32.xlu0 %v612, 104
        %v892 = vpop.permute.xlu0 %891
        %v894 = vsel %vm613, %v890, 0
        %v897 = vsel %vm650, %v892, 0
        %899 = vmatpush.bf16.msra.mxu0 0
        %900 = vmatpush.bf16.msra.mxu0 0
        %901 = vmatpush.bf16.msra.mxu0 0
        %902 = vmatpush.bf16.msra.mxu0 0
        %903 = vmatpush.bf16.msra.mxu0 0
        %904 = vmatpush.bf16.msra.mxu0 0
        %905 = vmatpush.bf16.msra.mxu0 0
        %906 = vmatpush.bf16.msra.mxu0 %v897
        %907 = vmatmul.bf16.gmra.mxu0 %v894
        %v908 = vpop.f32.mrf.mxu0
        %v909 = vadd.f32 0.0, %v908
        %v910 = vpop.f32.mrf.mxu0
        %911 = vdwg.mxu0
        %v912 = vpack.c.bf16 %v909, %v909
        %s913 = scalar_lea.vmem %s9, 12
        %v914 = vld [vmem:[%s913] sm:$0xf]
        %v916 = vsel %vm613, %v912, 0
        %v919 = vsel %vm650, %v914, 0
        %921 = vmatpush.bf16.msra.mxu0 0
        %922 = vmatpush.bf16.msra.mxu0 0
        %923 = vmatpush.bf16.msra.mxu0 0
        %924 = vmatpush.bf16.msra.mxu0 0
        %925 = vmatpush.bf16.msra.mxu0 0
        %926 = vmatpush.bf16.msra.mxu0 0
        %927 = vmatpush.bf16.msra.mxu0 0
        %928 = vmatpush.bf16.msra.mxu0 %v919
        %929 = vmatmul.bf16.gmra.mxu0 %v916
        %v930 = vpop.f32.mrf.mxu0
        %v931 = vadd.f32 0.0, %v930
        %v932 = vpop.f32.mrf.mxu0
        %933 = vdwg.mxu0
        %v934 = vadd.f32 %v853, %v931
        %935 = vst.msk [vmem:[%s430] sm:$0xff] %vm436, %v934
        %p936 = scmp.lt.s32.totalorder %s24, 1
        %s937 = scalar_select %p936, %s24, 1
        %s938 = smul.addr %s937, 8
        %s939 = scalar_lea.vmem %s10, %s938
        // Predicated region
        $region77: #{transformer_forward.15} parent=59 // pred_check
          %p940 = pneg %p262
        $region78: #{transformer_forward.15} parent=59 // pred_check_branch
          %942 = sbr.rel (%p940) target = $region80
        $region79: #{transformer_forward.15} parent=59 // pred_region
          _
        $region80: #{transformer_forward.15} parent=59 // pred_fallthru
          _
      $region60: #{transformer_forward.15} parent=5 // pred_fallthru
        _
      %p943 = scmp.le.s32.totalorder 2, %s19
      // Predicated region
      $region81: #{transformer_forward.15} parent=5 // pred_check
        %p944 = pneg %p943
      $region82: #{transformer_forward.15} parent=5 // pred_check_branch
        %946 = sbr.rel (%p944) target = $region84
      $region83: #{transformer_forward.15} parent=5 // pred_region
        %s947 = ssub.s32 %s19, 2
        // Predicated region
        $region85: #{transformer_forward.15} parent=83 // pred_check
          %p948 = pneg %p268
        $region86: #{transformer_forward.15} parent=83 // pred_check_branch
          %950 = sbr.rel (%p948) target = $region88
        $region87: #{transformer_forward.15} parent=83 // pred_region
          %p951 = scmp.lt.s32.totalorder %s25, 1
          %s952 = scalar_select %p951, %s25, 1
          %s953 = smul.addr %s952, 8
          %s954 = scalar_lea.vmem %s10, %s953
        $region88: #{transformer_forward.15} parent=83 // pred_fallthru
          _
      $region84: #{transformer_forward.15} parent=5 // pred_fallthru
        _
    $region6: #{transformer_forward.15} parent=1 // loop_footer
      %s23 = sadd.s32 1, %s19
    $region7: #{transformer_forward.15} parent=1 // loop_footer_branch
      %18 = sbr.rel target = $region3
    $region8: #{transformer_forward.15} parent=1 // loop_exit
      _
    %955 = vsyncpa [#allocation3], 1
    %s956 = scalar_lea.sflag [#allocation3], 1
    %957 = vsyncpa %s956, 1
    %958 = vsyncpa [#allocation5], 1
    %959 = vsyncpa [#allocation8], 1

// kernel: transformer_forward.17
$region0: #{transformer_forward.17}
  #allocation0 [shape = 'u32[]', space=smem, size = 0x4, offset = 0x4, fixed_abs, tag = 'smem constant byte address 0x4 - core index']
  #allocation1 [shape = 'u32[72,128]{1,0:T(1,128)}', space=vmem, size = 0x9000, scoped, tag = 'internal scratch']
  %s0 = inlined_call_operand.vmem [shape: f32[16,32], index: 0, kind: input, shape index: {}]
  %s1 = inlined_call_operand.hbm [shape: f32[1,32], index: 1, kind: input, shape index: {}]
  %s2 = inlined_call_operand.hbm [shape: f32[1,32], index: 2, kind: input, shape index: {}]
  %s3 = inlined_call_operand.vmem [shape: bf16[32,64], index: 3, kind: input, shape index: {}]
  %s4 = inlined_call_operand.hbm [shape: f32[1,64], index: 4, kind: input, shape index: {}]
  %s5 = inlined_call_operand.vmem [shape: bf16[64,32], index: 5, kind: input, shape index: {}]
  %s6 = inlined_call_operand.hbm [shape: f32[1,32], index: 6, kind: input, shape index: {}]
  %s7 = inlined_call_operand.vmem [shape: f32[16,32], index: 7, kind: output, shape index: {}]
  %s8 = sld [smem:[#allocation0]]
  $region54: #{transformer_forward.17} parent=0
    _
  %s10 = ssub.s32 1, %s8
  %s11 = scalar_select 0, %s10, %s8
  $region1: #{transformer_forward.17} parent=0
    #allocation2 [shape = 'u8[512]{0}', space=vmem, size = 0x400, scoped, tag = 'input window, operand 1, single buffered']
    #allocation3 [shape = 's32[1]{0}', space=sflag, size = 0x4, scoped, tag = 'scoped memory for transformer_forward.17']
    #allocation4 [shape = 'u8[512]{0}', space=vmem, size = 0x400, scoped, tag = 'input window, operand 2, single buffered']
    #allocation5 [shape = 's32[1]{0}', space=sflag, size = 0x4, scoped, tag = 'scoped memory for transformer_forward.17']
    #allocation6 [shape = 'u8[512]{0}', space=vmem, size = 0x400, scoped, tag = 'input window, operand 4, single buffered']
    #allocation7 [shape = 'u8[512]{0}', space=vmem, size = 0x400, scoped, tag = 'input window, operand 6, single buffered']
    #allocation8 [shape = 's32[1]{0}', space=sflag, size = 0x4, scoped, tag = 'scoped memory for transformer_forward.17']
    %12 = vsyncpa [#allocation3], 0
    %13 = vsyncpa [#allocation5], 0
    %14 = vsyncpa [#allocation8], 0
    // Predicated region
    $region2: #{transformer_forward.17} parent=1 // pred_check
      _
    $region3: #{transformer_forward.17} parent=1 // pred_check_branch
      %16 = sbr.rel (0) target = $region5
    $region4: #{transformer_forward.17} parent=1 // pred_region
      _
    $region5: #{transformer_forward.17} parent=1 // pred_fallthru
      _
    // Predicated region
    $region6: #{transformer_forward.17} parent=1 // pred_check
      _
    $region7: #{transformer_forward.17} parent=1 // pred_check_branch
      %18 = sbr.rel (0) target = $region9
    $region8: #{transformer_forward.17} parent=1 // pred_region
      %20 = vsyncadd [#allocation3], 0
      %s22 = sshll.u32 %s1, 4
      %s23 = int_to_ptr.hbm [resolvable:$true] %s22
      %s24 = sshll.u32 [#allocation2], 4
      %s25 = int_to_ptr.vmem [resolvable:$true] %s24
      %27 = dma.hbm_to_vmem [thread:$0]  %s23, 16, %s25, [#allocation3]
    $region9: #{transformer_forward.17} parent=1 // pred_fallthru
      _
    // Predicated region
    $region10: #{transformer_forward.17} parent=1 // pred_check
      _
    $region11: #{transformer_forward.17} parent=1 // pred_check_branch
      %29 = sbr.rel (0) target = $region13
    $region12: #{transformer_forward.17} parent=1 // pred_region
      %31 = vsyncadd [#allocation5], 0
      %s33 = sshll.u32 %s2, 4
      %s34 = int_to_ptr.hbm [resolvable:$true] %s33
      %s35 = sshll.u32 [#allocation4], 4
      %s36 = int_to_ptr.vmem [resolvable:$true] %s35
      %38 = dma.hbm_to_vmem [thread:$0]  %s34, 16, %s36, [#allocation5]
    $region13: #{transformer_forward.17} parent=1 // pred_fallthru
      _
    // Predicated region
    $region14: #{transformer_forward.17} parent=1 // pred_check
      _
    $region15: #{transformer_forward.17} parent=1 // pred_check_branch
      %40 = sbr.rel (0) target = $region17
    $region16: #{transformer_forward.17} parent=1 // pred_region
      _
    $region17: #{transformer_forward.17} parent=1 // pred_fallthru
      _
    // Predicated region
    $region18: #{transformer_forward.17} parent=1 // pred_check
      _
    $region19: #{transformer_forward.17} parent=1 // pred_check_branch
      %42 = sbr.rel (0) target = $region21
    $region20: #{transformer_forward.17} parent=1 // pred_region
      %44 = vsyncadd [#allocation5], 0
      %s46 = sshll.u32 %s4, 4
      %s47 = int_to_ptr.hbm [resolvable:$true] %s46
      %s48 = sshll.u32 [#allocation6], 4
      %s49 = int_to_ptr.vmem [resolvable:$true] %s48
      %51 = dma.hbm_to_vmem [thread:$0]  %s47, 16, %s49, [#allocation5]
    $region21: #{transformer_forward.17} parent=1 // pred_fallthru
      _
    // Predicated region
    $region22: #{transformer_forward.17} parent=1 // pred_check
      _
    $region23: #{transformer_forward.17} parent=1 // pred_check_branch
      %53 = sbr.rel (0) target = $region25
    $region24: #{transformer_forward.17} parent=1 // pred_region
      _
    $region25: #{transformer_forward.17} parent=1 // pred_fallthru
      _
    // Predicated region
    $region26: #{transformer_forward.17} parent=1 // pred_check
      _
    $region27: #{transformer_forward.17} parent=1 // pred_check_branch
      %55 = sbr.rel (0) target = $region29
    $region28: #{transformer_forward.17} parent=1 // pred_region
      %57 = vsyncadd [#allocation8], 0
      %s59 = sshll.u32 %s6, 4
      %s60 = int_to_ptr.hbm [resolvable:$true] %s59
      %s61 = sshll.u32 [#allocation7], 4
      %s62 = int_to_ptr.vmem [resolvable:$true] %s61
      %64 = dma.hbm_to_vmem [thread:$0]  %s60, 16, %s62, [#allocation8]
    $region29: #{transformer_forward.17} parent=1 // pred_fallthru
      _
    // Predicated region
    $region30: #{transformer_forward.17} parent=1 // pred_check
      _
    $region31: #{transformer_forward.17} parent=1 // pred_check_branch
      %66 = sbr.rel (0) target = $region33
    $region32: #{transformer_forward.17} parent=1 // pred_region
      %68 = dma.done [#allocation3], 16
    $region33: #{transformer_forward.17} parent=1 // pred_fallthru
      _
    // Predicated region
    $region34: #{transformer_forward.17} parent=1 // pred_check
      _
    $region35: #{transformer_forward.17} parent=1 // pred_check_branch
      %70 = sbr.rel (0) target = $region37
    $region36: #{transformer_forward.17} parent=1 // pred_region
      %72 = dma.done [#allocation5], 16
    $region37: #{transformer_forward.17} parent=1 // pred_fallthru
      _
    // Predicated region
    $region38: #{transformer_forward.17} parent=1 // pred_check
      _
    $region39: #{transformer_forward.17} parent=1 // pred_check_branch
      %74 = sbr.rel (0) target = $region41
    $region40: #{transformer_forward.17} parent=1 // pred_region
      %76 = dma.done [#allocation5], 16
    $region41: #{transformer_forward.17} parent=1 // pred_fallthru
      _
    // Predicated region
    $region42: #{transformer_forward.17} parent=1 // pred_check
      _
    $region43: #{transformer_forward.17} parent=1 // pred_check_branch
      %78 = sbr.rel (0) target = $region45
    $region44: #{transformer_forward.17} parent=1 // pred_region
      %80 = dma.done [#allocation8], 16
    $region45: #{transformer_forward.17} parent=1 // pred_fallthru
      _
    %v82 = vld [vmem:[%s0] sm:$0xff]
    %v83 = vld [vmem:[%s0 + $0x8] sm:$0xff]
    %v84 = vld [vmem:[#allocation2] sm:$0x1]
    %v85 = vld [vmem:[#allocation4] sm:$0x1]
    %vm86 = vcmask 261120
    %v87 = vsel %vm86, %v82, 0.0
    %88 = vadd.xlane.f32.xlu0 %v87
    %v89 = vpop.xlane.xlu0 %88
    %v90 = vsel %vm86, %v83, 0.0
    %91 = vadd.xlane.f32.xlu0 %v90
    %v92 = vpop.xlane.xlu0 %91
    %v93 = vrcp.pop 32.0
    %v94 = vmul.f32 32.0, %v93
    %v95 = vsub.f32 1.0, %v94
    %v96 = vmul.f32 %v93, %v95
    %v97 = vadd.f32 %v93, %v96
    %vm98 = vweird.f32 %v93
    %v99 = vsel %vm98, %v93, %v97
    %v100 = vmul.f32 %v89, %v99
    %v101 = vmul.f32 %v92, %v99
    %v102 = vsub.f32 %v82, %v100
    %v103 = vsub.f32 %v83, %v101
    %v104 = vmul.f32 %v102, %v102
    %v105 = vmul.f32 %v103, %v103
    %v106 = vsel %vm86, %v104, 0.0
    %107 = vadd.xlane.f32.xlu0 %v106
    %v108 = vpop.xlane.xlu0 %107
    %v109 = vsel %vm86, %v105, 0.0
    %110 = vadd.xlane.f32.xlu0 %v109
    %v111 = vpop.xlane.xlu0 %110
    %v112 = vmul.f32 %v108, %v99
    %v113 = vmul.f32 %v111, %v99
    %v114 = vadd.f32 %v112, 1e-05
    %v115 = vadd.f32 %v113, 1e-05
    %v116 = vrsqrt.pop %v114
    %v117 = vmul.f32 %v116, %v114
    %v118 = vmul.f32 %v117, %v116
    %v119 = vmul.f32 0.5, %v118
    %v120 = vsub.f32 1.5, %v119
    %v121 = vmul.f32 %v116, %v120
    %vm122 = vweird.f32 %v114
    %vm123 = vweird.f32 %v116
    %vm124 = vmor %vm122, %vm123
    %v125 = vsel %vm124, %v116, %v121
    %v126 = vrsqrt.pop %v115
    %v127 = vmul.f32 %v126, %v115
    %v128 = vmul.f32 %v127, %v126
    %v129 = vmul.f32 0.5, %v128
    %v130 = vsub.f32 1.5, %v129
    %v131 = vmul.f32 %v126, %v130
    %vm132 = vweird.f32 %v115
    %vm133 = vweird.f32 %v126
    %vm134 = vmor %vm132, %vm133
    %v135 = vsel %vm134, %v126, %v131
    %v136 = vmul.f32 %v102, %v125
    %v137 = vmul.f32 %v103, %v135
    %v139 = vperm.slane %v84, 0
    %v141 = vmul.f32 %v136, %v139
    %v142 = vmul.f32 %v137, %v139
    %v144 = vperm.slane %v85, 0
    %v146 = vadd.f32 %v141, %v144
    %v147 = vadd.f32 %v142, %v144
    %v148 = vpack.c.bf16 %v147, %v146
    %v149 = vld [vmem:[%s3] sm:$0xf]
    %v150 = vld [vmem:[%s3 + $0x4] sm:$0xf]
    %v151 = vld [vmem:[%s3 + $0x8] sm:$0xf]
    %v152 = vld [vmem:[%s3 + $0xc] sm:$0xf]
    %v153 = vld [vmem:[#allocation6] sm:$0x1]
    %v155 = vperm.slane %v153, 0
    %v161 = vunpack.c.l.b16 %v149
    %v162 = vunpack.c.l.b16 %v150
    %v163 = vunpack.c.l.b16 %v151
    %v164 = vunpack.c.l.b16 %v152
    %v165 = vpack.c.b16 %v162, %v161
    %v166 = vpack.c.b16 %v164, %v163
    %v170 = vsel %vm86, %v148, 0
    %172 = vmatpush.bf16.msra.mxu0 0
    %173 = vmatpush.bf16.msra.mxu0 0
    %174 = vmatpush.bf16.msra.mxu0 0
    %175 = vmatpush.bf16.msra.mxu0 0
    %176 = vmatpush.bf16.msra.mxu0 0
    %177 = vmatpush.bf16.msra.mxu0 0
    %178 = vmatpush.bf16.msra.mxu0 %v166
    %179 = vmatpush.bf16.msra.mxu0 %v165
    %180 = vmatmul.bf16.gmra.mxu0 %v170
    %v181 = vpop.f32.mrf.mxu0
    %v182 = vadd.f32 %v155, %v181
    %v183 = vpop.f32.mrf.mxu0
    %v184 = vadd.f32 %v155, %v183
    %185 = vdwg.mxu0
    %v186 = vmax.f32 %v182, 0.0
    %v187 = vmax.f32 %v184, 0.0
    %v188 = vpack.c.bf16 %v187, %v186
    %v189 = vld [vmem:[%s5] sm:$0xf]
    %v190 = vld [vmem:[%s5 + $0x4] sm:$0xf]
    %v191 = vld [vmem:[%s5 + $0x8] sm:$0xf]
    %v192 = vld [vmem:[%s5 + $0xc] sm:$0xf]
    %v193 = vld [vmem:[%s5 + $0x10] sm:$0xf]
    %v194 = vld [vmem:[%s5 + $0x14] sm:$0xf]
    %v195 = vld [vmem:[%s5 + $0x18] sm:$0xf]
    %v196 = vld [vmem:[%s5 + $0x1c] sm:$0xf]
    %v197 = vld [vmem:[#allocation7] sm:$0x1]
    %v199 = vperm.slane %v197, 0
    %v209 = vunpack.c.l.b16 %v189
    %v210 = vunpack.c.l.b16 %v190
    %v211 = vunpack.c.l.b16 %v191
    %v212 = vunpack.c.l.b16 %v192
    %v213 = vunpack.c.l.b16 %v193
    %v214 = vunpack.c.l.b16 %v194
    %v215 = vunpack.c.l.b16 %v195
    %v216 = vunpack.c.l.b16 %v196
    %v217 = vpack.c.b16 %v210, %v209
    %v218 = vpack.c.b16 %v212, %v211
    %v219 = vpack.c.b16 %v214, %v213
    %v220 = vpack.c.b16 %v216, %v215
    %vm225 = vcmask 523264
    %v227 = vsel %vm225, %v188, 0
    %229 = vmatpush.bf16.msra.mxu0 0
    %230 = vmatpush.bf16.msra.mxu0 0
    %231 = vmatpush.bf16.msra.mxu0 0
    %232 = vmatpush.bf16.msra.mxu0 0
    %233 = vmatpush.bf16.msra.mxu0 %v220
    %234 = vmatpush.bf16.msra.mxu0 %v219
    %235 = vmatpush.bf16.msra.mxu0 %v218
    %236 = vmatpush.bf16.msra.mxu0 %v217
    %237 = vmatmul.bf16.gmra.mxu0 %v227
    %v238 = vpop.f32.mrf.mxu0
    %v239 = vadd.f32 %v199, %v238
    %v240 = vpop.f32.mrf.mxu0
    %v241 = vadd.f32 %v199, %v240
    %242 = vdwg.mxu0
    %v243 = vadd.f32 %v239, %v82
    %v244 = vadd.f32 %v241, %v83
    %245 = vst.msk [vmem:[%s7] sm:$0xff] %vm86, %v243
    %246 = vst.msk [vmem:[%s7 + $0x8] sm:$0xff] %vm86, %v244
    // Predicated region
    $region46: #{transformer_forward.17} parent=1 // pred_check
      _
    $region47: #{transformer_forward.17} parent=1 // pred_check_branch
      %248 = sbr.rel (0) target = $region49
    $region48: #{transformer_forward.17} parent=1 // pred_region
      _
    $region49: #{transformer_forward.17} parent=1 // pred_fallthru
      _
    // Predicated region
    $region50: #{transformer_forward.17} parent=1 // pred_check
      _
    $region51: #{transformer_forward.17} parent=1 // pred_check_branch
      %250 = sbr.rel (0) target = $region53
    $region52: #{transformer_forward.17} parent=1 // pred_region
      _
    $region53: #{transformer_forward.17} parent=1 // pred_fallthru
      _
    %251 = vsyncpa [#allocation3], 1
    %252 = vsyncpa [#allocation5], 1
    %253 = vsyncpa [#allocation8], 1

// kernel: transformer_forward.21
$region0: #{transformer_forward.21}
  #allocation0 [shape = 'u32[]', space=smem, size = 0x4, offset = 0x4, fixed_abs, tag = 'smem constant byte address 0x4 - core index']
  #allocation1 [shape = 'u32[72,128]{1,0:T(1,128)}', space=vmem, size = 0x9000, scoped, tag = 'internal scratch']
  %s0 = inlined_call_operand.vmem [shape: f32[16,32], index: 0, kind: input, shape index: {}]
  %s1 = inlined_call_operand.vmem [shape: bf16[128,32], index: 1, kind: input, shape index: {}]
  %s2 = inlined_call_operand.vmem [shape: f32[16,128], index: 2, kind: output, shape index: {}]
  %s3 = sld [smem:[#allocation0]]
  $region18: #{transformer_forward.21} parent=0
    _
  %s5 = ssub.s32 1, %s3
  %s6 = scalar_select 0, %s5, %s3
  // Predicated region
  $region2: #{transformer_forward.21} parent=0 // pred_check
    _
  $region3: #{transformer_forward.21} parent=0 // pred_check_branch
    %8 = sbr.rel (0) target = $region5
  $region4: #{transformer_forward.21} parent=0 // pred_region
    _
  $region5: #{transformer_forward.21} parent=0 // pred_fallthru
    _
  // Predicated region
  $region6: #{transformer_forward.21} parent=0 // pred_check
    _
  $region7: #{transformer_forward.21} parent=0 // pred_check_branch
    %10 = sbr.rel (0) target = $region9
  $region8: #{transformer_forward.21} parent=0 // pred_region
    _
  $region9: #{transformer_forward.21} parent=0 // pred_fallthru
    _
  %v11 = vld [vmem:[%s0] sm:$0xff]
  %v12 = vld [vmem:[%s0 + $0x8] sm:$0xff]
  %v13 = vpack.c.bf16 %v12, %v11
  %v14 = vld [vmem:[%s1] sm:$0xf]
  %v15 = vld [vmem:[%s1 + $0x4] sm:$0xf]
  %v16 = vld [vmem:[%s1 + $0x8] sm:$0xf]
  %v17 = vld [vmem:[%s1 + $0xc] sm:$0xf]
  %v18 = vld [vmem:[%s1 + $0x10] sm:$0xf]
  %v19 = vld [vmem:[%s1 + $0x14] sm:$0xf]
  %v20 = vld [vmem:[%s1 + $0x18] sm:$0xf]
  %v21 = vld [vmem:[%s1 + $0x1c] sm:$0xf]
  %v22 = vld [vmem:[%s1 + $0x20] sm:$0xf]
  %v23 = vld [vmem:[%s1 + $0x24] sm:$0xf]
  %v24 = vld [vmem:[%s1 + $0x28] sm:$0xf]
  %v25 = vld [vmem:[%s1 + $0x2c] sm:$0xf]
  %v26 = vld [vmem:[%s1 + $0x30] sm:$0xf]
  %v27 = vld [vmem:[%s1 + $0x34] sm:$0xf]
  %v28 = vld [vmem:[%s1 + $0x38] sm:$0xf]
  %v29 = vld [vmem:[%s1 + $0x3c] sm:$0xf]
  %v46 = vunpack.c.l.b16 %v14
  %v47 = vunpack.c.l.b16 %v15
  %v48 = vunpack.c.l.b16 %v16
  %v49 = vunpack.c.l.b16 %v17
  %v50 = vunpack.c.l.b16 %v18
  %v51 = vunpack.c.l.b16 %v19
  %v52 = vunpack.c.l.b16 %v20
  %v53 = vunpack.c.l.b16 %v21
  %v54 = vunpack.c.l.b16 %v22
  %v55 = vunpack.c.l.b16 %v23
  %v56 = vunpack.c.l.b16 %v24
  %v57 = vunpack.c.l.b16 %v25
  %v58 = vunpack.c.l.b16 %v26
  %v59 = vunpack.c.l.b16 %v27
  %v60 = vunpack.c.l.b16 %v28
  %v61 = vunpack.c.l.b16 %v29
  %v62 = vpack.c.b16 %v47, %v46
  %v63 = vpack.c.b16 %v49, %v48
  %v64 = vpack.c.b16 %v51, %v50
  %v65 = vpack.c.b16 %v53, %v52
  %v66 = vpack.c.b16 %v55, %v54
  %v67 = vpack.c.b16 %v57, %v56
  %v68 = vpack.c.b16 %v59, %v58
  %v69 = vpack.c.b16 %v61, %v60
  %vm70 = vcmask 261120
  %v72 = vsel %vm70, %v13, 0
  %v75 = vsel %vm70, %v62, 0
  %v78 = vsel %vm70, %v63, 0
  %v81 = vsel %vm70, %v64, 0
  %v84 = vsel %vm70, %v65, 0
  %v87 = vsel %vm70, %v66, 0
  %v90 = vsel %vm70, %v67, 0
  %v93 = vsel %vm70, %v68, 0
  %v96 = vsel %vm70, %v69, 0
  %98 = vmatpush.bf16.xpose.msra.mxu0 %v96
  %99 = vmatpush.bf16.xpose.msra.mxu0 %v93
  %100 = vmatpush.bf16.xpose.msra.mxu0 %v90
  %101 = vmatpush.bf16.xpose.msra.mxu0 %v87
  %102 = vmatpush.bf16.xpose.msra.mxu0 %v84
  %103 = vmatpush.bf16.xpose.msra.mxu0 %v81
  %104 = vmatpush.bf16.xpose.msra.mxu0 %v78
  %105 = vmatpush.bf16.xpose.msra.mxu0 %v75
  %106 = vmatmul.bf16.gmra.mxu0 %v72
  %v107 = vpop.f32.mrf.mxu0
  %v108 = vadd.f32 0.0, %v107
  %v109 = vpop.f32.mrf.mxu0
  %v110 = vadd.f32 0.0, %v109
  %111 = vdwg.mxu0
  %112 = vst [vmem:[%s2] sm:$0xff] %v108
  %113 = vst [vmem:[%s2 + $0x8] sm:$0xff] %v110
  // Predicated region
  $region10: #{transformer_forward.21} parent=0 // pred_check
    _
  $region11: #{transformer_forward.21} parent=0 // pred_check_branch
    %115 = sbr.rel (0) target = $region13
  $region12: #{transformer_forward.21} parent=0 // pred_region
    _
  $region13: #{transformer_forward.21} parent=0 // pred_fallthru
    _
  // Predicated region
  $region14: #{transformer_forward.21} parent=0 // pred_check
    _
  $region15: #{transformer_forward.21} parent=0 // pred_check_branch
    %117 = sbr.rel (0) target = $region17
  $region16: #{transformer_forward.21} parent=0 // pred_region
    _
  $region17: #{transformer_forward.21} parent=0 // pred_fallthru
    _

</llo_original>
